<compile_context>
chip_gen: v6e
topology: v6e:2x2x1
jax: 0.10.0
libtpu: 0.0.40
codegen_flags: <defaults>
</compile_context>

<pallas_src>
import jax
import jax.numpy as jnp
from jax.experimental import pallas as pl
from jax.experimental.pallas import tpu as pltpu

_PACK = 128  # atoms packed per lane-dense row


def _round_up(x, m):
    return ((x + m - 1) // m) * m


def _cdiv(a, b):
    return (a + b - 1) // b


# ---------------------------------------------------------------------------
# Kernel: one MXU matmul per head on a lane-packed tile of atoms.
#   x_ref : [tile_rows, ndim * PACK]           (128 atoms interleaved per row)
#   w*_ref: [ndim * PACK, out * PACK]          (block-diagonal: kron(I_PACK, W))
#   b*_ref: [1, out * PACK]                    (bias tiled PACK times)
#   e_ref : [tile_rows, nydim * PACK]          (total_energy, packed)
#   f_ref : [tile_rows, 3 * nydim * PACK]      (forces, packed)
# ---------------------------------------------------------------------------
def _dummynet_kernel(x_ref, w1_ref, b1_ref, w2_ref, b2_ref, e_ref, f_ref):
    x = x_ref[...]
    e_ref[...] = (
        jnp.dot(x, w1_ref[...], preferred_element_type=jnp.float32,
                precision=jax.lax.Precision.HIGHEST)
        + b1_ref[...]
    )
    f_ref[...] = (
        jnp.dot(x, w2_ref[...], preferred_element_type=jnp.float32,
                precision=jax.lax.Precision.HIGHEST)
        + b2_ref[...]
    )


def pack_dummynet_params(w1, b1, w2, b2):
    """Precompute (once, outside the forward path) the packed kernel params.

    Args:
      w1: linear1 weight in torch nn.Linear layout [nydim, ndim].
      b1: [nydim]
      w2: linear2 weight in torch layout [nydim * 3, ndim].
      b2: [nydim * 3]
    Returns:
      (w1p, b1p, w2p, b2p): block-diagonal weights / tiled biases for the kernel.
    """
    w1 = jnp.asarray(w1, jnp.float32).T            # [ndim, nydim]
    w2 = jnp.asarray(w2, jnp.float32).T            # [ndim, 3*nydim]
    eye = jnp.eye(_PACK, dtype=jnp.float32)
    w1p = jnp.kron(eye, w1)                        # [ndim*PACK, nydim*PACK]
    w2p = jnp.kron(eye, w2)                        # [ndim*PACK, 3*nydim*PACK]
    b1p = jnp.tile(jnp.asarray(b1, jnp.float32), _PACK).reshape(1, -1)
    b2p = jnp.tile(jnp.asarray(b2, jnp.float32), _PACK).reshape(1, -1)
    return w1p, b1p, w2p, b2p


@jax.jit
def dummynet_forward(pos, w1p, b1p, w2p, b2p):
    """DummyNet.forward: returns {'forces', 'total_energy'} for pos [n, ndim]."""
    n, ndim = pos.shape
    out_e = b1p.shape[1]                 # nydim * PACK
    out_f = b2p.shape[1]                 # 3 * nydim * PACK
    nydim = out_e // _PACK

    if n == 0:                           # degenerate case: no atoms
        return {"forces": jnp.zeros((0, 3 * nydim), jnp.float32),
                "total_energy": jnp.zeros((0, nydim), jnp.float32)}

    xp = pos.astype(jnp.float32)
    n_pad = _round_up(n, _PACK)
    if n_pad != n:
        # Only copies when num_atoms is not already a multiple of 128.
        xp = jnp.pad(xp, ((0, n_pad - n), (0, 0)))
    n_rows = n_pad // _PACK
    x_packed = xp.reshape(n_rows, ndim * _PACK)      # free row-major reshape

    # ~8K atoms per grid step; split evenly (multiple-of-8 sublanes) so v7x's
    # two TensorCores see balanced tiles when there is more than one step.
    base_rows = 64
    if n_rows <= base_rows:
        tile_rows = n_rows
    else:
        n_steps = _cdiv(n_rows, base_rows)
        tile_rows = min(base_rows, _round_up(_cdiv(n_rows, n_steps), 8))
    grid = (_cdiv(n_rows, tile_rows),)

    e_packed, f_packed = pl.pallas_call(
        _dummynet_kernel,
        out_shape=(
            jax.ShapeDtypeStruct((n_rows, out_e), jnp.float32),
            jax.ShapeDtypeStruct((n_rows, out_f), jnp.float32),
        ),
        grid_spec=pltpu.PrefetchScalarGridSpec(
            num_scalar_prefetch=0,
            grid=grid,
            in_specs=[
                # atom tile: lane-dense (last dim = 384, multiple of 128)
                pl.BlockSpec((tile_rows, ndim * _PACK), lambda i: (i, 0)),
                # block-diagonal weights / tiled biases: resident across steps
                pl.BlockSpec((ndim * _PACK, out_e), lambda i: (0, 0)),
                pl.BlockSpec((1, out_e), lambda i: (0, 0)),
                pl.BlockSpec((ndim * _PACK, out_f), lambda i: (0, 0)),
                pl.BlockSpec((1, out_f), lambda i: (0, 0)),
            ],
            out_specs=[
                pl.BlockSpec((tile_rows, out_e), lambda i: (i, 0)),
                pl.BlockSpec((tile_rows, out_f), lambda i: (i, 0)),
            ],
        ),
        compiler_params=pltpu.CompilerParams(
            dimension_semantics=("parallel",)),
    )(x_packed, w1p, b1p, w2p, b2p)

    # Free reshapes back to per-atom layout; slice pad rows only if we padded.
    total_energy = e_packed.reshape(n_pad, nydim)
    forces = f_packed.reshape(n_pad, 3 * nydim)
    if n_pad != n:
        total_energy = total_energy[:n]
        forces = forces[:n]
    return {"forces": forces, "total_energy": total_energy}


# ---------------------------------------------------------------------------
# Pure-JAX reference for verification (torch-layout weights: y = x @ W.T + b).
# ---------------------------------------------------------------------------
def dummynet_ref(pos, w1, b1, w2, b2):
    return {
        "forces": pos @ jnp.asarray(w2).T + b2,
        "total_energy": pos @ jnp.asarray(w1).T + b1,
    }


if __name__ == "__main__":
    ndim = 3       # '1x1o' positions are 3-vectors
    nydim = 1
    num_atoms = 16

    key = jax.random.PRNGKey(0)
    k_pos, k_w1, k_b1, k_w2, k_b2 = jax.random.split(key, 5)

    pos = jax.random.normal(k_pos, (num_atoms, ndim), dtype=jnp.float32)

    # torch nn.Linear layout: weight [out_features, in_features], uniform(-1/sqrt(in), 1/sqrt(in))
    bound = 1.0 / float(jnp.sqrt(jnp.float32(ndim)))
    w1 = jax.random.uniform(k_w1, (nydim, ndim), jnp.float32, -bound, bound)
    b1 = jax.random.uniform(k_b1, (nydim,), jnp.float32, -bound, bound)
    w2 = jax.random.uniform(k_w2, (nydim * 3, ndim), jnp.float32, -bound, bound)
    b2 = jax.random.uniform(k_b2, (nydim * 3,), jnp.float32, -bound, bound)

    # Packed params are computed once (outside the jitted forward path).
    w1p, b1p, w2p, b2p = pack_dummynet_params(w1, b1, w2, b2)

    out = dummynet_forward(pos, w1p, b1p, w2p, b2p)
    out = jax.block_until_ready(out)

    ref = dummynet_ref(pos, w1, b1, w2, b2)
    assert out["forces"].shape == (num_atoms, nydim * 3)
    assert out["total_energy"].shape == (num_atoms, nydim)
    assert jnp.allclose(out["forces"], ref["forces"], atol=1e-5, rtol=1e-5)
    assert jnp.allclose(out["total_energy"], ref["total_energy"], atol=1e-5, rtol=1e-5)

    # TODO(synk): the module's dict-copy / irreps bookkeeping is host-side metadata,
    # not a kernel concern; only the two linear heads are computed on TPU.
    print("KERNEL_OK")
</pallas_src>

<mosaic_0001>
module attributes {stable_mosaic.version = 11 : i64} {
  func.func @_dummynet_kernel(%arg0: i32, %arg1: memref<1x384xf32, #tpu.memory_space<vmem>>, %arg2: memref<384x128xf32, #tpu.memory_space<vmem>>, %arg3: memref<1x128xf32, #tpu.memory_space<vmem>>, %arg4: memref<384x384xf32, #tpu.memory_space<vmem>>, %arg5: memref<1x384xf32, #tpu.memory_space<vmem>>, %arg6: memref<1x128xf32, #tpu.memory_space<vmem>>, %arg7: memref<1x384xf32, #tpu.memory_space<vmem>>) attributes {dimension_semantics = [#tpu.dimension_semantics<parallel>], iteration_bounds = array<i64: 1>, scalar_prefetch = 0 : i64, scratch_operands = 0 : i64, tpu.core_type = #tpu.core_type<tc>, window_params = [{transform_indices = @transform_0, window_bounds = array<i64: 1, 384>}, {pipeline_mode = #tpu.pipeline_mode<synchronous>, transform_indices = @transform_1, window_bounds = array<i64: 384, 128>}, {pipeline_mode = #tpu.pipeline_mode<synchronous>, transform_indices = @transform_2, window_bounds = array<i64: 1, 128>}, {pipeline_mode = #tpu.pipeline_mode<synchronous>, transform_indices = @transform_3, window_bounds = array<i64: 384, 384>}, {pipeline_mode = #tpu.pipeline_mode<synchronous>, transform_indices = @transform_4, window_bounds = array<i64: 1, 384>}, {transform_indices = @transform_5, window_bounds = array<i64: 1, 128>}, {transform_indices = @transform_6, window_bounds = array<i64: 1, 384>}]} {
    %c0 = arith.constant 0 : index
    %c0_0 = arith.constant 0 : index
    %0 = vector.load %arg1[%c0, %c0_0] : memref<1x384xf32, #tpu.memory_space<vmem>>, vector<1x384xf32>
    %c0_1 = arith.constant 0 : index
    %c0_2 = arith.constant 0 : index
    %1 = vector.load %arg2[%c0_1, %c0_2] : memref<384x128xf32, #tpu.memory_space<vmem>>, vector<384x128xf32>
    %cst = arith.constant dense<0.000000e+00> : vector<1x128xf32>
    %2 = tpu.matmul %0, %1, %cst {dimension_numbers = #tpu.dot_dimension_numbers<[1], [0], [0], [1], [0, 0, 1, 1], [], []>, precision = #tpu.contract_precision<fp32>} : vector<1x384xf32>, vector<384x128xf32>, vector<1x128xf32> -> vector<1x128xf32>
    %c0_3 = arith.constant 0 : index
    %c0_4 = arith.constant 0 : index
    %3 = vector.load %arg3[%c0_3, %c0_4] : memref<1x128xf32, #tpu.memory_space<vmem>>, vector<1x128xf32>
    %4 = arith.addf %2, %3 : vector<1x128xf32>
    %c0_5 = arith.constant 0 : index
    %c0_6 = arith.constant 0 : index
    %5 = vector.load %arg6[%c0_5, %c0_6] : memref<1x128xf32, #tpu.memory_space<vmem>>, vector<1x128xf32>
    tpu.vector_store %arg6[%c0_5, %c0_6], %4 {strides = array<i32>} : memref<1x128xf32, #tpu.memory_space<vmem>>, vector<1x128xf32>,
    %c0_7 = arith.constant 0 : index
    %c0_8 = arith.constant 0 : index
    %6 = vector.load %arg4[%c0_7, %c0_8] : memref<384x384xf32, #tpu.memory_space<vmem>>, vector<384x384xf32>
    %cst_9 = arith.constant dense<0.000000e+00> : vector<1x384xf32>
    %7 = tpu.matmul %0, %6, %cst_9 {dimension_numbers = #tpu.dot_dimension_numbers<[1], [0], [0], [1], [0, 0, 1, 1], [], []>, precision = #tpu.contract_precision<fp32>} : vector<1x384xf32>, vector<384x384xf32>, vector<1x384xf32> -> vector<1x384xf32>
    %c0_10 = arith.constant 0 : index
    %c0_11 = arith.constant 0 : index
    %8 = vector.load %arg5[%c0_10, %c0_11] : memref<1x384xf32, #tpu.memory_space<vmem>>, vector<1x384xf32>
    %9 = arith.addf %7, %8 : vector<1x384xf32>
    %c0_12 = arith.constant 0 : index
    %c0_13 = arith.constant 0 : index
    %10 = vector.load %arg7[%c0_12, %c0_13] : memref<1x384xf32, #tpu.memory_space<vmem>>, vector<1x384xf32>
    tpu.vector_store %arg7[%c0_12, %c0_13], %9 {strides = array<i32>} : memref<1x384xf32, #tpu.memory_space<vmem>>, vector<1x384xf32>,
    return
  }
  func.func @transform_0(%arg0: i32) -> (i32, i32) {
    %c0_i32 = arith.constant 0 : i32
    %c0_i32_0 = arith.constant 0 : i32
    return %arg0, %c0_i32 : i32, i32
  }
  func.func @transform_1(%arg0: i32) -> (i32, i32) {
    %c0_i32 = arith.constant 0 : i32
    %c0_i32_0 = arith.constant 0 : i32
    %c0_i32_1 = arith.constant 0 : i32
    return %c0_i32, %c0_i32_0 : i32, i32
  }
  func.func @transform_2(%arg0: i32) -> (i32, i32) {
    %c0_i32 = arith.constant 0 : i32
    %c0_i32_0 = arith.constant 0 : i32
    %c0_i32_1 = arith.constant 0 : i32
    return %c0_i32, %c0_i32_0 : i32, i32
  }
  func.func @transform_3(%arg0: i32) -> (i32, i32) {
    %c0_i32 = arith.constant 0 : i32
    %c0_i32_0 = arith.constant 0 : i32
    %c0_i32_1 = arith.constant 0 : i32
    return %c0_i32, %c0_i32_0 : i32, i32
  }
  func.func @transform_4(%arg0: i32) -> (i32, i32) {
    %c0_i32 = arith.constant 0 : i32
    %c0_i32_0 = arith.constant 0 : i32
    %c0_i32_1 = arith.constant 0 : i32
    return %c0_i32, %c0_i32_0 : i32, i32
  }
  func.func @transform_5(%arg0: i32) -> (i32, i32) {
    %c0_i32 = arith.constant 0 : i32
    %c0_i32_0 = arith.constant 0 : i32
    return %arg0, %c0_i32 : i32, i32
  }
  func.func @transform_6(%arg0: i32) -> (i32, i32) {
    %c0_i32 = arith.constant 0 : i32
    %c0_i32_0 = arith.constant 0 : i32
    return %arg0, %c0_i32 : i32, i32
  }
}

</mosaic_0001>

<llo_original>
// kernel: dummynet_forward.1
$region0: #{dummynet_forward.1}
  #allocation0 [shape = 'u32[]', space=smem, size = 0x4, offset = 0x4, fixed_abs, tag = 'smem constant byte address 0x4 - core index']
  #allocation1 [shape = 'u32[144,128]{1,0:T(1,128)}', space=vmem, size = 0x12000, scoped, tag = 'internal scratch']
  %s0 = inlined_call_operand.vmem [shape: f32[1,384], index: 0, kind: input, shape index: {}]
  %s1 = inlined_call_operand.hbm [shape: f32[384,128], index: 1, kind: input, shape index: {}]
  %s2 = inlined_call_operand.vmem [shape: f32[1,128], index: 2, kind: input, shape index: {}]
  %s3 = inlined_call_operand.hbm [shape: f32[384,384], index: 3, kind: input, shape index: {}]
  %s4 = inlined_call_operand.vmem [shape: f32[1,384], index: 4, kind: input, shape index: {}]
  %s5 = inlined_call_operand.vmem [shape: f32[1,128], index: 5, kind: output, shape index: {0}]
  %s6 = inlined_call_operand.vmem [shape: f32[1,384], index: 6, kind: output, shape index: {1}]
  %7 = xla_tuple %s5, %s6
  %s8 = sld [smem:[#allocation0]]
  $region46: #{dummynet_forward.1} parent=0
    _
  %s10 = ssub.s32 1, %s8
  %s11 = scalar_select 0, %s10, %s8
  $region1: #{dummynet_forward.1} parent=0
    #allocation2 [shape = 'u8[196608]{0}', space=vmem, size = 0x30000, scoped, tag = 'input window, operand 1, single buffered']
    #allocation3 [shape = 's32[1]{0}', space=sflag, size = 0x4, scoped, tag = 'scoped memory for dummynet_forward.1']
    #allocation4 [shape = 'u8[589824]{0}', space=vmem, size = 0x90000, scoped, tag = 'input window, operand 3, single buffered']
    #allocation5 [shape = 's32[1]{0}', space=sflag, size = 0x4, scoped, tag = 'scoped memory for dummynet_forward.1']
    %12 = vsyncpa [#allocation3], 0
    %13 = vsyncpa [#allocation5], 0
    // Predicated region
    $region2: #{dummynet_forward.1} parent=1 // pred_check
      _
    $region3: #{dummynet_forward.1} parent=1 // pred_check_branch
      %15 = sbr.rel (0) target = $region5
    $region4: #{dummynet_forward.1} parent=1 // pred_region
      _
    $region5: #{dummynet_forward.1} parent=1 // pred_fallthru
      _
    // Predicated region
    $region6: #{dummynet_forward.1} parent=1 // pred_check
      _
    $region7: #{dummynet_forward.1} parent=1 // pred_check_branch
      %17 = sbr.rel (0) target = $region9
    $region8: #{dummynet_forward.1} parent=1 // pred_region
      %s19 = ssub.s32 6144, 6144
      %20 = vsyncadd [#allocation3], %s19
      %s21 = sshll.u32 [#allocation2], 4
      %s22 = int_to_ptr.vmem [resolvable:$true] %s21
      %27 = dma.hbm_to_vmem [thread:$0]  %s1, 6144, %s22, [#allocation3], 128, 128, 8
    $region9: #{dummynet_forward.1} parent=1 // pred_fallthru
      _
    // Predicated region
    $region10: #{dummynet_forward.1} parent=1 // pred_check
      _
    $region11: #{dummynet_forward.1} parent=1 // pred_check_branch
      %29 = sbr.rel (0) target = $region13
    $region12: #{dummynet_forward.1} parent=1 // pred_region
      _
    $region13: #{dummynet_forward.1} parent=1 // pred_fallthru
      _
    // Predicated region
    $region14: #{dummynet_forward.1} parent=1 // pred_check
      _
    $region15: #{dummynet_forward.1} parent=1 // pred_check_branch
      %31 = sbr.rel (0) target = $region17
    $region16: #{dummynet_forward.1} parent=1 // pred_region
      %s33 = ssub.s32 18432, 18432
      %34 = vsyncadd [#allocation5], %s33
      %s35 = sshll.u32 [#allocation4], 4
      %s36 = int_to_ptr.vmem [resolvable:$true] %s35
      %41 = dma.hbm_to_vmem [thread:$0]  %s3, 18432, %s36, [#allocation5], 384, 384, 24
    $region17: #{dummynet_forward.1} parent=1 // pred_fallthru
      _
    // Predicated region
    $region18: #{dummynet_forward.1} parent=1 // pred_check
      _
    $region19: #{dummynet_forward.1} parent=1 // pred_check_branch
      %43 = sbr.rel (0) target = $region21
    $region20: #{dummynet_forward.1} parent=1 // pred_region
      _
    $region21: #{dummynet_forward.1} parent=1 // pred_fallthru
      _
    // Predicated region
    $region22: #{dummynet_forward.1} parent=1 // pred_check
      _
    $region23: #{dummynet_forward.1} parent=1 // pred_check_branch
      %45 = sbr.rel (0) target = $region25
    $region24: #{dummynet_forward.1} parent=1 // pred_region
      %46 = dma.done [#allocation3], 6144
    $region25: #{dummynet_forward.1} parent=1 // pred_fallthru
      _
    // Predicated region
    $region26: #{dummynet_forward.1} parent=1 // pred_check
      _
    $region27: #{dummynet_forward.1} parent=1 // pred_check_branch
      %48 = sbr.rel (0) target = $region29
    $region28: #{dummynet_forward.1} parent=1 // pred_region
      %49 = dma.done [#allocation5], 18432
    $region29: #{dummynet_forward.1} parent=1 // pred_fallthru
      _
    %v50 = vld [vmem:[%s0] sm:$0x7]
    %v51 = vld [vmem:[#allocation2] sm:$0xff]
    %v52 = vld [vmem:[#allocation2 + $0x8] sm:$0xff]
    %v53 = vld [vmem:[#allocation2 + $0x10] sm:$0xff]
    %v54 = vld [vmem:[#allocation2 + $0x18] sm:$0xff]
    %v55 = vld [vmem:[#allocation2 + $0x20] sm:$0xff]
    %v56 = vld [vmem:[#allocation2 + $0x28] sm:$0xff]
    %v57 = vld [vmem:[#allocation2 + $0x30] sm:$0xff]
    %v58 = vld [vmem:[#allocation2 + $0x38] sm:$0xff]
    %v59 = vld [vmem:[#allocation2 + $0x40] sm:$0xff]
    %v60 = vld [vmem:[#allocation2 + $0x48] sm:$0xff]
    %v61 = vld [vmem:[#allocation2 + $0x50] sm:$0xff]
    %v62 = vld [vmem:[#allocation2 + $0x58] sm:$0xff]
    %v63 = vld [vmem:[#allocation2 + $0x60] sm:$0xff]
    %v64 = vld [vmem:[#allocation2 + $0x68] sm:$0xff]
    %v65 = vld [vmem:[#allocation2 + $0x70] sm:$0xff]
    %v66 = vld [vmem:[#allocation2 + $0x78] sm:$0xff]
    %v67 = vld [vmem:[#allocation2 + $0x80] sm:$0xff]
    %v68 = vld [vmem:[#allocation2 + $0x88] sm:$0xff]
    %v69 = vld [vmem:[#allocation2 + $0x90] sm:$0xff]
    %v70 = vld [vmem:[#allocation2 + $0x98] sm:$0xff]
    %v71 = vld [vmem:[#allocation2 + $0xa0] sm:$0xff]
    %v72 = vld [vmem:[#allocation2 + $0xa8] sm:$0xff]
    %v73 = vld [vmem:[#allocation2 + $0xb0] sm:$0xff]
    %v74 = vld [vmem:[#allocation2 + $0xb8] sm:$0xff]
    %v75 = vld [vmem:[#allocation2 + $0xc0] sm:$0xff]
    %v76 = vld [vmem:[#allocation2 + $0xc8] sm:$0xff]
    %v77 = vld [vmem:[#allocation2 + $0xd0] sm:$0xff]
    %v78 = vld [vmem:[#allocation2 + $0xd8] sm:$0xff]
    %v79 = vld [vmem:[#allocation2 + $0xe0] sm:$0xff]
    %v80 = vld [vmem:[#allocation2 + $0xe8] sm:$0xff]
    %v81 = vld [vmem:[#allocation2 + $0xf0] sm:$0xff]
    %v82 = vld [vmem:[#allocation2 + $0xf8] sm:$0xff]
    %v83 = vld [vmem:[#allocation2 + $0x100] sm:$0xff]
    %v84 = vld [vmem:[#allocation2 + $0x108] sm:$0xff]
    %v85 = vld [vmem:[#allocation2 + $0x110] sm:$0xff]
    %v86 = vld [vmem:[#allocation2 + $0x118] sm:$0xff]
    %v87 = vld [vmem:[#allocation2 + $0x120] sm:$0xff]
    %v88 = vld [vmem:[#allocation2 + $0x128] sm:$0xff]
    %v89 = vld [vmem:[#allocation2 + $0x130] sm:$0xff]
    %v90 = vld [vmem:[#allocation2 + $0x138] sm:$0xff]
    %v91 = vld [vmem:[#allocation2 + $0x140] sm:$0xff]
    %v92 = vld [vmem:[#allocation2 + $0x148] sm:$0xff]
    %v93 = vld [vmem:[#allocation2 + $0x150] sm:$0xff]
    %v94 = vld [vmem:[#allocation2 + $0x158] sm:$0xff]
    %v95 = vld [vmem:[#allocation2 + $0x160] sm:$0xff]
    %v96 = vld [vmem:[#allocation2 + $0x168] sm:$0xff]
    %v97 = vld [vmem:[#allocation2 + $0x170] sm:$0xff]
    %v98 = vld [vmem:[#allocation2 + $0x178] sm:$0xff]
    %v99 = vld [vmem:[%s2] sm:$0x1]
    %v101 = vlaneseq
    %v102 = vshrl.u32 %v101, 7
    %v103 = vsub.s32 0, %v102
    %v104 = vrot.slane %v50, %v103
    %v105 = vlaneseq
    %v106 = vshrl.u32 %v105, 7
    %v107 = vsub.s32 1, %v106
    %v108 = vrot.slane %v50, %v107
    %v109 = vlaneseq
    %v110 = vshrl.u32 %v109, 7
    %v111 = vsub.s32 2, %v110
    %v112 = vrot.slane %v50, %v111
    %116 = vmatprep.subr.mxu0 0.0
    %v117 = vand.u32 %v66, 4294901760
    %118 = vmatpush1.msra.mxu0 %v117
    %119 = vmatprep.subr.mxu0 0.0
    %v120 = vand.u32 %v65, 4294901760
    %121 = vmatpush1.msra.mxu0 %v120
    %122 = vmatprep.subr.mxu0 0.0
    %v123 = vand.u32 %v64, 4294901760
    %124 = vmatpush1.msra.mxu0 %v123
    %125 = vmatprep.subr.mxu0 0.0
    %v126 = vand.u32 %v63, 4294901760
    %127 = vmatpush1.msra.mxu0 %v126
    %128 = vmatprep.subr.mxu0 0.0
    %v129 = vand.u32 %v62, 4294901760
    %130 = vmatpush1.msra.mxu0 %v129
    %131 = vmatprep.subr.mxu0 0.0
    %v132 = vand.u32 %v61, 4294901760
    %133 = vmatpush1.msra.mxu0 %v132
    %134 = vmatprep.subr.mxu0 0.0
    %v135 = vand.u32 %v60, 4294901760
    %136 = vmatpush1.msra.mxu0 %v135
    %137 = vmatprep.subr.mxu0 0.0
    %v138 = vand.u32 %v59, 4294901760
    %139 = vmatpush1.msra.mxu0 %v138
    %140 = vmatprep.subr.mxu0 0.0
    %v141 = vand.u32 %v58, 4294901760
    %142 = vmatpush1.msra.mxu0 %v141
    %143 = vmatprep.subr.mxu0 0.0
    %v144 = vand.u32 %v57, 4294901760
    %145 = vmatpush1.msra.mxu0 %v144
    %146 = vmatprep.subr.mxu0 0.0
    %v147 = vand.u32 %v56, 4294901760
    %148 = vmatpush1.msra.mxu0 %v147
    %149 = vmatprep.subr.mxu0 0.0
    %v150 = vand.u32 %v55, 4294901760
    %151 = vmatpush1.msra.mxu0 %v150
    %152 = vmatprep.subr.mxu0 0.0
    %v153 = vand.u32 %v54, 4294901760
    %154 = vmatpush1.msra.mxu0 %v153
    %155 = vmatprep.subr.mxu0 0.0
    %v156 = vand.u32 %v53, 4294901760
    %157 = vmatpush1.msra.mxu0 %v156
    %158 = vmatprep.subr.mxu0 0.0
    %v159 = vand.u32 %v52, 4294901760
    %160 = vmatpush1.msra.mxu0 %v159
    %161 = vmatprep.subr.mxu0 0.0
    %v162 = vand.u32 %v51, 4294901760
    %163 = vmatpush1.msra.mxu0 %v162
    %164 = vmatprep.subr.mxu0 0.0
    %v165 = vand.u32 %v82, 4294901760
    %166 = vmatpush2.msra.mxu0 %v165
    %167 = vmatprep.subr.mxu0 0.0
    %v168 = vand.u32 %v81, 4294901760
    %169 = vmatpush2.msra.mxu0 %v168
    %170 = vmatprep.subr.mxu0 0.0
    %v171 = vand.u32 %v80, 4294901760
    %172 = vmatpush2.msra.mxu0 %v171
    %173 = vmatprep.subr.mxu0 0.0
    %v174 = vand.u32 %v79, 4294901760
    %175 = vmatpush2.msra.mxu0 %v174
    %176 = vmatprep.subr.mxu0 0.0
    %v177 = vand.u32 %v78, 4294901760
    %178 = vmatpush2.msra.mxu0 %v177
    %179 = vmatprep.subr.mxu0 0.0
    %v180 = vand.u32 %v77, 4294901760
    %181 = vmatpush2.msra.mxu0 %v180
    %182 = vmatprep.subr.mxu0 0.0
    %v183 = vand.u32 %v76, 4294901760
    %184 = vmatpush2.msra.mxu0 %v183
    %185 = vmatprep.subr.mxu0 0.0
    %v186 = vand.u32 %v75, 4294901760
    %187 = vmatpush2.msra.mxu0 %v186
    %188 = vmatprep.subr.mxu0 0.0
    %v189 = vand.u32 %v74, 4294901760
    %190 = vmatpush2.msra.mxu0 %v189
    %191 = vmatprep.subr.mxu0 0.0
    %v192 = vand.u32 %v73, 4294901760
    %193 = vmatpush2.msra.mxu0 %v192
    %194 = vmatprep.subr.mxu0 0.0
    %v195 = vand.u32 %v72, 4294901760
    %196 = vmatpush2.msra.mxu0 %v195
    %197 = vmatprep.subr.mxu0 0.0
    %v198 = vand.u32 %v71, 4294901760
    %199 = vmatpush2.msra.mxu0 %v198
    %200 = vmatprep.subr.mxu0 0.0
    %v201 = vand.u32 %v70, 4294901760
    %202 = vmatpush2.msra.mxu0 %v201
    %203 = vmatprep.subr.mxu0 0.0
    %v204 = vand.u32 %v69, 4294901760
    %205 = vmatpush2.msra.mxu0 %v204
    %206 = vmatprep.subr.mxu0 0.0
    %v207 = vand.u32 %v68, 4294901760
    %208 = vmatpush2.msra.mxu0 %v207
    %209 = vmatprep.subr.mxu0 0.0
    %v210 = vand.u32 %v67, 4294901760
    %211 = vmatpush2.msra.mxu0 %v210
    %v212 = vand.u32 %v108, 4294901760
    %v213 = vsub.f32 %v108, %v212
    %v214 = vand.u32 %v213, 4294901760
    %v215 = vsub.f32 %v213, %v214
    %v216 = vand.u32 %v215, 4294901760
    %217 = vmatprep.mubr.f32.mxu0 %v216
    %v218 = vand.u32 %v104, 4294901760
    %v219 = vsub.f32 %v104, %v218
    %v220 = vand.u32 %v219, 4294901760
    %v221 = vsub.f32 %v219, %v220
    %v222 = vand.u32 %v221, 4294901760
    %223 = vmatmul.mubr.f32.gmra.mxu0 %v222
    %v224 = vpop.f32.mrf.mxu0
    %v225 = vadd.f32 %v99, %v224
    %v226 = vpop.f32.mrf.mxu0
    %227 = vdwg.mxu0
    %228 = vmatprep.subr.mxu0 0.0
    %v229 = vand.u32 %v66, 4294901760
    %v230 = vsub.f32 %v66, %v229
    %v231 = vand.u32 %v230, 4294901760
    %v232 = vsub.f32 %v230, %v231
    %v233 = vand.u32 %v232, 4294901760
    %234 = vmatpush1.msra.mxu0 %v233
    %235 = vmatprep.subr.mxu0 0.0
    %v236 = vand.u32 %v65, 4294901760
    %v237 = vsub.f32 %v65, %v236
    %v238 = vand.u32 %v237, 4294901760
    %v239 = vsub.f32 %v237, %v238
    %v240 = vand.u32 %v239, 4294901760
    %241 = vmatpush1.msra.mxu0 %v240
    %242 = vmatprep.subr.mxu0 0.0
    %v243 = vand.u32 %v64, 4294901760
    %v244 = vsub.f32 %v64, %v243
    %v245 = vand.u32 %v244, 4294901760
    %v246 = vsub.f32 %v244, %v245
    %v247 = vand.u32 %v246, 4294901760
    %248 = vmatpush1.msra.mxu0 %v247
    %249 = vmatprep.subr.mxu0 0.0
    %v250 = vand.u32 %v63, 4294901760
    %v251 = vsub.f32 %v63, %v250
    %v252 = vand.u32 %v251, 4294901760
    %v253 = vsub.f32 %v251, %v252
    %v254 = vand.u32 %v253, 4294901760
    %255 = vmatpush1.msra.mxu0 %v254
    %256 = vmatprep.subr.mxu0 0.0
    %v257 = vand.u32 %v62, 4294901760
    %v258 = vsub.f32 %v62, %v257
    %v259 = vand.u32 %v258, 4294901760
    %v260 = vsub.f32 %v258, %v259
    %v261 = vand.u32 %v260, 4294901760
    %262 = vmatpush1.msra.mxu0 %v261
    %263 = vmatprep.subr.mxu0 0.0
    %v264 = vand.u32 %v61, 4294901760
    %v265 = vsub.f32 %v61, %v264
    %v266 = vand.u32 %v265, 4294901760
    %v267 = vsub.f32 %v265, %v266
    %v268 = vand.u32 %v267, 4294901760
    %269 = vmatpush1.msra.mxu0 %v268
    %270 = vmatprep.subr.mxu0 0.0
    %v271 = vand.u32 %v60, 4294901760
    %v272 = vsub.f32 %v60, %v271
    %v273 = vand.u32 %v272, 4294901760
    %v274 = vsub.f32 %v272, %v273
    %v275 = vand.u32 %v274, 4294901760
    %276 = vmatpush1.msra.mxu0 %v275
    %277 = vmatprep.subr.mxu0 0.0
    %v278 = vand.u32 %v59, 4294901760
    %v279 = vsub.f32 %v59, %v278
    %v280 = vand.u32 %v279, 4294901760
    %v281 = vsub.f32 %v279, %v280
    %v282 = vand.u32 %v281, 4294901760
    %283 = vmatpush1.msra.mxu0 %v282
    %284 = vmatprep.subr.mxu0 0.0
    %v285 = vand.u32 %v58, 4294901760
    %v286 = vsub.f32 %v58, %v285
    %v287 = vand.u32 %v286, 4294901760
    %v288 = vsub.f32 %v286, %v287
    %v289 = vand.u32 %v288, 4294901760
    %290 = vmatpush1.msra.mxu0 %v289
    %291 = vmatprep.subr.mxu0 0.0
    %v292 = vand.u32 %v57, 4294901760
    %v293 = vsub.f32 %v57, %v292
    %v294 = vand.u32 %v293, 4294901760
    %v295 = vsub.f32 %v293, %v294
    %v296 = vand.u32 %v295, 4294901760
    %297 = vmatpush1.msra.mxu0 %v296
    %298 = vmatprep.subr.mxu0 0.0
    %v299 = vand.u32 %v56, 4294901760
    %v300 = vsub.f32 %v56, %v299
    %v301 = vand.u32 %v300, 4294901760
    %v302 = vsub.f32 %v300, %v301
    %v303 = vand.u32 %v302, 4294901760
    %304 = vmatpush1.msra.mxu0 %v303
    %305 = vmatprep.subr.mxu0 0.0
    %v306 = vand.u32 %v55, 4294901760
    %v307 = vsub.f32 %v55, %v306
    %v308 = vand.u32 %v307, 4294901760
    %v309 = vsub.f32 %v307, %v308
    %v310 = vand.u32 %v309, 4294901760
    %311 = vmatpush1.msra.mxu0 %v310
    %312 = vmatprep.subr.mxu0 0.0
    %v313 = vand.u32 %v54, 4294901760
    %v314 = vsub.f32 %v54, %v313
    %v315 = vand.u32 %v314, 4294901760
    %v316 = vsub.f32 %v314, %v315
    %v317 = vand.u32 %v316, 4294901760
    %318 = vmatpush1.msra.mxu0 %v317
    %319 = vmatprep.subr.mxu0 0.0
    %v320 = vand.u32 %v53, 4294901760
    %v321 = vsub.f32 %v53, %v320
    %v322 = vand.u32 %v321, 4294901760
    %v323 = vsub.f32 %v321, %v322
    %v324 = vand.u32 %v323, 4294901760
    %325 = vmatpush1.msra.mxu0 %v324
    %326 = vmatprep.subr.mxu0 0.0
    %v327 = vand.u32 %v52, 4294901760
    %v328 = vsub.f32 %v52, %v327
    %v329 = vand.u32 %v328, 4294901760
    %v330 = vsub.f32 %v328, %v329
    %v331 = vand.u32 %v330, 4294901760
    %332 = vmatpush1.msra.mxu0 %v331
    %333 = vmatprep.subr.mxu0 0.0
    %v334 = vand.u32 %v51, 4294901760
    %v335 = vsub.f32 %v51, %v334
    %v336 = vand.u32 %v335, 4294901760
    %v337 = vsub.f32 %v335, %v336
    %v338 = vand.u32 %v337, 4294901760
    %339 = vmatpush1.msra.mxu0 %v338
    %340 = vmatprep.subr.mxu0 0.0
    %v341 = vand.u32 %v82, 4294901760
    %v342 = vsub.f32 %v82, %v341
    %v343 = vand.u32 %v342, 4294901760
    %v344 = vsub.f32 %v342, %v343
    %v345 = vand.u32 %v344, 4294901760
    %346 = vmatpush2.msra.mxu0 %v345
    %347 = vmatprep.subr.mxu0 0.0
    %v348 = vand.u32 %v81, 4294901760
    %v349 = vsub.f32 %v81, %v348
    %v350 = vand.u32 %v349, 4294901760
    %v351 = vsub.f32 %v349, %v350
    %v352 = vand.u32 %v351, 4294901760
    %353 = vmatpush2.msra.mxu0 %v352
    %354 = vmatprep.subr.mxu0 0.0
    %v355 = vand.u32 %v80, 4294901760
    %v356 = vsub.f32 %v80, %v355
    %v357 = vand.u32 %v356, 4294901760
    %v358 = vsub.f32 %v356, %v357
    %v359 = vand.u32 %v358, 4294901760
    %360 = vmatpush2.msra.mxu0 %v359
    %361 = vmatprep.subr.mxu0 0.0
    %v362 = vand.u32 %v79, 4294901760
    %v363 = vsub.f32 %v79, %v362
    %v364 = vand.u32 %v363, 4294901760
    %v365 = vsub.f32 %v363, %v364
    %v366 = vand.u32 %v365, 4294901760
    %367 = vmatpush2.msra.mxu0 %v366
    %368 = vmatprep.subr.mxu0 0.0
    %v369 = vand.u32 %v78, 4294901760
    %v370 = vsub.f32 %v78, %v369
    %v371 = vand.u32 %v370, 4294901760
    %v372 = vsub.f32 %v370, %v371
    %v373 = vand.u32 %v372, 4294901760
    %374 = vmatpush2.msra.mxu0 %v373
    %375 = vmatprep.subr.mxu0 0.0
    %v376 = vand.u32 %v77, 4294901760
    %v377 = vsub.f32 %v77, %v376
    %v378 = vand.u32 %v377, 4294901760
    %v379 = vsub.f32 %v377, %v378
    %v380 = vand.u32 %v379, 4294901760
    %381 = vmatpush2.msra.mxu0 %v380
    %382 = vmatprep.subr.mxu0 0.0
    %v383 = vand.u32 %v76, 4294901760
    %v384 = vsub.f32 %v76, %v383
    %v385 = vand.u32 %v384, 4294901760
    %v386 = vsub.f32 %v384, %v385
    %v387 = vand.u32 %v386, 4294901760
    %388 = vmatpush2.msra.mxu0 %v387
    %389 = vmatprep.subr.mxu0 0.0
    %v390 = vand.u32 %v75, 4294901760
    %v391 = vsub.f32 %v75, %v390
    %v392 = vand.u32 %v391, 4294901760
    %v393 = vsub.f32 %v391, %v392
    %v394 = vand.u32 %v393, 4294901760
    %395 = vmatpush2.msra.mxu0 %v394
    %396 = vmatprep.subr.mxu0 0.0
    %v397 = vand.u32 %v74, 4294901760
    %v398 = vsub.f32 %v74, %v397
    %v399 = vand.u32 %v398, 4294901760
    %v400 = vsub.f32 %v398, %v399
    %v401 = vand.u32 %v400, 4294901760
    %402 = vmatpush2.msra.mxu0 %v401
    %403 = vmatprep.subr.mxu0 0.0
    %v404 = vand.u32 %v73, 4294901760
    %v405 = vsub.f32 %v73, %v404
    %v406 = vand.u32 %v405, 4294901760
    %v407 = vsub.f32 %v405, %v406
    %v408 = vand.u32 %v407, 4294901760
    %409 = vmatpush2.msra.mxu0 %v408
    %410 = vmatprep.subr.mxu0 0.0
    %v411 = vand.u32 %v72, 4294901760
    %v412 = vsub.f32 %v72, %v411
    %v413 = vand.u32 %v412, 4294901760
    %v414 = vsub.f32 %v412, %v413
    %v415 = vand.u32 %v414, 4294901760
    %416 = vmatpush2.msra.mxu0 %v415
    %417 = vmatprep.subr.mxu0 0.0
    %v418 = vand.u32 %v71, 4294901760
    %v419 = vsub.f32 %v71, %v418
    %v420 = vand.u32 %v419, 4294901760
    %v421 = vsub.f32 %v419, %v420
    %v422 = vand.u32 %v421, 4294901760
    %423 = vmatpush2.msra.mxu0 %v422
    %424 = vmatprep.subr.mxu0 0.0
    %v425 = vand.u32 %v70, 4294901760
    %v426 = vsub.f32 %v70, %v425
    %v427 = vand.u32 %v426, 4294901760
    %v428 = vsub.f32 %v426, %v427
    %v429 = vand.u32 %v428, 4294901760
    %430 = vmatpush2.msra.mxu0 %v429
    %431 = vmatprep.subr.mxu0 0.0
    %v432 = vand.u32 %v69, 4294901760
    %v433 = vsub.f32 %v69, %v432
    %v434 = vand.u32 %v433, 4294901760
    %v435 = vsub.f32 %v433, %v434
    %v436 = vand.u32 %v435, 4294901760
    %437 = vmatpush2.msra.mxu0 %v436
    %438 = vmatprep.subr.mxu0 0.0
    %v439 = vand.u32 %v68, 4294901760
    %v440 = vsub.f32 %v68, %v439
    %v441 = vand.u32 %v440, 4294901760
    %v442 = vsub.f32 %v440, %v441
    %v443 = vand.u32 %v442, 4294901760
    %444 = vmatpush2.msra.mxu0 %v443
    %445 = vmatprep.subr.mxu0 0.0
    %v446 = vand.u32 %v67, 4294901760
    %v447 = vsub.f32 %v67, %v446
    %v448 = vand.u32 %v447, 4294901760
    %v449 = vsub.f32 %v447, %v448
    %v450 = vand.u32 %v449, 4294901760
    %451 = vmatpush2.msra.mxu0 %v450
    %v452 = vand.u32 %v108, 4294901760
    %453 = vmatprep.mubr.f32.mxu0 %v452
    %v454 = vand.u32 %v104, 4294901760
    %455 = vmatmul.mubr.f32.gmra.mxu0 %v454
    %v456 = vpop.f32.mrf.mxu0
    %v457 = vadd.f32 %v225, %v456
    %v458 = vpop.f32.mrf.mxu0
    %459 = vdwg.mxu0
    %460 = vmatprep.subr.mxu0 0.0
    %v461 = vand.u32 %v66, 4294901760
    %v462 = vsub.f32 %v66, %v461
    %463 = vmatpush1.msra.mxu0 %v462
    %464 = vmatprep.subr.mxu0 0.0
    %v465 = vand.u32 %v65, 4294901760
    %v466 = vsub.f32 %v65, %v465
    %467 = vmatpush1.msra.mxu0 %v466
    %468 = vmatprep.subr.mxu0 0.0
    %v469 = vand.u32 %v64, 4294901760
    %v470 = vsub.f32 %v64, %v469
    %471 = vmatpush1.msra.mxu0 %v470
    %472 = vmatprep.subr.mxu0 0.0
    %v473 = vand.u32 %v63, 4294901760
    %v474 = vsub.f32 %v63, %v473
    %475 = vmatpush1.msra.mxu0 %v474
    %476 = vmatprep.subr.mxu0 0.0
    %v477 = vand.u32 %v62, 4294901760
    %v478 = vsub.f32 %v62, %v477
    %479 = vmatpush1.msra.mxu0 %v478
    %480 = vmatprep.subr.mxu0 0.0
    %v481 = vand.u32 %v61, 4294901760
    %v482 = vsub.f32 %v61, %v481
    %483 = vmatpush1.msra.mxu0 %v482
    %484 = vmatprep.subr.mxu0 0.0
    %v485 = vand.u32 %v60, 4294901760
    %v486 = vsub.f32 %v60, %v485
    %487 = vmatpush1.msra.mxu0 %v486
    %488 = vmatprep.subr.mxu0 0.0
    %v489 = vand.u32 %v59, 4294901760
    %v490 = vsub.f32 %v59, %v489
    %491 = vmatpush1.msra.mxu0 %v490
    %492 = vmatprep.subr.mxu0 0.0
    %v493 = vand.u32 %v58, 4294901760
    %v494 = vsub.f32 %v58, %v493
    %495 = vmatpush1.msra.mxu0 %v494
    %496 = vmatprep.subr.mxu0 0.0
    %v497 = vand.u32 %v57, 4294901760
    %v498 = vsub.f32 %v57, %v497
    %499 = vmatpush1.msra.mxu0 %v498
    %500 = vmatprep.subr.mxu0 0.0
    %v501 = vand.u32 %v56, 4294901760
    %v502 = vsub.f32 %v56, %v501
    %503 = vmatpush1.msra.mxu0 %v502
    %504 = vmatprep.subr.mxu0 0.0
    %v505 = vand.u32 %v55, 4294901760
    %v506 = vsub.f32 %v55, %v505
    %507 = vmatpush1.msra.mxu0 %v506
    %508 = vmatprep.subr.mxu0 0.0
    %v509 = vand.u32 %v54, 4294901760
    %v510 = vsub.f32 %v54, %v509
    %511 = vmatpush1.msra.mxu0 %v510
    %512 = vmatprep.subr.mxu0 0.0
    %v513 = vand.u32 %v53, 4294901760
    %v514 = vsub.f32 %v53, %v513
    %515 = vmatpush1.msra.mxu0 %v514
    %516 = vmatprep.subr.mxu0 0.0
    %v517 = vand.u32 %v52, 4294901760
    %v518 = vsub.f32 %v52, %v517
    %519 = vmatpush1.msra.mxu0 %v518
    %520 = vmatprep.subr.mxu0 0.0
    %v521 = vand.u32 %v51, 4294901760
    %v522 = vsub.f32 %v51, %v521
    %523 = vmatpush1.msra.mxu0 %v522
    %524 = vmatprep.subr.mxu0 0.0
    %v525 = vand.u32 %v82, 4294901760
    %v526 = vsub.f32 %v82, %v525
    %527 = vmatpush2.msra.mxu0 %v526
    %528 = vmatprep.subr.mxu0 0.0
    %v529 = vand.u32 %v81, 4294901760
    %v530 = vsub.f32 %v81, %v529
    %531 = vmatpush2.msra.mxu0 %v530
    %532 = vmatprep.subr.mxu0 0.0
    %v533 = vand.u32 %v80, 4294901760
    %v534 = vsub.f32 %v80, %v533
    %535 = vmatpush2.msra.mxu0 %v534
    %536 = vmatprep.subr.mxu0 0.0
    %v537 = vand.u32 %v79, 4294901760
    %v538 = vsub.f32 %v79, %v537
    %539 = vmatpush2.msra.mxu0 %v538
    %540 = vmatprep.subr.mxu0 0.0
    %v541 = vand.u32 %v78, 4294901760
    %v542 = vsub.f32 %v78, %v541
    %543 = vmatpush2.msra.mxu0 %v542
    %544 = vmatprep.subr.mxu0 0.0
    %v545 = vand.u32 %v77, 4294901760
    %v546 = vsub.f32 %v77, %v545
    %547 = vmatpush2.msra.mxu0 %v546
    %548 = vmatprep.subr.mxu0 0.0
    %v549 = vand.u32 %v76, 4294901760
    %v550 = vsub.f32 %v76, %v549
    %551 = vmatpush2.msra.mxu0 %v550
    %552 = vmatprep.subr.mxu0 0.0
    %v553 = vand.u32 %v75, 4294901760
    %v554 = vsub.f32 %v75, %v553
    %555 = vmatpush2.msra.mxu0 %v554
    %556 = vmatprep.subr.mxu0 0.0
    %v557 = vand.u32 %v74, 4294901760
    %v558 = vsub.f32 %v74, %v557
    %559 = vmatpush2.msra.mxu0 %v558
    %560 = vmatprep.subr.mxu0 0.0
    %v561 = vand.u32 %v73, 4294901760
    %v562 = vsub.f32 %v73, %v561
    %563 = vmatpush2.msra.mxu0 %v562
    %564 = vmatprep.subr.mxu0 0.0
    %v565 = vand.u32 %v72, 4294901760
    %v566 = vsub.f32 %v72, %v565
    %567 = vmatpush2.msra.mxu0 %v566
    %568 = vmatprep.subr.mxu0 0.0
    %v569 = vand.u32 %v71, 4294901760
    %v570 = vsub.f32 %v71, %v569
    %571 = vmatpush2.msra.mxu0 %v570
    %572 = vmatprep.subr.mxu0 0.0
    %v573 = vand.u32 %v70, 4294901760
    %v574 = vsub.f32 %v70, %v573
    %575 = vmatpush2.msra.mxu0 %v574
    %576 = vmatprep.subr.mxu0 0.0
    %v577 = vand.u32 %v69, 4294901760
    %v578 = vsub.f32 %v69, %v577
    %579 = vmatpush2.msra.mxu0 %v578
    %580 = vmatprep.subr.mxu0 0.0
    %v581 = vand.u32 %v68, 4294901760
    %v582 = vsub.f32 %v68, %v581
    %583 = vmatpush2.msra.mxu0 %v582
    %584 = vmatprep.subr.mxu0 0.0
    %v585 = vand.u32 %v67, 4294901760
    %v586 = vsub.f32 %v67, %v585
    %587 = vmatpush2.msra.mxu0 %v586
    %v588 = vand.u32 %v108, 4294901760
    %v589 = vsub.f32 %v108, %v588
    %590 = vmatprep.mubr.f32.mxu0 %v589
    %v591 = vand.u32 %v104, 4294901760
    %v592 = vsub.f32 %v104, %v591
    %593 = vmatmul.mubr.f32.gmra.mxu0 %v592
    %v594 = vpop.f32.mrf.mxu0
    %v595 = vadd.f32 %v457, %v594
    %v596 = vpop.f32.mrf.mxu0
    %597 = vdwg.mxu0
    %598 = vmatprep.subr.mxu0 0.0
    %v599 = vand.u32 %v66, 4294901760
    %600 = vmatpush1.msra.mxu0 %v599
    %601 = vmatprep.subr.mxu0 0.0
    %v602 = vand.u32 %v65, 4294901760
    %603 = vmatpush1.msra.mxu0 %v602
    %604 = vmatprep.subr.mxu0 0.0
    %v605 = vand.u32 %v64, 4294901760
    %606 = vmatpush1.msra.mxu0 %v605
    %607 = vmatprep.subr.mxu0 0.0
    %v608 = vand.u32 %v63, 4294901760
    %609 = vmatpush1.msra.mxu0 %v608
    %610 = vmatprep.subr.mxu0 0.0
    %v611 = vand.u32 %v62, 4294901760
    %612 = vmatpush1.msra.mxu0 %v611
    %613 = vmatprep.subr.mxu0 0.0
    %v614 = vand.u32 %v61, 4294901760
    %615 = vmatpush1.msra.mxu0 %v614
    %616 = vmatprep.subr.mxu0 0.0
    %v617 = vand.u32 %v60, 4294901760
    %618 = vmatpush1.msra.mxu0 %v617
    %619 = vmatprep.subr.mxu0 0.0
    %v620 = vand.u32 %v59, 4294901760
    %621 = vmatpush1.msra.mxu0 %v620
    %622 = vmatprep.subr.mxu0 0.0
    %v623 = vand.u32 %v58, 4294901760
    %624 = vmatpush1.msra.mxu0 %v623
    %625 = vmatprep.subr.mxu0 0.0
    %v626 = vand.u32 %v57, 4294901760
    %627 = vmatpush1.msra.mxu0 %v626
    %628 = vmatprep.subr.mxu0 0.0
    %v629 = vand.u32 %v56, 4294901760
    %630 = vmatpush1.msra.mxu0 %v629
    %631 = vmatprep.subr.mxu0 0.0
    %v632 = vand.u32 %v55, 4294901760
    %633 = vmatpush1.msra.mxu0 %v632
    %634 = vmatprep.subr.mxu0 0.0
    %v635 = vand.u32 %v54, 4294901760
    %636 = vmatpush1.msra.mxu0 %v635
    %637 = vmatprep.subr.mxu0 0.0
    %v638 = vand.u32 %v53, 4294901760
    %639 = vmatpush1.msra.mxu0 %v638
    %640 = vmatprep.subr.mxu0 0.0
    %v641 = vand.u32 %v52, 4294901760
    %642 = vmatpush1.msra.mxu0 %v641
    %643 = vmatprep.subr.mxu0 0.0
    %v644 = vand.u32 %v51, 4294901760
    %645 = vmatpush1.msra.mxu0 %v644
    %646 = vmatprep.subr.mxu0 0.0
    %v647 = vand.u32 %v82, 4294901760
    %648 = vmatpush2.msra.mxu0 %v647
    %649 = vmatprep.subr.mxu0 0.0
    %v650 = vand.u32 %v81, 4294901760
    %651 = vmatpush2.msra.mxu0 %v650
    %652 = vmatprep.subr.mxu0 0.0
    %v653 = vand.u32 %v80, 4294901760
    %654 = vmatpush2.msra.mxu0 %v653
    %655 = vmatprep.subr.mxu0 0.0
    %v656 = vand.u32 %v79, 4294901760
    %657 = vmatpush2.msra.mxu0 %v656
    %658 = vmatprep.subr.mxu0 0.0
    %v659 = vand.u32 %v78, 4294901760
    %660 = vmatpush2.msra.mxu0 %v659
    %661 = vmatprep.subr.mxu0 0.0
    %v662 = vand.u32 %v77, 4294901760
    %663 = vmatpush2.msra.mxu0 %v662
    %664 = vmatprep.subr.mxu0 0.0
    %v665 = vand.u32 %v76, 4294901760
    %666 = vmatpush2.msra.mxu0 %v665
    %667 = vmatprep.subr.mxu0 0.0
    %v668 = vand.u32 %v75, 4294901760
    %669 = vmatpush2.msra.mxu0 %v668
    %670 = vmatprep.subr.mxu0 0.0
    %v671 = vand.u32 %v74, 4294901760
    %672 = vmatpush2.msra.mxu0 %v671
    %673 = vmatprep.subr.mxu0 0.0
    %v674 = vand.u32 %v73, 4294901760
    %675 = vmatpush2.msra.mxu0 %v674
    %676 = vmatprep.subr.mxu0 0.0
    %v677 = vand.u32 %v72, 4294901760
    %678 = vmatpush2.msra.mxu0 %v677
    %679 = vmatprep.subr.mxu0 0.0
    %v680 = vand.u32 %v71, 4294901760
    %681 = vmatpush2.msra.mxu0 %v680
    %682 = vmatprep.subr.mxu0 0.0
    %v683 = vand.u32 %v70, 4294901760
    %684 = vmatpush2.msra.mxu0 %v683
    %685 = vmatprep.subr.mxu0 0.0
    %v686 = vand.u32 %v69, 4294901760
    %687 = vmatpush2.msra.mxu0 %v686
    %688 = vmatprep.subr.mxu0 0.0
    %v689 = vand.u32 %v68, 4294901760
    %690 = vmatpush2.msra.mxu0 %v689
    %691 = vmatprep.subr.mxu0 0.0
    %v692 = vand.u32 %v67, 4294901760
    %693 = vmatpush2.msra.mxu0 %v692
    %v694 = vand.u32 %v108, 4294901760
    %v695 = vsub.f32 %v108, %v694
    %v696 = vand.u32 %v695, 4294901760
    %697 = vmatprep.mubr.f32.mxu0 %v696
    %v698 = vand.u32 %v104, 4294901760
    %v699 = vsub.f32 %v104, %v698
    %v700 = vand.u32 %v699, 4294901760
    %701 = vmatmul.mubr.f32.gmra.mxu0 %v700
    %v702 = vpop.f32.mrf.mxu0
    %v703 = vadd.f32 %v595, %v702
    %v704 = vpop.f32.mrf.mxu0
    %705 = vdwg.mxu0
    %706 = vmatprep.subr.mxu0 0.0
    %v707 = vand.u32 %v66, 4294901760
    %v708 = vsub.f32 %v66, %v707
    %v709 = vand.u32 %v708, 4294901760
    %710 = vmatpush1.msra.mxu0 %v709
    %711 = vmatprep.subr.mxu0 0.0
    %v712 = vand.u32 %v65, 4294901760
    %v713 = vsub.f32 %v65, %v712
    %v714 = vand.u32 %v713, 4294901760
    %715 = vmatpush1.msra.mxu0 %v714
    %716 = vmatprep.subr.mxu0 0.0
    %v717 = vand.u32 %v64, 4294901760
    %v718 = vsub.f32 %v64, %v717
    %v719 = vand.u32 %v718, 4294901760
    %720 = vmatpush1.msra.mxu0 %v719
    %721 = vmatprep.subr.mxu0 0.0
    %v722 = vand.u32 %v63, 4294901760
    %v723 = vsub.f32 %v63, %v722
    %v724 = vand.u32 %v723, 4294901760
    %725 = vmatpush1.msra.mxu0 %v724
    %726 = vmatprep.subr.mxu0 0.0
    %v727 = vand.u32 %v62, 4294901760
    %v728 = vsub.f32 %v62, %v727
    %v729 = vand.u32 %v728, 4294901760
    %730 = vmatpush1.msra.mxu0 %v729
    %731 = vmatprep.subr.mxu0 0.0
    %v732 = vand.u32 %v61, 4294901760
    %v733 = vsub.f32 %v61, %v732
    %v734 = vand.u32 %v733, 4294901760
    %735 = vmatpush1.msra.mxu0 %v734
    %736 = vmatprep.subr.mxu0 0.0
    %v737 = vand.u32 %v60, 4294901760
    %v738 = vsub.f32 %v60, %v737
    %v739 = vand.u32 %v738, 4294901760
    %740 = vmatpush1.msra.mxu0 %v739
    %741 = vmatprep.subr.mxu0 0.0
    %v742 = vand.u32 %v59, 4294901760
    %v743 = vsub.f32 %v59, %v742
    %v744 = vand.u32 %v743, 4294901760
    %745 = vmatpush1.msra.mxu0 %v744
    %746 = vmatprep.subr.mxu0 0.0
    %v747 = vand.u32 %v58, 4294901760
    %v748 = vsub.f32 %v58, %v747
    %v749 = vand.u32 %v748, 4294901760
    %750 = vmatpush1.msra.mxu0 %v749
    %751 = vmatprep.subr.mxu0 0.0
    %v752 = vand.u32 %v57, 4294901760
    %v753 = vsub.f32 %v57, %v752
    %v754 = vand.u32 %v753, 4294901760
    %755 = vmatpush1.msra.mxu0 %v754
    %756 = vmatprep.subr.mxu0 0.0
    %v757 = vand.u32 %v56, 4294901760
    %v758 = vsub.f32 %v56, %v757
    %v759 = vand.u32 %v758, 4294901760
    %760 = vmatpush1.msra.mxu0 %v759
    %761 = vmatprep.subr.mxu0 0.0
    %v762 = vand.u32 %v55, 4294901760
    %v763 = vsub.f32 %v55, %v762
    %v764 = vand.u32 %v763, 4294901760
    %765 = vmatpush1.msra.mxu0 %v764
    %766 = vmatprep.subr.mxu0 0.0
    %v767 = vand.u32 %v54, 4294901760
    %v768 = vsub.f32 %v54, %v767
    %v769 = vand.u32 %v768, 4294901760
    %770 = vmatpush1.msra.mxu0 %v769
    %771 = vmatprep.subr.mxu0 0.0
    %v772 = vand.u32 %v53, 4294901760
    %v773 = vsub.f32 %v53, %v772
    %v774 = vand.u32 %v773, 4294901760
    %775 = vmatpush1.msra.mxu0 %v774
    %776 = vmatprep.subr.mxu0 0.0
    %v777 = vand.u32 %v52, 4294901760
    %v778 = vsub.f32 %v52, %v777
    %v779 = vand.u32 %v778, 4294901760
    %780 = vmatpush1.msra.mxu0 %v779
    %781 = vmatprep.subr.mxu0 0.0
    %v782 = vand.u32 %v51, 4294901760
    %v783 = vsub.f32 %v51, %v782
    %v784 = vand.u32 %v783, 4294901760
    %785 = vmatpush1.msra.mxu0 %v784
    %786 = vmatprep.subr.mxu0 0.0
    %v787 = vand.u32 %v82, 4294901760
    %v788 = vsub.f32 %v82, %v787
    %v789 = vand.u32 %v788, 4294901760
    %790 = vmatpush2.msra.mxu0 %v789
    %791 = vmatprep.subr.mxu0 0.0
    %v792 = vand.u32 %v81, 4294901760
    %v793 = vsub.f32 %v81, %v792
    %v794 = vand.u32 %v793, 4294901760
    %795 = vmatpush2.msra.mxu0 %v794
    %796 = vmatprep.subr.mxu0 0.0
    %v797 = vand.u32 %v80, 4294901760
    %v798 = vsub.f32 %v80, %v797
    %v799 = vand.u32 %v798, 4294901760
    %800 = vmatpush2.msra.mxu0 %v799
    %801 = vmatprep.subr.mxu0 0.0
    %v802 = vand.u32 %v79, 4294901760
    %v803 = vsub.f32 %v79, %v802
    %v804 = vand.u32 %v803, 4294901760
    %805 = vmatpush2.msra.mxu0 %v804
    %806 = vmatprep.subr.mxu0 0.0
    %v807 = vand.u32 %v78, 4294901760
    %v808 = vsub.f32 %v78, %v807
    %v809 = vand.u32 %v808, 4294901760
    %810 = vmatpush2.msra.mxu0 %v809
    %811 = vmatprep.subr.mxu0 0.0
    %v812 = vand.u32 %v77, 4294901760
    %v813 = vsub.f32 %v77, %v812
    %v814 = vand.u32 %v813, 4294901760
    %815 = vmatpush2.msra.mxu0 %v814
    %816 = vmatprep.subr.mxu0 0.0
    %v817 = vand.u32 %v76, 4294901760
    %v818 = vsub.f32 %v76, %v817
    %v819 = vand.u32 %v818, 4294901760
    %820 = vmatpush2.msra.mxu0 %v819
    %821 = vmatprep.subr.mxu0 0.0
    %v822 = vand.u32 %v75, 4294901760
    %v823 = vsub.f32 %v75, %v822
    %v824 = vand.u32 %v823, 4294901760
    %825 = vmatpush2.msra.mxu0 %v824
    %826 = vmatprep.subr.mxu0 0.0
    %v827 = vand.u32 %v74, 4294901760
    %v828 = vsub.f32 %v74, %v827
    %v829 = vand.u32 %v828, 4294901760
    %830 = vmatpush2.msra.mxu0 %v829
    %831 = vmatprep.subr.mxu0 0.0
    %v832 = vand.u32 %v73, 4294901760
    %v833 = vsub.f32 %v73, %v832
    %v834 = vand.u32 %v833, 4294901760
    %835 = vmatpush2.msra.mxu0 %v834
    %836 = vmatprep.subr.mxu0 0.0
    %v837 = vand.u32 %v72, 4294901760
    %v838 = vsub.f32 %v72, %v837
    %v839 = vand.u32 %v838, 4294901760
    %840 = vmatpush2.msra.mxu0 %v839
    %841 = vmatprep.subr.mxu0 0.0
    %v842 = vand.u32 %v71, 4294901760
    %v843 = vsub.f32 %v71, %v842
    %v844 = vand.u32 %v843, 4294901760
    %845 = vmatpush2.msra.mxu0 %v844
    %846 = vmatprep.subr.mxu0 0.0
    %v847 = vand.u32 %v70, 4294901760
    %v848 = vsub.f32 %v70, %v847
    %v849 = vand.u32 %v848, 4294901760
    %850 = vmatpush2.msra.mxu0 %v849
    %851 = vmatprep.subr.mxu0 0.0
    %v852 = vand.u32 %v69, 4294901760
    %v853 = vsub.f32 %v69, %v852
    %v854 = vand.u32 %v853, 4294901760
    %855 = vmatpush2.msra.mxu0 %v854
    %856 = vmatprep.subr.mxu0 0.0
    %v857 = vand.u32 %v68, 4294901760
    %v858 = vsub.f32 %v68, %v857
    %v859 = vand.u32 %v858, 4294901760
    %860 = vmatpush2.msra.mxu0 %v859
    %861 = vmatprep.subr.mxu0 0.0
    %v862 = vand.u32 %v67, 4294901760
    %v863 = vsub.f32 %v67, %v862
    %v864 = vand.u32 %v863, 4294901760
    %865 = vmatpush2.msra.mxu0 %v864
    %v866 = vand.u32 %v108, 4294901760
    %867 = vmatprep.mubr.f32.mxu0 %v866
    %v868 = vand.u32 %v104, 4294901760
    %869 = vmatmul.mubr.f32.gmra.mxu0 %v868
    %v870 = vpop.f32.mrf.mxu0
    %v871 = vadd.f32 %v703, %v870
    %v872 = vpop.f32.mrf.mxu0
    %873 = vdwg.mxu0
    %874 = vmatprep.subr.mxu0 0.0
    %v875 = vand.u32 %v66, 4294901760
    %876 = vmatpush1.msra.mxu0 %v875
    %877 = vmatprep.subr.mxu0 0.0
    %v878 = vand.u32 %v65, 4294901760
    %879 = vmatpush1.msra.mxu0 %v878
    %880 = vmatprep.subr.mxu0 0.0
    %v881 = vand.u32 %v64, 4294901760
    %882 = vmatpush1.msra.mxu0 %v881
    %883 = vmatprep.subr.mxu0 0.0
    %v884 = vand.u32 %v63, 4294901760
    %885 = vmatpush1.msra.mxu0 %v884
    %886 = vmatprep.subr.mxu0 0.0
    %v887 = vand.u32 %v62, 4294901760
    %888 = vmatpush1.msra.mxu0 %v887
    %889 = vmatprep.subr.mxu0 0.0
    %v890 = vand.u32 %v61, 4294901760
    %891 = vmatpush1.msra.mxu0 %v890
    %892 = vmatprep.subr.mxu0 0.0
    %v893 = vand.u32 %v60, 4294901760
    %894 = vmatpush1.msra.mxu0 %v893
    %895 = vmatprep.subr.mxu0 0.0
    %v896 = vand.u32 %v59, 4294901760
    %897 = vmatpush1.msra.mxu0 %v896
    %898 = vmatprep.subr.mxu0 0.0
    %v899 = vand.u32 %v58, 4294901760
    %900 = vmatpush1.msra.mxu0 %v899
    %901 = vmatprep.subr.mxu0 0.0
    %v902 = vand.u32 %v57, 4294901760
    %903 = vmatpush1.msra.mxu0 %v902
    %904 = vmatprep.subr.mxu0 0.0
    %v905 = vand.u32 %v56, 4294901760
    %906 = vmatpush1.msra.mxu0 %v905
    %907 = vmatprep.subr.mxu0 0.0
    %v908 = vand.u32 %v55, 4294901760
    %909 = vmatpush1.msra.mxu0 %v908
    %910 = vmatprep.subr.mxu0 0.0
    %v911 = vand.u32 %v54, 4294901760
    %912 = vmatpush1.msra.mxu0 %v911
    %913 = vmatprep.subr.mxu0 0.0
    %v914 = vand.u32 %v53, 4294901760
    %915 = vmatpush1.msra.mxu0 %v914
    %916 = vmatprep.subr.mxu0 0.0
    %v917 = vand.u32 %v52, 4294901760
    %918 = vmatpush1.msra.mxu0 %v917
    %919 = vmatprep.subr.mxu0 0.0
    %v920 = vand.u32 %v51, 4294901760
    %921 = vmatpush1.msra.mxu0 %v920
    %922 = vmatprep.subr.mxu0 0.0
    %v923 = vand.u32 %v82, 4294901760
    %924 = vmatpush2.msra.mxu0 %v923
    %925 = vmatprep.subr.mxu0 0.0
    %v926 = vand.u32 %v81, 4294901760
    %927 = vmatpush2.msra.mxu0 %v926
    %928 = vmatprep.subr.mxu0 0.0
    %v929 = vand.u32 %v80, 4294901760
    %930 = vmatpush2.msra.mxu0 %v929
    %931 = vmatprep.subr.mxu0 0.0
    %v932 = vand.u32 %v79, 4294901760
    %933 = vmatpush2.msra.mxu0 %v932
    %934 = vmatprep.subr.mxu0 0.0
    %v935 = vand.u32 %v78, 4294901760
    %936 = vmatpush2.msra.mxu0 %v935
    %937 = vmatprep.subr.mxu0 0.0
    %v938 = vand.u32 %v77, 4294901760
    %939 = vmatpush2.msra.mxu0 %v938
    %940 = vmatprep.subr.mxu0 0.0
    %v941 = vand.u32 %v76, 4294901760
    %942 = vmatpush2.msra.mxu0 %v941
    %943 = vmatprep.subr.mxu0 0.0
    %v944 = vand.u32 %v75, 4294901760
    %945 = vmatpush2.msra.mxu0 %v944
    %946 = vmatprep.subr.mxu0 0.0
    %v947 = vand.u32 %v74, 4294901760
    %948 = vmatpush2.msra.mxu0 %v947
    %949 = vmatprep.subr.mxu0 0.0
    %v950 = vand.u32 %v73, 4294901760
    %951 = vmatpush2.msra.mxu0 %v950
    %952 = vmatprep.subr.mxu0 0.0
    %v953 = vand.u32 %v72, 4294901760
    %954 = vmatpush2.msra.mxu0 %v953
    %955 = vmatprep.subr.mxu0 0.0
    %v956 = vand.u32 %v71, 4294901760
    %957 = vmatpush2.msra.mxu0 %v956
    %958 = vmatprep.subr.mxu0 0.0
    %v959 = vand.u32 %v70, 4294901760
    %960 = vmatpush2.msra.mxu0 %v959
    %961 = vmatprep.subr.mxu0 0.0
    %v962 = vand.u32 %v69, 4294901760
    %963 = vmatpush2.msra.mxu0 %v962
    %964 = vmatprep.subr.mxu0 0.0
    %v965 = vand.u32 %v68, 4294901760
    %966 = vmatpush2.msra.mxu0 %v965
    %967 = vmatprep.subr.mxu0 0.0
    %v968 = vand.u32 %v67, 4294901760
    %969 = vmatpush2.msra.mxu0 %v968
    %v970 = vand.u32 %v108, 4294901760
    %971 = vmatprep.mubr.f32.mxu0 %v970
    %v972 = vand.u32 %v104, 4294901760
    %973 = vmatmul.mubr.f32.gmra.mxu0 %v972
    %v974 = vpop.f32.mrf.mxu0
    %v975 = vadd.f32 %v871, %v974
    %v976 = vpop.f32.mrf.mxu0
    %977 = vdwg.mxu0
    %978 = vmatprep.subr.mxu0 0.0
    %v979 = vand.u32 %v98, 4294901760
    %980 = vmatpush1.msra.mxu0 %v979
    %981 = vmatprep.subr.mxu0 0.0
    %v982 = vand.u32 %v97, 4294901760
    %983 = vmatpush1.msra.mxu0 %v982
    %984 = vmatprep.subr.mxu0 0.0
    %v985 = vand.u32 %v96, 4294901760
    %986 = vmatpush1.msra.mxu0 %v985
    %987 = vmatprep.subr.mxu0 0.0
    %v988 = vand.u32 %v95, 4294901760
    %989 = vmatpush1.msra.mxu0 %v988
    %990 = vmatprep.subr.mxu0 0.0
    %v991 = vand.u32 %v94, 4294901760
    %992 = vmatpush1.msra.mxu0 %v991
    %993 = vmatprep.subr.mxu0 0.0
    %v994 = vand.u32 %v93, 4294901760
    %995 = vmatpush1.msra.mxu0 %v994
    %996 = vmatprep.subr.mxu0 0.0
    %v997 = vand.u32 %v92, 4294901760
    %998 = vmatpush1.msra.mxu0 %v997
    %999 = vmatprep.subr.mxu0 0.0
    %v1000 = vand.u32 %v91, 4294901760
    %1001 = vmatpush1.msra.mxu0 %v1000
    %1002 = vmatprep.subr.mxu0 0.0
    %v1003 = vand.u32 %v90, 4294901760
    %1004 = vmatpush1.msra.mxu0 %v1003
    %1005 = vmatprep.subr.mxu0 0.0
    %v1006 = vand.u32 %v89, 4294901760
    %1007 = vmatpush1.msra.mxu0 %v1006
    %1008 = vmatprep.subr.mxu0 0.0
    %v1009 = vand.u32 %v88, 4294901760
    %1010 = vmatpush1.msra.mxu0 %v1009
    %1011 = vmatprep.subr.mxu0 0.0
    %v1012 = vand.u32 %v87, 4294901760
    %1013 = vmatpush1.msra.mxu0 %v1012
    %1014 = vmatprep.subr.mxu0 0.0
    %v1015 = vand.u32 %v86, 4294901760
    %1016 = vmatpush1.msra.mxu0 %v1015
    %1017 = vmatprep.subr.mxu0 0.0
    %v1018 = vand.u32 %v85, 4294901760
    %1019 = vmatpush1.msra.mxu0 %v1018
    %1020 = vmatprep.subr.mxu0 0.0
    %v1021 = vand.u32 %v84, 4294901760
    %1022 = vmatpush1.msra.mxu0 %v1021
    %1023 = vmatprep.subr.mxu0 0.0
    %v1024 = vand.u32 %v83, 4294901760
    %1025 = vmatpush1.msra.mxu0 %v1024
    %1026 = vmatprep.subr.mxu0 0.0
    %1027 = vmatpush2.msra.mxu0 0.0
    %1028 = vmatprep.subr.mxu0 0.0
    %1029 = vmatpush2.msra.mxu0 0.0
    %1030 = vmatprep.subr.mxu0 0.0
    %1031 = vmatpush2.msra.mxu0 0.0
    %1032 = vmatprep.subr.mxu0 0.0
    %1033 = vmatpush2.msra.mxu0 0.0
    %1034 = vmatprep.subr.mxu0 0.0
    %1035 = vmatpush2.msra.mxu0 0.0
    %1036 = vmatprep.subr.mxu0 0.0
    %1037 = vmatpush2.msra.mxu0 0.0
    %1038 = vmatprep.subr.mxu0 0.0
    %1039 = vmatpush2.msra.mxu0 0.0
    %1040 = vmatprep.subr.mxu0 0.0
    %1041 = vmatpush2.msra.mxu0 0.0
    %1042 = vmatprep.subr.mxu0 0.0
    %1043 = vmatpush2.msra.mxu0 0.0
    %1044 = vmatprep.subr.mxu0 0.0
    %1045 = vmatpush2.msra.mxu0 0.0
    %1046 = vmatprep.subr.mxu0 0.0
    %1047 = vmatpush2.msra.mxu0 0.0
    %1048 = vmatprep.subr.mxu0 0.0
    %1049 = vmatpush2.msra.mxu0 0.0
    %1050 = vmatprep.subr.mxu0 0.0
    %1051 = vmatpush2.msra.mxu0 0.0
    %1052 = vmatprep.subr.mxu0 0.0
    %1053 = vmatpush2.msra.mxu0 0.0
    %1054 = vmatprep.subr.mxu0 0.0
    %1055 = vmatpush2.msra.mxu0 0.0
    %1056 = vmatprep.subr.mxu0 0.0
    %1057 = vmatpush2.msra.mxu0 0.0
    %1058 = vmatprep.mubr.f32.mxu0 0.0
    %v1059 = vand.u32 %v112, 4294901760
    %v1060 = vsub.f32 %v112, %v1059
    %v1061 = vand.u32 %v1060, 4294901760
    %v1062 = vsub.f32 %v1060, %v1061
    %v1063 = vand.u32 %v1062, 4294901760
    %1064 = vmatmul.mubr.f32.gmra.mxu0 %v1063
    %v1065 = vpop.f32.mrf.mxu0
    %v1066 = vadd.f32 %v975, %v1065
    %v1067 = vpop.f32.mrf.mxu0
    %1068 = vdwg.mxu0
    %1069 = vmatprep.subr.mxu0 0.0
    %v1070 = vand.u32 %v98, 4294901760
    %v1071 = vsub.f32 %v98, %v1070
    %v1072 = vand.u32 %v1071, 4294901760
    %v1073 = vsub.f32 %v1071, %v1072
    %v1074 = vand.u32 %v1073, 4294901760
    %1075 = vmatpush1.msra.mxu0 %v1074
    %1076 = vmatprep.subr.mxu0 0.0
    %v1077 = vand.u32 %v97, 4294901760
    %v1078 = vsub.f32 %v97, %v1077
    %v1079 = vand.u32 %v1078, 4294901760
    %v1080 = vsub.f32 %v1078, %v1079
    %v1081 = vand.u32 %v1080, 4294901760
    %1082 = vmatpush1.msra.mxu0 %v1081
    %1083 = vmatprep.subr.mxu0 0.0
    %v1084 = vand.u32 %v96, 4294901760
    %v1085 = vsub.f32 %v96, %v1084
    %v1086 = vand.u32 %v1085, 4294901760
    %v1087 = vsub.f32 %v1085, %v1086
    %v1088 = vand.u32 %v1087, 4294901760
    %1089 = vmatpush1.msra.mxu0 %v1088
    %1090 = vmatprep.subr.mxu0 0.0
    %v1091 = vand.u32 %v95, 4294901760
    %v1092 = vsub.f32 %v95, %v1091
    %v1093 = vand.u32 %v1092, 4294901760
    %v1094 = vsub.f32 %v1092, %v1093
    %v1095 = vand.u32 %v1094, 4294901760
    %1096 = vmatpush1.msra.mxu0 %v1095
    %1097 = vmatprep.subr.mxu0 0.0
    %v1098 = vand.u32 %v94, 4294901760
    %v1099 = vsub.f32 %v94, %v1098
    %v1100 = vand.u32 %v1099, 4294901760
    %v1101 = vsub.f32 %v1099, %v1100
    %v1102 = vand.u32 %v1101, 4294901760
    %1103 = vmatpush1.msra.mxu0 %v1102
    %1104 = vmatprep.subr.mxu0 0.0
    %v1105 = vand.u32 %v93, 4294901760
    %v1106 = vsub.f32 %v93, %v1105
    %v1107 = vand.u32 %v1106, 4294901760
    %v1108 = vsub.f32 %v1106, %v1107
    %v1109 = vand.u32 %v1108, 4294901760
    %1110 = vmatpush1.msra.mxu0 %v1109
    %1111 = vmatprep.subr.mxu0 0.0
    %v1112 = vand.u32 %v92, 4294901760
    %v1113 = vsub.f32 %v92, %v1112
    %v1114 = vand.u32 %v1113, 4294901760
    %v1115 = vsub.f32 %v1113, %v1114
    %v1116 = vand.u32 %v1115, 4294901760
    %1117 = vmatpush1.msra.mxu0 %v1116
    %1118 = vmatprep.subr.mxu0 0.0
    %v1119 = vand.u32 %v91, 4294901760
    %v1120 = vsub.f32 %v91, %v1119
    %v1121 = vand.u32 %v1120, 4294901760
    %v1122 = vsub.f32 %v1120, %v1121
    %v1123 = vand.u32 %v1122, 4294901760
    %1124 = vmatpush1.msra.mxu0 %v1123
    %1125 = vmatprep.subr.mxu0 0.0
    %v1126 = vand.u32 %v90, 4294901760
    %v1127 = vsub.f32 %v90, %v1126
    %v1128 = vand.u32 %v1127, 4294901760
    %v1129 = vsub.f32 %v1127, %v1128
    %v1130 = vand.u32 %v1129, 4294901760
    %1131 = vmatpush1.msra.mxu0 %v1130
    %1132 = vmatprep.subr.mxu0 0.0
    %v1133 = vand.u32 %v89, 4294901760
    %v1134 = vsub.f32 %v89, %v1133
    %v1135 = vand.u32 %v1134, 4294901760
    %v1136 = vsub.f32 %v1134, %v1135
    %v1137 = vand.u32 %v1136, 4294901760
    %1138 = vmatpush1.msra.mxu0 %v1137
    %1139 = vmatprep.subr.mxu0 0.0
    %v1140 = vand.u32 %v88, 4294901760
    %v1141 = vsub.f32 %v88, %v1140
    %v1142 = vand.u32 %v1141, 4294901760
    %v1143 = vsub.f32 %v1141, %v1142
    %v1144 = vand.u32 %v1143, 4294901760
    %1145 = vmatpush1.msra.mxu0 %v1144
    %1146 = vmatprep.subr.mxu0 0.0
    %v1147 = vand.u32 %v87, 4294901760
    %v1148 = vsub.f32 %v87, %v1147
    %v1149 = vand.u32 %v1148, 4294901760
    %v1150 = vsub.f32 %v1148, %v1149
    %v1151 = vand.u32 %v1150, 4294901760
    %1152 = vmatpush1.msra.mxu0 %v1151
    %1153 = vmatprep.subr.mxu0 0.0
    %v1154 = vand.u32 %v86, 4294901760
    %v1155 = vsub.f32 %v86, %v1154
    %v1156 = vand.u32 %v1155, 4294901760
    %v1157 = vsub.f32 %v1155, %v1156
    %v1158 = vand.u32 %v1157, 4294901760
    %1159 = vmatpush1.msra.mxu0 %v1158
    %1160 = vmatprep.subr.mxu0 0.0
    %v1161 = vand.u32 %v85, 4294901760
    %v1162 = vsub.f32 %v85, %v1161
    %v1163 = vand.u32 %v1162, 4294901760
    %v1164 = vsub.f32 %v1162, %v1163
    %v1165 = vand.u32 %v1164, 4294901760
    %1166 = vmatpush1.msra.mxu0 %v1165
    %1167 = vmatprep.subr.mxu0 0.0
    %v1168 = vand.u32 %v84, 4294901760
    %v1169 = vsub.f32 %v84, %v1168
    %v1170 = vand.u32 %v1169, 4294901760
    %v1171 = vsub.f32 %v1169, %v1170
    %v1172 = vand.u32 %v1171, 4294901760
    %1173 = vmatpush1.msra.mxu0 %v1172
    %1174 = vmatprep.subr.mxu0 0.0
    %v1175 = vand.u32 %v83, 4294901760
    %v1176 = vsub.f32 %v83, %v1175
    %v1177 = vand.u32 %v1176, 4294901760
    %v1178 = vsub.f32 %v1176, %v1177
    %v1179 = vand.u32 %v1178, 4294901760
    %1180 = vmatpush1.msra.mxu0 %v1179
    %1181 = vmatprep.subr.mxu0 0.0
    %1182 = vmatpush2.msra.mxu0 0.0
    %1183 = vmatprep.subr.mxu0 0.0
    %1184 = vmatpush2.msra.mxu0 0.0
    %1185 = vmatprep.subr.mxu0 0.0
    %1186 = vmatpush2.msra.mxu0 0.0
    %1187 = vmatprep.subr.mxu0 0.0
    %1188 = vmatpush2.msra.mxu0 0.0
    %1189 = vmatprep.subr.mxu0 0.0
    %1190 = vmatpush2.msra.mxu0 0.0
    %1191 = vmatprep.subr.mxu0 0.0
    %1192 = vmatpush2.msra.mxu0 0.0
    %1193 = vmatprep.subr.mxu0 0.0
    %1194 = vmatpush2.msra.mxu0 0.0
    %1195 = vmatprep.subr.mxu0 0.0
    %1196 = vmatpush2.msra.mxu0 0.0
    %1197 = vmatprep.subr.mxu0 0.0
    %1198 = vmatpush2.msra.mxu0 0.0
    %1199 = vmatprep.subr.mxu0 0.0
    %1200 = vmatpush2.msra.mxu0 0.0
    %1201 = vmatprep.subr.mxu0 0.0
    %1202 = vmatpush2.msra.mxu0 0.0
    %1203 = vmatprep.subr.mxu0 0.0
    %1204 = vmatpush2.msra.mxu0 0.0
    %1205 = vmatprep.subr.mxu0 0.0
    %1206 = vmatpush2.msra.mxu0 0.0
    %1207 = vmatprep.subr.mxu0 0.0
    %1208 = vmatpush2.msra.mxu0 0.0
    %1209 = vmatprep.subr.mxu0 0.0
    %1210 = vmatpush2.msra.mxu0 0.0
    %1211 = vmatprep.subr.mxu0 0.0
    %1212 = vmatpush2.msra.mxu0 0.0
    %1213 = vmatprep.mubr.f32.mxu0 0.0
    %v1214 = vand.u32 %v112, 4294901760
    %1215 = vmatmul.mubr.f32.gmra.mxu0 %v1214
    %v1216 = vpop.f32.mrf.mxu0
    %v1217 = vadd.f32 %v1066, %v1216
    %v1218 = vpop.f32.mrf.mxu0
    %1219 = vdwg.mxu0
    %1220 = vmatprep.subr.mxu0 0.0
    %v1221 = vand.u32 %v98, 4294901760
    %v1222 = vsub.f32 %v98, %v1221
    %1223 = vmatpush1.msra.mxu0 %v1222
    %1224 = vmatprep.subr.mxu0 0.0
    %v1225 = vand.u32 %v97, 4294901760
    %v1226 = vsub.f32 %v97, %v1225
    %1227 = vmatpush1.msra.mxu0 %v1226
    %1228 = vmatprep.subr.mxu0 0.0
    %v1229 = vand.u32 %v96, 4294901760
    %v1230 = vsub.f32 %v96, %v1229
    %1231 = vmatpush1.msra.mxu0 %v1230
    %1232 = vmatprep.subr.mxu0 0.0
    %v1233 = vand.u32 %v95, 4294901760
    %v1234 = vsub.f32 %v95, %v1233
    %1235 = vmatpush1.msra.mxu0 %v1234
    %1236 = vmatprep.subr.mxu0 0.0
    %v1237 = vand.u32 %v94, 4294901760
    %v1238 = vsub.f32 %v94, %v1237
    %1239 = vmatpush1.msra.mxu0 %v1238
    %1240 = vmatprep.subr.mxu0 0.0
    %v1241 = vand.u32 %v93, 4294901760
    %v1242 = vsub.f32 %v93, %v1241
    %1243 = vmatpush1.msra.mxu0 %v1242
    %1244 = vmatprep.subr.mxu0 0.0
    %v1245 = vand.u32 %v92, 4294901760
    %v1246 = vsub.f32 %v92, %v1245
    %1247 = vmatpush1.msra.mxu0 %v1246
    %1248 = vmatprep.subr.mxu0 0.0
    %v1249 = vand.u32 %v91, 4294901760
    %v1250 = vsub.f32 %v91, %v1249
    %1251 = vmatpush1.msra.mxu0 %v1250
    %1252 = vmatprep.subr.mxu0 0.0
    %v1253 = vand.u32 %v90, 4294901760
    %v1254 = vsub.f32 %v90, %v1253
    %1255 = vmatpush1.msra.mxu0 %v1254
    %1256 = vmatprep.subr.mxu0 0.0
    %v1257 = vand.u32 %v89, 4294901760
    %v1258 = vsub.f32 %v89, %v1257
    %1259 = vmatpush1.msra.mxu0 %v1258
    %1260 = vmatprep.subr.mxu0 0.0
    %v1261 = vand.u32 %v88, 4294901760
    %v1262 = vsub.f32 %v88, %v1261
    %1263 = vmatpush1.msra.mxu0 %v1262
    %1264 = vmatprep.subr.mxu0 0.0
    %v1265 = vand.u32 %v87, 4294901760
    %v1266 = vsub.f32 %v87, %v1265
    %1267 = vmatpush1.msra.mxu0 %v1266
    %1268 = vmatprep.subr.mxu0 0.0
    %v1269 = vand.u32 %v86, 4294901760
    %v1270 = vsub.f32 %v86, %v1269
    %1271 = vmatpush1.msra.mxu0 %v1270
    %1272 = vmatprep.subr.mxu0 0.0
    %v1273 = vand.u32 %v85, 4294901760
    %v1274 = vsub.f32 %v85, %v1273
    %1275 = vmatpush1.msra.mxu0 %v1274
    %1276 = vmatprep.subr.mxu0 0.0
    %v1277 = vand.u32 %v84, 4294901760
    %v1278 = vsub.f32 %v84, %v1277
    %1279 = vmatpush1.msra.mxu0 %v1278
    %1280 = vmatprep.subr.mxu0 0.0
    %v1281 = vand.u32 %v83, 4294901760
    %v1282 = vsub.f32 %v83, %v1281
    %1283 = vmatpush1.msra.mxu0 %v1282
    %1284 = vmatprep.subr.mxu0 0.0
    %1285 = vmatpush2.msra.mxu0 0.0
    %1286 = vmatprep.subr.mxu0 0.0
    %1287 = vmatpush2.msra.mxu0 0.0
    %1288 = vmatprep.subr.mxu0 0.0
    %1289 = vmatpush2.msra.mxu0 0.0
    %1290 = vmatprep.subr.mxu0 0.0
    %1291 = vmatpush2.msra.mxu0 0.0
    %1292 = vmatprep.subr.mxu0 0.0
    %1293 = vmatpush2.msra.mxu0 0.0
    %1294 = vmatprep.subr.mxu0 0.0
    %1295 = vmatpush2.msra.mxu0 0.0
    %1296 = vmatprep.subr.mxu0 0.0
    %1297 = vmatpush2.msra.mxu0 0.0
    %1298 = vmatprep.subr.mxu0 0.0
    %1299 = vmatpush2.msra.mxu0 0.0
    %1300 = vmatprep.subr.mxu0 0.0
    %1301 = vmatpush2.msra.mxu0 0.0
    %1302 = vmatprep.subr.mxu0 0.0
    %1303 = vmatpush2.msra.mxu0 0.0
    %1304 = vmatprep.subr.mxu0 0.0
    %1305 = vmatpush2.msra.mxu0 0.0
    %1306 = vmatprep.subr.mxu0 0.0
    %1307 = vmatpush2.msra.mxu0 0.0
    %1308 = vmatprep.subr.mxu0 0.0
    %1309 = vmatpush2.msra.mxu0 0.0
    %1310 = vmatprep.subr.mxu0 0.0
    %1311 = vmatpush2.msra.mxu0 0.0
    %1312 = vmatprep.subr.mxu0 0.0
    %1313 = vmatpush2.msra.mxu0 0.0
    %1314 = vmatprep.subr.mxu0 0.0
    %1315 = vmatpush2.msra.mxu0 0.0
    %1316 = vmatprep.mubr.f32.mxu0 0.0
    %v1317 = vand.u32 %v112, 4294901760
    %v1318 = vsub.f32 %v112, %v1317
    %1319 = vmatmul.mubr.f32.gmra.mxu0 %v1318
    %v1320 = vpop.f32.mrf.mxu0
    %v1321 = vadd.f32 %v1217, %v1320
    %v1322 = vpop.f32.mrf.mxu0
    %1323 = vdwg.mxu0
    %1324 = vmatprep.subr.mxu0 0.0
    %v1325 = vand.u32 %v98, 4294901760
    %1326 = vmatpush1.msra.mxu0 %v1325
    %1327 = vmatprep.subr.mxu0 0.0
    %v1328 = vand.u32 %v97, 4294901760
    %1329 = vmatpush1.msra.mxu0 %v1328
    %1330 = vmatprep.subr.mxu0 0.0
    %v1331 = vand.u32 %v96, 4294901760
    %1332 = vmatpush1.msra.mxu0 %v1331
    %1333 = vmatprep.subr.mxu0 0.0
    %v1334 = vand.u32 %v95, 4294901760
    %1335 = vmatpush1.msra.mxu0 %v1334
    %1336 = vmatprep.subr.mxu0 0.0
    %v1337 = vand.u32 %v94, 4294901760
    %1338 = vmatpush1.msra.mxu0 %v1337
    %1339 = vmatprep.subr.mxu0 0.0
    %v1340 = vand.u32 %v93, 4294901760
    %1341 = vmatpush1.msra.mxu0 %v1340
    %1342 = vmatprep.subr.mxu0 0.0
    %v1343 = vand.u32 %v92, 4294901760
    %1344 = vmatpush1.msra.mxu0 %v1343
    %1345 = vmatprep.subr.mxu0 0.0
    %v1346 = vand.u32 %v91, 4294901760
    %1347 = vmatpush1.msra.mxu0 %v1346
    %1348 = vmatprep.subr.mxu0 0.0
    %v1349 = vand.u32 %v90, 4294901760
    %1350 = vmatpush1.msra.mxu0 %v1349
    %1351 = vmatprep.subr.mxu0 0.0
    %v1352 = vand.u32 %v89, 4294901760
    %1353 = vmatpush1.msra.mxu0 %v1352
    %1354 = vmatprep.subr.mxu0 0.0
    %v1355 = vand.u32 %v88, 4294901760
    %1356 = vmatpush1.msra.mxu0 %v1355
    %1357 = vmatprep.subr.mxu0 0.0
    %v1358 = vand.u32 %v87, 4294901760
    %1359 = vmatpush1.msra.mxu0 %v1358
    %1360 = vmatprep.subr.mxu0 0.0
    %v1361 = vand.u32 %v86, 4294901760
    %1362 = vmatpush1.msra.mxu0 %v1361
    %1363 = vmatprep.subr.mxu0 0.0
    %v1364 = vand.u32 %v85, 4294901760
    %1365 = vmatpush1.msra.mxu0 %v1364
    %1366 = vmatprep.subr.mxu0 0.0
    %v1367 = vand.u32 %v84, 4294901760
    %1368 = vmatpush1.msra.mxu0 %v1367
    %1369 = vmatprep.subr.mxu0 0.0
    %v1370 = vand.u32 %v83, 4294901760
    %1371 = vmatpush1.msra.mxu0 %v1370
    %1372 = vmatprep.subr.mxu0 0.0
    %1373 = vmatpush2.msra.mxu0 0.0
    %1374 = vmatprep.subr.mxu0 0.0
    %1375 = vmatpush2.msra.mxu0 0.0
    %1376 = vmatprep.subr.mxu0 0.0
    %1377 = vmatpush2.msra.mxu0 0.0
    %1378 = vmatprep.subr.mxu0 0.0
    %1379 = vmatpush2.msra.mxu0 0.0
    %1380 = vmatprep.subr.mxu0 0.0
    %1381 = vmatpush2.msra.mxu0 0.0
    %1382 = vmatprep.subr.mxu0 0.0
    %1383 = vmatpush2.msra.mxu0 0.0
    %1384 = vmatprep.subr.mxu0 0.0
    %1385 = vmatpush2.msra.mxu0 0.0
    %1386 = vmatprep.subr.mxu0 0.0
    %1387 = vmatpush2.msra.mxu0 0.0
    %1388 = vmatprep.subr.mxu0 0.0
    %1389 = vmatpush2.msra.mxu0 0.0
    %1390 = vmatprep.subr.mxu0 0.0
    %1391 = vmatpush2.msra.mxu0 0.0
    %1392 = vmatprep.subr.mxu0 0.0
    %1393 = vmatpush2.msra.mxu0 0.0
    %1394 = vmatprep.subr.mxu0 0.0
    %1395 = vmatpush2.msra.mxu0 0.0
    %1396 = vmatprep.subr.mxu0 0.0
    %1397 = vmatpush2.msra.mxu0 0.0
    %1398 = vmatprep.subr.mxu0 0.0
    %1399 = vmatpush2.msra.mxu0 0.0
    %1400 = vmatprep.subr.mxu0 0.0
    %1401 = vmatpush2.msra.mxu0 0.0
    %1402 = vmatprep.subr.mxu0 0.0
    %1403 = vmatpush2.msra.mxu0 0.0
    %1404 = vmatprep.mubr.f32.mxu0 0.0
    %v1405 = vand.u32 %v112, 4294901760
    %v1406 = vsub.f32 %v112, %v1405
    %v1407 = vand.u32 %v1406, 4294901760
    %1408 = vmatmul.mubr.f32.gmra.mxu0 %v1407
    %v1409 = vpop.f32.mrf.mxu0
    %v1410 = vadd.f32 %v1321, %v1409
    %v1411 = vpop.f32.mrf.mxu0
    %1412 = vdwg.mxu0
    %1413 = vmatprep.subr.mxu0 0.0
    %v1414 = vand.u32 %v98, 4294901760
    %v1415 = vsub.f32 %v98, %v1414
    %v1416 = vand.u32 %v1415, 4294901760
    %1417 = vmatpush1.msra.mxu0 %v1416
    %1418 = vmatprep.subr.mxu0 0.0
    %v1419 = vand.u32 %v97, 4294901760
    %v1420 = vsub.f32 %v97, %v1419
    %v1421 = vand.u32 %v1420, 4294901760
    %1422 = vmatpush1.msra.mxu0 %v1421
    %1423 = vmatprep.subr.mxu0 0.0
    %v1424 = vand.u32 %v96, 4294901760
    %v1425 = vsub.f32 %v96, %v1424
    %v1426 = vand.u32 %v1425, 4294901760
    %1427 = vmatpush1.msra.mxu0 %v1426
    %1428 = vmatprep.subr.mxu0 0.0
    %v1429 = vand.u32 %v95, 4294901760
    %v1430 = vsub.f32 %v95, %v1429
    %v1431 = vand.u32 %v1430, 4294901760
    %1432 = vmatpush1.msra.mxu0 %v1431
    %1433 = vmatprep.subr.mxu0 0.0
    %v1434 = vand.u32 %v94, 4294901760
    %v1435 = vsub.f32 %v94, %v1434
    %v1436 = vand.u32 %v1435, 4294901760
    %1437 = vmatpush1.msra.mxu0 %v1436
    %1438 = vmatprep.subr.mxu0 0.0
    %v1439 = vand.u32 %v93, 4294901760
    %v1440 = vsub.f32 %v93, %v1439
    %v1441 = vand.u32 %v1440, 4294901760
    %1442 = vmatpush1.msra.mxu0 %v1441
    %1443 = vmatprep.subr.mxu0 0.0
    %v1444 = vand.u32 %v92, 4294901760
    %v1445 = vsub.f32 %v92, %v1444
    %v1446 = vand.u32 %v1445, 4294901760
    %1447 = vmatpush1.msra.mxu0 %v1446
    %1448 = vmatprep.subr.mxu0 0.0
    %v1449 = vand.u32 %v91, 4294901760
    %v1450 = vsub.f32 %v91, %v1449
    %v1451 = vand.u32 %v1450, 4294901760
    %1452 = vmatpush1.msra.mxu0 %v1451
    %1453 = vmatprep.subr.mxu0 0.0
    %v1454 = vand.u32 %v90, 4294901760
    %v1455 = vsub.f32 %v90, %v1454
    %v1456 = vand.u32 %v1455, 4294901760
    %1457 = vmatpush1.msra.mxu0 %v1456
    %1458 = vmatprep.subr.mxu0 0.0
    %v1459 = vand.u32 %v89, 4294901760
    %v1460 = vsub.f32 %v89, %v1459
    %v1461 = vand.u32 %v1460, 4294901760
    %1462 = vmatpush1.msra.mxu0 %v1461
    %1463 = vmatprep.subr.mxu0 0.0
    %v1464 = vand.u32 %v88, 4294901760
    %v1465 = vsub.f32 %v88, %v1464
    %v1466 = vand.u32 %v1465, 4294901760
    %1467 = vmatpush1.msra.mxu0 %v1466
    %1468 = vmatprep.subr.mxu0 0.0
    %v1469 = vand.u32 %v87, 4294901760
    %v1470 = vsub.f32 %v87, %v1469
    %v1471 = vand.u32 %v1470, 4294901760
    %1472 = vmatpush1.msra.mxu0 %v1471
    %1473 = vmatprep.subr.mxu0 0.0
    %v1474 = vand.u32 %v86, 4294901760
    %v1475 = vsub.f32 %v86, %v1474
    %v1476 = vand.u32 %v1475, 4294901760
    %1477 = vmatpush1.msra.mxu0 %v1476
    %1478 = vmatprep.subr.mxu0 0.0
    %v1479 = vand.u32 %v85, 4294901760
    %v1480 = vsub.f32 %v85, %v1479
    %v1481 = vand.u32 %v1480, 4294901760
    %1482 = vmatpush1.msra.mxu0 %v1481
    %1483 = vmatprep.subr.mxu0 0.0
    %v1484 = vand.u32 %v84, 4294901760
    %v1485 = vsub.f32 %v84, %v1484
    %v1486 = vand.u32 %v1485, 4294901760
    %1487 = vmatpush1.msra.mxu0 %v1486
    %1488 = vmatprep.subr.mxu0 0.0
    %v1489 = vand.u32 %v83, 4294901760
    %v1490 = vsub.f32 %v83, %v1489
    %v1491 = vand.u32 %v1490, 4294901760
    %1492 = vmatpush1.msra.mxu0 %v1491
    %1493 = vmatprep.subr.mxu0 0.0
    %1494 = vmatpush2.msra.mxu0 0.0
    %1495 = vmatprep.subr.mxu0 0.0
    %1496 = vmatpush2.msra.mxu0 0.0
    %1497 = vmatprep.subr.mxu0 0.0
    %1498 = vmatpush2.msra.mxu0 0.0
    %1499 = vmatprep.subr.mxu0 0.0
    %1500 = vmatpush2.msra.mxu0 0.0
    %1501 = vmatprep.subr.mxu0 0.0
    %1502 = vmatpush2.msra.mxu0 0.0
    %1503 = vmatprep.subr.mxu0 0.0
    %1504 = vmatpush2.msra.mxu0 0.0
    %1505 = vmatprep.subr.mxu0 0.0
    %1506 = vmatpush2.msra.mxu0 0.0
    %1507 = vmatprep.subr.mxu0 0.0
    %1508 = vmatpush2.msra.mxu0 0.0
    %1509 = vmatprep.subr.mxu0 0.0
    %1510 = vmatpush2.msra.mxu0 0.0
    %1511 = vmatprep.subr.mxu0 0.0
    %1512 = vmatpush2.msra.mxu0 0.0
    %1513 = vmatprep.subr.mxu0 0.0
    %1514 = vmatpush2.msra.mxu0 0.0
    %1515 = vmatprep.subr.mxu0 0.0
    %1516 = vmatpush2.msra.mxu0 0.0
    %1517 = vmatprep.subr.mxu0 0.0
    %1518 = vmatpush2.msra.mxu0 0.0
    %1519 = vmatprep.subr.mxu0 0.0
    %1520 = vmatpush2.msra.mxu0 0.0
    %1521 = vmatprep.subr.mxu0 0.0
    %1522 = vmatpush2.msra.mxu0 0.0
    %1523 = vmatprep.subr.mxu0 0.0
    %1524 = vmatpush2.msra.mxu0 0.0
    %1525 = vmatprep.mubr.f32.mxu0 0.0
    %v1526 = vand.u32 %v112, 4294901760
    %1527 = vmatmul.mubr.f32.gmra.mxu0 %v1526
    %v1528 = vpop.f32.mrf.mxu0
    %v1529 = vadd.f32 %v1410, %v1528
    %v1530 = vpop.f32.mrf.mxu0
    %1531 = vdwg.mxu0
    %1532 = vmatprep.subr.mxu0 0.0
    %v1533 = vand.u32 %v98, 4294901760
    %1534 = vmatpush1.msra.mxu0 %v1533
    %1535 = vmatprep.subr.mxu0 0.0
    %v1536 = vand.u32 %v97, 4294901760
    %1537 = vmatpush1.msra.mxu0 %v1536
    %1538 = vmatprep.subr.mxu0 0.0
    %v1539 = vand.u32 %v96, 4294901760
    %1540 = vmatpush1.msra.mxu0 %v1539
    %1541 = vmatprep.subr.mxu0 0.0
    %v1542 = vand.u32 %v95, 4294901760
    %1543 = vmatpush1.msra.mxu0 %v1542
    %1544 = vmatprep.subr.mxu0 0.0
    %v1545 = vand.u32 %v94, 4294901760
    %1546 = vmatpush1.msra.mxu0 %v1545
    %1547 = vmatprep.subr.mxu0 0.0
    %v1548 = vand.u32 %v93, 4294901760
    %1549 = vmatpush1.msra.mxu0 %v1548
    %1550 = vmatprep.subr.mxu0 0.0
    %v1551 = vand.u32 %v92, 4294901760
    %1552 = vmatpush1.msra.mxu0 %v1551
    %1553 = vmatprep.subr.mxu0 0.0
    %v1554 = vand.u32 %v91, 4294901760
    %1555 = vmatpush1.msra.mxu0 %v1554
    %1556 = vmatprep.subr.mxu0 0.0
    %v1557 = vand.u32 %v90, 4294901760
    %1558 = vmatpush1.msra.mxu0 %v1557
    %1559 = vmatprep.subr.mxu0 0.0
    %v1560 = vand.u32 %v89, 4294901760
    %1561 = vmatpush1.msra.mxu0 %v1560
    %1562 = vmatprep.subr.mxu0 0.0
    %v1563 = vand.u32 %v88, 4294901760
    %1564 = vmatpush1.msra.mxu0 %v1563
    %1565 = vmatprep.subr.mxu0 0.0
    %v1566 = vand.u32 %v87, 4294901760
    %1567 = vmatpush1.msra.mxu0 %v1566
    %1568 = vmatprep.subr.mxu0 0.0
    %v1569 = vand.u32 %v86, 4294901760
    %1570 = vmatpush1.msra.mxu0 %v1569
    %1571 = vmatprep.subr.mxu0 0.0
    %v1572 = vand.u32 %v85, 4294901760
    %1573 = vmatpush1.msra.mxu0 %v1572
    %1574 = vmatprep.subr.mxu0 0.0
    %v1575 = vand.u32 %v84, 4294901760
    %1576 = vmatpush1.msra.mxu0 %v1575
    %1577 = vmatprep.subr.mxu0 0.0
    %v1578 = vand.u32 %v83, 4294901760
    %1579 = vmatpush1.msra.mxu0 %v1578
    %1580 = vmatprep.subr.mxu0 0.0
    %1581 = vmatpush2.msra.mxu0 0.0
    %1582 = vmatprep.subr.mxu0 0.0
    %1583 = vmatpush2.msra.mxu0 0.0
    %1584 = vmatprep.subr.mxu0 0.0
    %1585 = vmatpush2.msra.mxu0 0.0
    %1586 = vmatprep.subr.mxu0 0.0
    %1587 = vmatpush2.msra.mxu0 0.0
    %1588 = vmatprep.subr.mxu0 0.0
    %1589 = vmatpush2.msra.mxu0 0.0
    %1590 = vmatprep.subr.mxu0 0.0
    %1591 = vmatpush2.msra.mxu0 0.0
    %1592 = vmatprep.subr.mxu0 0.0
    %1593 = vmatpush2.msra.mxu0 0.0
    %1594 = vmatprep.subr.mxu0 0.0
    %1595 = vmatpush2.msra.mxu0 0.0
    %1596 = vmatprep.subr.mxu0 0.0
    %1597 = vmatpush2.msra.mxu0 0.0
    %1598 = vmatprep.subr.mxu0 0.0
    %1599 = vmatpush2.msra.mxu0 0.0
    %1600 = vmatprep.subr.mxu0 0.0
    %1601 = vmatpush2.msra.mxu0 0.0
    %1602 = vmatprep.subr.mxu0 0.0
    %1603 = vmatpush2.msra.mxu0 0.0
    %1604 = vmatprep.subr.mxu0 0.0
    %1605 = vmatpush2.msra.mxu0 0.0
    %1606 = vmatprep.subr.mxu0 0.0
    %1607 = vmatpush2.msra.mxu0 0.0
    %1608 = vmatprep.subr.mxu0 0.0
    %1609 = vmatpush2.msra.mxu0 0.0
    %1610 = vmatprep.subr.mxu0 0.0
    %1611 = vmatpush2.msra.mxu0 0.0
    %1612 = vmatprep.mubr.f32.mxu0 0.0
    %v1613 = vand.u32 %v112, 4294901760
    %1614 = vmatmul.mubr.f32.gmra.mxu0 %v1613
    %v1615 = vpop.f32.mrf.mxu0
    %v1616 = vadd.f32 %v1529, %v1615
    %v1617 = vpop.f32.mrf.mxu0
    %1618 = vdwg.mxu0
    %1619 = vst [vmem:[%s5] sm:$0x1] %v1616
    %v1620 = vld [vmem:[#allocation4] sm:$0xff]
    %v1621 = vld [vmem:[#allocation4 + $0x8] sm:$0xff]
    %v1622 = vld [vmem:[#allocation4 + $0x10] sm:$0xff]
    %v1623 = vld [vmem:[#allocation4 + $0x18] sm:$0xff]
    %v1624 = vld [vmem:[#allocation4 + $0x20] sm:$0xff]
    %v1625 = vld [vmem:[#allocation4 + $0x28] sm:$0xff]
    %v1626 = vld [vmem:[#allocation4 + $0x30] sm:$0xff]
    %v1627 = vld [vmem:[#allocation4 + $0x38] sm:$0xff]
    %v1628 = vld [vmem:[#allocation4 + $0x40] sm:$0xff]
    %v1629 = vld [vmem:[#allocation4 + $0x48] sm:$0xff]
    %v1630 = vld [vmem:[#allocation4 + $0x50] sm:$0xff]
    %v1631 = vld [vmem:[#allocation4 + $0x58] sm:$0xff]
    %v1632 = vld [vmem:[#allocation4 + $0x60] sm:$0xff]
    %v1633 = vld [vmem:[#allocation4 + $0x68] sm:$0xff]
    %v1634 = vld [vmem:[#allocation4 + $0x70] sm:$0xff]
    %v1635 = vld [vmem:[#allocation4 + $0x78] sm:$0xff]
    %v1636 = vld [vmem:[#allocation4 + $0x80] sm:$0xff]
    %v1637 = vld [vmem:[#allocation4 + $0x88] sm:$0xff]
    %v1638 = vld [vmem:[#allocation4 + $0x90] sm:$0xff]
    %v1639 = vld [vmem:[#allocation4 + $0x98] sm:$0xff]
    %v1640 = vld [vmem:[#allocation4 + $0xa0] sm:$0xff]
    %v1641 = vld [vmem:[#allocation4 + $0xa8] sm:$0xff]
    %v1642 = vld [vmem:[#allocation4 + $0xb0] sm:$0xff]
    %v1643 = vld [vmem:[#allocation4 + $0xb8] sm:$0xff]
    %v1644 = vld [vmem:[#allocation4 + $0xc0] sm:$0xff]
    %v1645 = vld [vmem:[#allocation4 + $0xc8] sm:$0xff]
    %v1646 = vld [vmem:[#allocation4 + $0xd0] sm:$0xff]
    %v1647 = vld [vmem:[#allocation4 + $0xd8] sm:$0xff]
    %v1648 = vld [vmem:[#allocation4 + $0xe0] sm:$0xff]
    %v1649 = vld [vmem:[#allocation4 + $0xe8] sm:$0xff]
    %v1650 = vld [vmem:[#allocation4 + $0xf0] sm:$0xff]
    %v1651 = vld [vmem:[#allocation4 + $0xf8] sm:$0xff]
    %v1652 = vld [vmem:[#allocation4 + $0x100] sm:$0xff]
    %v1653 = vld [vmem:[#allocation4 + $0x108] sm:$0xff]
    %v1654 = vld [vmem:[#allocation4 + $0x110] sm:$0xff]
    %v1655 = vld [vmem:[#allocation4 + $0x118] sm:$0xff]
    %v1656 = vld [vmem:[#allocation4 + $0x120] sm:$0xff]
    %v1657 = vld [vmem:[#allocation4 + $0x128] sm:$0xff]
    %v1658 = vld [vmem:[#allocation4 + $0x130] sm:$0xff]
    %v1659 = vld [vmem:[#allocation4 + $0x138] sm:$0xff]
    %v1660 = vld [vmem:[#allocation4 + $0x140] sm:$0xff]
    %v1661 = vld [vmem:[#allocation4 + $0x148] sm:$0xff]
    %v1662 = vld [vmem:[#allocation4 + $0x150] sm:$0xff]
    %v1663 = vld [vmem:[#allocation4 + $0x158] sm:$0xff]
    %v1664 = vld [vmem:[#allocation4 + $0x160] sm:$0xff]
    %v1665 = vld [vmem:[#allocation4 + $0x168] sm:$0xff]
    %v1666 = vld [vmem:[#allocation4 + $0x170] sm:$0xff]
    %v1667 = vld [vmem:[#allocation4 + $0x178] sm:$0xff]
    %v1668 = vld [vmem:[#allocation4 + $0x180] sm:$0xff]
    %v1669 = vld [vmem:[#allocation4 + $0x188] sm:$0xff]
    %v1670 = vld [vmem:[#allocation4 + $0x190] sm:$0xff]
    %v1671 = vld [vmem:[#allocation4 + $0x198] sm:$0xff]
    %v1672 = vld [vmem:[#allocation4 + $0x1a0] sm:$0xff]
    %v1673 = vld [vmem:[#allocation4 + $0x1a8] sm:$0xff]
    %v1674 = vld [vmem:[#allocation4 + $0x1b0] sm:$0xff]
    %v1675 = vld [vmem:[#allocation4 + $0x1b8] sm:$0xff]
    %v1676 = vld [vmem:[#allocation4 + $0x1c0] sm:$0xff]
    %v1677 = vld [vmem:[#allocation4 + $0x1c8] sm:$0xff]
    %v1678 = vld [vmem:[#allocation4 + $0x1d0] sm:$0xff]
    %v1679 = vld [vmem:[#allocation4 + $0x1d8] sm:$0xff]
    %v1680 = vld [vmem:[#allocation4 + $0x1e0] sm:$0xff]
    %v1681 = vld [vmem:[#allocation4 + $0x1e8] sm:$0xff]
    %v1682 = vld [vmem:[#allocation4 + $0x1f0] sm:$0xff]
    %v1683 = vld [vmem:[#allocation4 + $0x1f8] sm:$0xff]
    %v1684 = vld [vmem:[#allocation4 + $0x200] sm:$0xff]
    %v1685 = vld [vmem:[#allocation4 + $0x208] sm:$0xff]
    %v1686 = vld [vmem:[#allocation4 + $0x210] sm:$0xff]
    %v1687 = vld [vmem:[#allocation4 + $0x218] sm:$0xff]
    %v1688 = vld [vmem:[#allocation4 + $0x220] sm:$0xff]
    %v1689 = vld [vmem:[#allocation4 + $0x228] sm:$0xff]
    %v1690 = vld [vmem:[#allocation4 + $0x230] sm:$0xff]
    %v1691 = vld [vmem:[#allocation4 + $0x238] sm:$0xff]
    %v1692 = vld [vmem:[#allocation4 + $0x240] sm:$0xff]
    %v1693 = vld [vmem:[#allocation4 + $0x248] sm:$0xff]
    %v1694 = vld [vmem:[#allocation4 + $0x250] sm:$0xff]
    %v1695 = vld [vmem:[#allocation4 + $0x258] sm:$0xff]
    %v1696 = vld [vmem:[#allocation4 + $0x260] sm:$0xff]
    %v1697 = vld [vmem:[#allocation4 + $0x268] sm:$0xff]
    %v1698 = vld [vmem:[#allocation4 + $0x270] sm:$0xff]
    %v1699 = vld [vmem:[#allocation4 + $0x278] sm:$0xff]
    %v1700 = vld [vmem:[#allocation4 + $0x280] sm:$0xff]
    %v1701 = vld [vmem:[#allocation4 + $0x288] sm:$0xff]
    %v1702 = vld [vmem:[#allocation4 + $0x290] sm:$0xff]
    %v1703 = vld [vmem:[#allocation4 + $0x298] sm:$0xff]
    %v1704 = vld [vmem:[#allocation4 + $0x2a0] sm:$0xff]
    %v1705 = vld [vmem:[#allocation4 + $0x2a8] sm:$0xff]
    %v1706 = vld [vmem:[#allocation4 + $0x2b0] sm:$0xff]
    %v1707 = vld [vmem:[#allocation4 + $0x2b8] sm:$0xff]
    %v1708 = vld [vmem:[#allocation4 + $0x2c0] sm:$0xff]
    %v1709 = vld [vmem:[#allocation4 + $0x2c8] sm:$0xff]
    %v1710 = vld [vmem:[#allocation4 + $0x2d0] sm:$0xff]
    %v1711 = vld [vmem:[#allocation4 + $0x2d8] sm:$0xff]
    %v1712 = vld [vmem:[#allocation4 + $0x2e0] sm:$0xff]
    %v1713 = vld [vmem:[#allocation4 + $0x2e8] sm:$0xff]
    %v1714 = vld [vmem:[#allocation4 + $0x2f0] sm:$0xff]
    %v1715 = vld [vmem:[#allocation4 + $0x2f8] sm:$0xff]
    %v1716 = vld [vmem:[#allocation4 + $0x300] sm:$0xff]
    %v1717 = vld [vmem:[#allocation4 + $0x308] sm:$0xff]
    %v1718 = vld [vmem:[#allocation4 + $0x310] sm:$0xff]
    %v1719 = vld [vmem:[#allocation4 + $0x318] sm:$0xff]
    %v1720 = vld [vmem:[#allocation4 + $0x320] sm:$0xff]
    %v1721 = vld [vmem:[#allocation4 + $0x328] sm:$0xff]
    %v1722 = vld [vmem:[#allocation4 + $0x330] sm:$0xff]
    %v1723 = vld [vmem:[#allocation4 + $0x338] sm:$0xff]
    %v1724 = vld [vmem:[#allocation4 + $0x340] sm:$0xff]
    %v1725 = vld [vmem:[#allocation4 + $0x348] sm:$0xff]
    %v1726 = vld [vmem:[#allocation4 + $0x350] sm:$0xff]
    %v1727 = vld [vmem:[#allocation4 + $0x358] sm:$0xff]
    %v1728 = vld [vmem:[#allocation4 + $0x360] sm:$0xff]
    %v1729 = vld [vmem:[#allocation4 + $0x368] sm:$0xff]
    %v1730 = vld [vmem:[#allocation4 + $0x370] sm:$0xff]
    %v1731 = vld [vmem:[#allocation4 + $0x378] sm:$0xff]
    %v1732 = vld [vmem:[#allocation4 + $0x380] sm:$0xff]
    %v1733 = vld [vmem:[#allocation4 + $0x388] sm:$0xff]
    %v1734 = vld [vmem:[#allocation4 + $0x390] sm:$0xff]
    %v1735 = vld [vmem:[#allocation4 + $0x398] sm:$0xff]
    %v1736 = vld [vmem:[#allocation4 + $0x3a0] sm:$0xff]
    %v1737 = vld [vmem:[#allocation4 + $0x3a8] sm:$0xff]
    %v1738 = vld [vmem:[#allocation4 + $0x3b0] sm:$0xff]
    %v1739 = vld [vmem:[#allocation4 + $0x3b8] sm:$0xff]
    %v1740 = vld [vmem:[#allocation4 + $0x3c0] sm:$0xff]
    %v1741 = vld [vmem:[#allocation4 + $0x3c8] sm:$0xff]
    %v1742 = vld [vmem:[#allocation4 + $0x3d0] sm:$0xff]
    %v1743 = vld [vmem:[#allocation4 + $0x3d8] sm:$0xff]
    %v1744 = vld [vmem:[#allocation4 + $0x3e0] sm:$0xff]
    %v1745 = vld [vmem:[#allocation4 + $0x3e8] sm:$0xff]
    %v1746 = vld [vmem:[#allocation4 + $0x3f0] sm:$0xff]
    %v1747 = vld [vmem:[#allocation4 + $0x3f8] sm:$0xff]
    %v1748 = vld [vmem:[#allocation4 + $0x400] sm:$0xff]
    %v1749 = vld [vmem:[#allocation4 + $0x408] sm:$0xff]
    %v1750 = vld [vmem:[#allocation4 + $0x410] sm:$0xff]
    %v1751 = vld [vmem:[#allocation4 + $0x418] sm:$0xff]
    %v1752 = vld [vmem:[#allocation4 + $0x420] sm:$0xff]
    %v1753 = vld [vmem:[#allocation4 + $0x428] sm:$0xff]
    %v1754 = vld [vmem:[#allocation4 + $0x430] sm:$0xff]
    %v1755 = vld [vmem:[#allocation4 + $0x438] sm:$0xff]
    %v1756 = vld [vmem:[#allocation4 + $0x440] sm:$0xff]
    %v1757 = vld [vmem:[#allocation4 + $0x448] sm:$0xff]
    %v1758 = vld [vmem:[#allocation4 + $0x450] sm:$0xff]
    %v1759 = vld [vmem:[#allocation4 + $0x458] sm:$0xff]
    %v1760 = vld [vmem:[#allocation4 + $0x460] sm:$0xff]
    %v1761 = vld [vmem:[#allocation4 + $0x468] sm:$0xff]
    %v1762 = vld [vmem:[#allocation4 + $0x470] sm:$0xff]
    %v1763 = vld [vmem:[#allocation4 + $0x478] sm:$0xff]
    %v1764 = vld [vmem:[%s4] sm:$0x7]
    %v1766 = vlaneseq
    %v1767 = vshrl.u32 %v1766, 7
    %v1768 = vsub.s32 0, %v1767
    %v1769 = vrot.slane %v1764, %v1768
    %v1770 = vlaneseq
    %v1771 = vshrl.u32 %v1770, 7
    %v1772 = vsub.s32 1, %v1771
    %v1773 = vrot.slane %v1764, %v1772
    %v1774 = vlaneseq
    %v1775 = vshrl.u32 %v1774, 7
    %v1776 = vsub.s32 2, %v1775
    %v1777 = vrot.slane %v1764, %v1776
    %v1781 = vand.u32 %v1666, 4294901760
    %1782 = vmatprep.subr.mxu0 %v1781
    %v1783 = vand.u32 %v1665, 4294901760
    %1784 = vmatpush1.msra.mxu0 %v1783
    %v1785 = vand.u32 %v1663, 4294901760
    %1786 = vmatprep.subr.mxu0 %v1785
    %v1787 = vand.u32 %v1662, 4294901760
    %1788 = vmatpush1.msra.mxu0 %v1787
    %v1789 = vand.u32 %v1660, 4294901760
    %1790 = vmatprep.subr.mxu0 %v1789
    %v1791 = vand.u32 %v1659, 4294901760
    %1792 = vmatpush1.msra.mxu0 %v1791
    %v1793 = vand.u32 %v1657, 4294901760
    %1794 = vmatprep.subr.mxu0 %v1793
    %v1795 = vand.u32 %v1656, 4294901760
    %1796 = vmatpush1.msra.mxu0 %v1795
    %v1797 = vand.u32 %v1654, 4294901760
    %1798 = vmatprep.subr.mxu0 %v1797
    %v1799 = vand.u32 %v1653, 4294901760
    %1800 = vmatpush1.msra.mxu0 %v1799
    %v1801 = vand.u32 %v1651, 4294901760
    %1802 = vmatprep.subr.mxu0 %v1801
    %v1803 = vand.u32 %v1650, 4294901760
    %1804 = vmatpush1.msra.mxu0 %v1803
    %v1805 = vand.u32 %v1648, 4294901760
    %1806 = vmatprep.subr.mxu0 %v1805
    %v1807 = vand.u32 %v1647, 4294901760
    %1808 = vmatpush1.msra.mxu0 %v1807
    %v1809 = vand.u32 %v1645, 4294901760
    %1810 = vmatprep.subr.mxu0 %v1809
    %v1811 = vand.u32 %v1644, 4294901760
    %1812 = vmatpush1.msra.mxu0 %v1811
    %v1813 = vand.u32 %v1642, 4294901760
    %1814 = vmatprep.subr.mxu0 %v1813
    %v1815 = vand.u32 %v1641, 4294901760
    %1816 = vmatpush1.msra.mxu0 %v1815
    %v1817 = vand.u32 %v1639, 4294901760
    %1818 = vmatprep.subr.mxu0 %v1817
    %v1819 = vand.u32 %v1638, 4294901760
    %1820 = vmatpush1.msra.mxu0 %v1819
    %v1821 = vand.u32 %v1636, 4294901760
    %1822 = vmatprep.subr.mxu0 %v1821
    %v1823 = vand.u32 %v1635, 4294901760
    %1824 = vmatpush1.msra.mxu0 %v1823
    %v1825 = vand.u32 %v1633, 4294901760
    %1826 = vmatprep.subr.mxu0 %v1825
    %v1827 = vand.u32 %v1632, 4294901760
    %1828 = vmatpush1.msra.mxu0 %v1827
    %v1829 = vand.u32 %v1630, 4294901760
    %1830 = vmatprep.subr.mxu0 %v1829
    %v1831 = vand.u32 %v1629, 4294901760
    %1832 = vmatpush1.msra.mxu0 %v1831
    %v1833 = vand.u32 %v1627, 4294901760
    %1834 = vmatprep.subr.mxu0 %v1833
    %v1835 = vand.u32 %v1626, 4294901760
    %1836 = vmatpush1.msra.mxu0 %v1835
    %v1837 = vand.u32 %v1624, 4294901760
    %1838 = vmatprep.subr.mxu0 %v1837
    %v1839 = vand.u32 %v1623, 4294901760
    %1840 = vmatpush1.msra.mxu0 %v1839
    %v1841 = vand.u32 %v1621, 4294901760
    %1842 = vmatprep.subr.mxu0 %v1841
    %v1843 = vand.u32 %v1620, 4294901760
    %1844 = vmatpush1.msra.mxu0 %v1843
    %v1845 = vand.u32 %v1714, 4294901760
    %1846 = vmatprep.subr.mxu0 %v1845
    %v1847 = vand.u32 %v1713, 4294901760
    %1848 = vmatpush2.msra.mxu0 %v1847
    %v1849 = vand.u32 %v1711, 4294901760
    %1850 = vmatprep.subr.mxu0 %v1849
    %v1851 = vand.u32 %v1710, 4294901760
    %1852 = vmatpush2.msra.mxu0 %v1851
    %v1853 = vand.u32 %v1708, 4294901760
    %1854 = vmatprep.subr.mxu0 %v1853
    %v1855 = vand.u32 %v1707, 4294901760
    %1856 = vmatpush2.msra.mxu0 %v1855
    %v1857 = vand.u32 %v1705, 4294901760
    %1858 = vmatprep.subr.mxu0 %v1857
    %v1859 = vand.u32 %v1704, 4294901760
    %1860 = vmatpush2.msra.mxu0 %v1859
    %v1861 = vand.u32 %v1702, 4294901760
    %1862 = vmatprep.subr.mxu0 %v1861
    %v1863 = vand.u32 %v1701, 4294901760
    %1864 = vmatpush2.msra.mxu0 %v1863
    %v1865 = vand.u32 %v1699, 4294901760
    %1866 = vmatprep.subr.mxu0 %v1865
    %v1867 = vand.u32 %v1698, 4294901760
    %1868 = vmatpush2.msra.mxu0 %v1867
    %v1869 = vand.u32 %v1696, 4294901760
    %1870 = vmatprep.subr.mxu0 %v1869
    %v1871 = vand.u32 %v1695, 4294901760
    %1872 = vmatpush2.msra.mxu0 %v1871
    %v1873 = vand.u32 %v1693, 4294901760
    %1874 = vmatprep.subr.mxu0 %v1873
    %v1875 = vand.u32 %v1692, 4294901760
    %1876 = vmatpush2.msra.mxu0 %v1875
    %v1877 = vand.u32 %v1690, 4294901760
    %1878 = vmatprep.subr.mxu0 %v1877
    %v1879 = vand.u32 %v1689, 4294901760
    %1880 = vmatpush2.msra.mxu0 %v1879
    %v1881 = vand.u32 %v1687, 4294901760
    %1882 = vmatprep.subr.mxu0 %v1881
    %v1883 = vand.u32 %v1686, 4294901760
    %1884 = vmatpush2.msra.mxu0 %v1883
    %v1885 = vand.u32 %v1684, 4294901760
    %1886 = vmatprep.subr.mxu0 %v1885
    %v1887 = vand.u32 %v1683, 4294901760
    %1888 = vmatpush2.msra.mxu0 %v1887
    %v1889 = vand.u32 %v1681, 4294901760
    %1890 = vmatprep.subr.mxu0 %v1889
    %v1891 = vand.u32 %v1680, 4294901760
    %1892 = vmatpush2.msra.mxu0 %v1891
    %v1893 = vand.u32 %v1678, 4294901760
    %1894 = vmatprep.subr.mxu0 %v1893
    %v1895 = vand.u32 %v1677, 4294901760
    %1896 = vmatpush2.msra.mxu0 %v1895
    %v1897 = vand.u32 %v1675, 4294901760
    %1898 = vmatprep.subr.mxu0 %v1897
    %v1899 = vand.u32 %v1674, 4294901760
    %1900 = vmatpush2.msra.mxu0 %v1899
    %v1901 = vand.u32 %v1672, 4294901760
    %1902 = vmatprep.subr.mxu0 %v1901
    %v1903 = vand.u32 %v1671, 4294901760
    %1904 = vmatpush2.msra.mxu0 %v1903
    %v1905 = vand.u32 %v1669, 4294901760
    %1906 = vmatprep.subr.mxu0 %v1905
    %v1907 = vand.u32 %v1668, 4294901760
    %1908 = vmatpush2.msra.mxu0 %v1907
    %v1909 = vand.u32 %v108, 4294901760
    %v1910 = vsub.f32 %v108, %v1909
    %v1911 = vand.u32 %v1910, 4294901760
    %v1912 = vsub.f32 %v1910, %v1911
    %v1913 = vand.u32 %v1912, 4294901760
    %1914 = vmatprep.mubr.f32.mxu0 %v1913
    %v1915 = vand.u32 %v104, 4294901760
    %v1916 = vsub.f32 %v104, %v1915
    %v1917 = vand.u32 %v1916, 4294901760
    %v1918 = vsub.f32 %v1916, %v1917
    %v1919 = vand.u32 %v1918, 4294901760
    %1920 = vmatmul.mubr.f32.gmra.mxu0 %v1919
    %v1921 = vpop.f32.mrf.mxu0
    %v1922 = vadd.f32 %v1769, %v1921
    %v1923 = vpop.f32.mrf.mxu0
    %v1924 = vadd.f32 %v1773, %v1923
    %1925 = vdwg.mxu0
    %v1926 = vand.u32 %v1666, 4294901760
    %v1927 = vsub.f32 %v1666, %v1926
    %v1928 = vand.u32 %v1927, 4294901760
    %v1929 = vsub.f32 %v1927, %v1928
    %v1930 = vand.u32 %v1929, 4294901760
    %1931 = vmatprep.subr.mxu0 %v1930
    %v1932 = vand.u32 %v1665, 4294901760
    %v1933 = vsub.f32 %v1665, %v1932
    %v1934 = vand.u32 %v1933, 4294901760
    %v1935 = vsub.f32 %v1933, %v1934
    %v1936 = vand.u32 %v1935, 4294901760
    %1937 = vmatpush1.msra.mxu0 %v1936
    %v1938 = vand.u32 %v1663, 4294901760
    %v1939 = vsub.f32 %v1663, %v1938
    %v1940 = vand.u32 %v1939, 4294901760
    %v1941 = vsub.f32 %v1939, %v1940
    %v1942 = vand.u32 %v1941, 4294901760
    %1943 = vmatprep.subr.mxu0 %v1942
    %v1944 = vand.u32 %v1662, 4294901760
    %v1945 = vsub.f32 %v1662, %v1944
    %v1946 = vand.u32 %v1945, 4294901760
    %v1947 = vsub.f32 %v1945, %v1946
    %v1948 = vand.u32 %v1947, 4294901760
    %1949 = vmatpush1.msra.mxu0 %v1948
    %v1950 = vand.u32 %v1660, 4294901760
    %v1951 = vsub.f32 %v1660, %v1950
    %v1952 = vand.u32 %v1951, 4294901760
    %v1953 = vsub.f32 %v1951, %v1952
    %v1954 = vand.u32 %v1953, 4294901760
    %1955 = vmatprep.subr.mxu0 %v1954
    %v1956 = vand.u32 %v1659, 4294901760
    %v1957 = vsub.f32 %v1659, %v1956
    %v1958 = vand.u32 %v1957, 4294901760
    %v1959 = vsub.f32 %v1957, %v1958
    %v1960 = vand.u32 %v1959, 4294901760
    %1961 = vmatpush1.msra.mxu0 %v1960
    %v1962 = vand.u32 %v1657, 4294901760
    %v1963 = vsub.f32 %v1657, %v1962
    %v1964 = vand.u32 %v1963, 4294901760
    %v1965 = vsub.f32 %v1963, %v1964
    %v1966 = vand.u32 %v1965, 4294901760
    %1967 = vmatprep.subr.mxu0 %v1966
    %v1968 = vand.u32 %v1656, 4294901760
    %v1969 = vsub.f32 %v1656, %v1968
    %v1970 = vand.u32 %v1969, 4294901760
    %v1971 = vsub.f32 %v1969, %v1970
    %v1972 = vand.u32 %v1971, 4294901760
    %1973 = vmatpush1.msra.mxu0 %v1972
    %v1974 = vand.u32 %v1654, 4294901760
    %v1975 = vsub.f32 %v1654, %v1974
    %v1976 = vand.u32 %v1975, 4294901760
    %v1977 = vsub.f32 %v1975, %v1976
    %v1978 = vand.u32 %v1977, 4294901760
    %1979 = vmatprep.subr.mxu0 %v1978
    %v1980 = vand.u32 %v1653, 4294901760
    %v1981 = vsub.f32 %v1653, %v1980
    %v1982 = vand.u32 %v1981, 4294901760
    %v1983 = vsub.f32 %v1981, %v1982
    %v1984 = vand.u32 %v1983, 4294901760
    %1985 = vmatpush1.msra.mxu0 %v1984
    %v1986 = vand.u32 %v1651, 4294901760
    %v1987 = vsub.f32 %v1651, %v1986
    %v1988 = vand.u32 %v1987, 4294901760
    %v1989 = vsub.f32 %v1987, %v1988
    %v1990 = vand.u32 %v1989, 4294901760
    %1991 = vmatprep.subr.mxu0 %v1990
    %v1992 = vand.u32 %v1650, 4294901760
    %v1993 = vsub.f32 %v1650, %v1992
    %v1994 = vand.u32 %v1993, 4294901760
    %v1995 = vsub.f32 %v1993, %v1994
    %v1996 = vand.u32 %v1995, 4294901760
    %1997 = vmatpush1.msra.mxu0 %v1996
    %v1998 = vand.u32 %v1648, 4294901760
    %v1999 = vsub.f32 %v1648, %v1998
    %v2000 = vand.u32 %v1999, 4294901760
    %v2001 = vsub.f32 %v1999, %v2000
    %v2002 = vand.u32 %v2001, 4294901760
    %2003 = vmatprep.subr.mxu0 %v2002
    %v2004 = vand.u32 %v1647, 4294901760
    %v2005 = vsub.f32 %v1647, %v2004
    %v2006 = vand.u32 %v2005, 4294901760
    %v2007 = vsub.f32 %v2005, %v2006
    %v2008 = vand.u32 %v2007, 4294901760
    %2009 = vmatpush1.msra.mxu0 %v2008
    %v2010 = vand.u32 %v1645, 4294901760
    %v2011 = vsub.f32 %v1645, %v2010
    %v2012 = vand.u32 %v2011, 4294901760
    %v2013 = vsub.f32 %v2011, %v2012
    %v2014 = vand.u32 %v2013, 4294901760
    %2015 = vmatprep.subr.mxu0 %v2014
    %v2016 = vand.u32 %v1644, 4294901760
    %v2017 = vsub.f32 %v1644, %v2016
    %v2018 = vand.u32 %v2017, 4294901760
    %v2019 = vsub.f32 %v2017, %v2018
    %v2020 = vand.u32 %v2019, 4294901760
    %2021 = vmatpush1.msra.mxu0 %v2020
    %v2022 = vand.u32 %v1642, 4294901760
    %v2023 = vsub.f32 %v1642, %v2022
    %v2024 = vand.u32 %v2023, 4294901760
    %v2025 = vsub.f32 %v2023, %v2024
    %v2026 = vand.u32 %v2025, 4294901760
    %2027 = vmatprep.subr.mxu0 %v2026
    %v2028 = vand.u32 %v1641, 4294901760
    %v2029 = vsub.f32 %v1641, %v2028
    %v2030 = vand.u32 %v2029, 4294901760
    %v2031 = vsub.f32 %v2029, %v2030
    %v2032 = vand.u32 %v2031, 4294901760
    %2033 = vmatpush1.msra.mxu0 %v2032
    %v2034 = vand.u32 %v1639, 4294901760
    %v2035 = vsub.f32 %v1639, %v2034
    %v2036 = vand.u32 %v2035, 4294901760
    %v2037 = vsub.f32 %v2035, %v2036
    %v2038 = vand.u32 %v2037, 4294901760
    %2039 = vmatprep.subr.mxu0 %v2038
    %v2040 = vand.u32 %v1638, 4294901760
    %v2041 = vsub.f32 %v1638, %v2040
    %v2042 = vand.u32 %v2041, 4294901760
    %v2043 = vsub.f32 %v2041, %v2042
    %v2044 = vand.u32 %v2043, 4294901760
    %2045 = vmatpush1.msra.mxu0 %v2044
    %v2046 = vand.u32 %v1636, 4294901760
    %v2047 = vsub.f32 %v1636, %v2046
    %v2048 = vand.u32 %v2047, 4294901760
    %v2049 = vsub.f32 %v2047, %v2048
    %v2050 = vand.u32 %v2049, 4294901760
    %2051 = vmatprep.subr.mxu0 %v2050
    %v2052 = vand.u32 %v1635, 4294901760
    %v2053 = vsub.f32 %v1635, %v2052
    %v2054 = vand.u32 %v2053, 4294901760
    %v2055 = vsub.f32 %v2053, %v2054
    %v2056 = vand.u32 %v2055, 4294901760
    %2057 = vmatpush1.msra.mxu0 %v2056
    %v2058 = vand.u32 %v1633, 4294901760
    %v2059 = vsub.f32 %v1633, %v2058
    %v2060 = vand.u32 %v2059, 4294901760
    %v2061 = vsub.f32 %v2059, %v2060
    %v2062 = vand.u32 %v2061, 4294901760
    %2063 = vmatprep.subr.mxu0 %v2062
    %v2064 = vand.u32 %v1632, 4294901760
    %v2065 = vsub.f32 %v1632, %v2064
    %v2066 = vand.u32 %v2065, 4294901760
    %v2067 = vsub.f32 %v2065, %v2066
    %v2068 = vand.u32 %v2067, 4294901760
    %2069 = vmatpush1.msra.mxu0 %v2068
    %v2070 = vand.u32 %v1630, 4294901760
    %v2071 = vsub.f32 %v1630, %v2070
    %v2072 = vand.u32 %v2071, 4294901760
    %v2073 = vsub.f32 %v2071, %v2072
    %v2074 = vand.u32 %v2073, 4294901760
    %2075 = vmatprep.subr.mxu0 %v2074
    %v2076 = vand.u32 %v1629, 4294901760
    %v2077 = vsub.f32 %v1629, %v2076
    %v2078 = vand.u32 %v2077, 4294901760
    %v2079 = vsub.f32 %v2077, %v2078
    %v2080 = vand.u32 %v2079, 4294901760
    %2081 = vmatpush1.msra.mxu0 %v2080
    %v2082 = vand.u32 %v1627, 4294901760
    %v2083 = vsub.f32 %v1627, %v2082
    %v2084 = vand.u32 %v2083, 4294901760
    %v2085 = vsub.f32 %v2083, %v2084
    %v2086 = vand.u32 %v2085, 4294901760
    %2087 = vmatprep.subr.mxu0 %v2086
    %v2088 = vand.u32 %v1626, 4294901760
    %v2089 = vsub.f32 %v1626, %v2088
    %v2090 = vand.u32 %v2089, 4294901760
    %v2091 = vsub.f32 %v2089, %v2090
    %v2092 = vand.u32 %v2091, 4294901760
    %2093 = vmatpush1.msra.mxu0 %v2092
    %v2094 = vand.u32 %v1624, 4294901760
    %v2095 = vsub.f32 %v1624, %v2094
    %v2096 = vand.u32 %v2095, 4294901760
    %v2097 = vsub.f32 %v2095, %v2096
    %v2098 = vand.u32 %v2097, 4294901760
    %2099 = vmatprep.subr.mxu0 %v2098
    %v2100 = vand.u32 %v1623, 4294901760
    %v2101 = vsub.f32 %v1623, %v2100
    %v2102 = vand.u32 %v2101, 4294901760
    %v2103 = vsub.f32 %v2101, %v2102
    %v2104 = vand.u32 %v2103, 4294901760
    %2105 = vmatpush1.msra.mxu0 %v2104
    %v2106 = vand.u32 %v1621, 4294901760
    %v2107 = vsub.f32 %v1621, %v2106
    %v2108 = vand.u32 %v2107, 4294901760
    %v2109 = vsub.f32 %v2107, %v2108
    %v2110 = vand.u32 %v2109, 4294901760
    %2111 = vmatprep.subr.mxu0 %v2110
    %v2112 = vand.u32 %v1620, 4294901760
    %v2113 = vsub.f32 %v1620, %v2112
    %v2114 = vand.u32 %v2113, 4294901760
    %v2115 = vsub.f32 %v2113, %v2114
    %v2116 = vand.u32 %v2115, 4294901760
    %2117 = vmatpush1.msra.mxu0 %v2116
    %v2118 = vand.u32 %v1714, 4294901760
    %v2119 = vsub.f32 %v1714, %v2118
    %v2120 = vand.u32 %v2119, 4294901760
    %v2121 = vsub.f32 %v2119, %v2120
    %v2122 = vand.u32 %v2121, 4294901760
    %2123 = vmatprep.subr.mxu0 %v2122
    %v2124 = vand.u32 %v1713, 4294901760
    %v2125 = vsub.f32 %v1713, %v2124
    %v2126 = vand.u32 %v2125, 4294901760
    %v2127 = vsub.f32 %v2125, %v2126
    %v2128 = vand.u32 %v2127, 4294901760
    %2129 = vmatpush2.msra.mxu0 %v2128
    %v2130 = vand.u32 %v1711, 4294901760
    %v2131 = vsub.f32 %v1711, %v2130
    %v2132 = vand.u32 %v2131, 4294901760
    %v2133 = vsub.f32 %v2131, %v2132
    %v2134 = vand.u32 %v2133, 4294901760
    %2135 = vmatprep.subr.mxu0 %v2134
    %v2136 = vand.u32 %v1710, 4294901760
    %v2137 = vsub.f32 %v1710, %v2136
    %v2138 = vand.u32 %v2137, 4294901760
    %v2139 = vsub.f32 %v2137, %v2138
    %v2140 = vand.u32 %v2139, 4294901760
    %2141 = vmatpush2.msra.mxu0 %v2140
    %v2142 = vand.u32 %v1708, 4294901760
    %v2143 = vsub.f32 %v1708, %v2142
    %v2144 = vand.u32 %v2143, 4294901760
    %v2145 = vsub.f32 %v2143, %v2144
    %v2146 = vand.u32 %v2145, 4294901760
    %2147 = vmatprep.subr.mxu0 %v2146
    %v2148 = vand.u32 %v1707, 4294901760
    %v2149 = vsub.f32 %v1707, %v2148
    %v2150 = vand.u32 %v2149, 4294901760
    %v2151 = vsub.f32 %v2149, %v2150
    %v2152 = vand.u32 %v2151, 4294901760
    %2153 = vmatpush2.msra.mxu0 %v2152
    %v2154 = vand.u32 %v1705, 4294901760
    %v2155 = vsub.f32 %v1705, %v2154
    %v2156 = vand.u32 %v2155, 4294901760
    %v2157 = vsub.f32 %v2155, %v2156
    %v2158 = vand.u32 %v2157, 4294901760
    %2159 = vmatprep.subr.mxu0 %v2158
    %v2160 = vand.u32 %v1704, 4294901760
    %v2161 = vsub.f32 %v1704, %v2160
    %v2162 = vand.u32 %v2161, 4294901760
    %v2163 = vsub.f32 %v2161, %v2162
    %v2164 = vand.u32 %v2163, 4294901760
    %2165 = vmatpush2.msra.mxu0 %v2164
    %v2166 = vand.u32 %v1702, 4294901760
    %v2167 = vsub.f32 %v1702, %v2166
    %v2168 = vand.u32 %v2167, 4294901760
    %v2169 = vsub.f32 %v2167, %v2168
    %v2170 = vand.u32 %v2169, 4294901760
    %2171 = vmatprep.subr.mxu0 %v2170
    %v2172 = vand.u32 %v1701, 4294901760
    %v2173 = vsub.f32 %v1701, %v2172
    %v2174 = vand.u32 %v2173, 4294901760
    %v2175 = vsub.f32 %v2173, %v2174
    %v2176 = vand.u32 %v2175, 4294901760
    %2177 = vmatpush2.msra.mxu0 %v2176
    %v2178 = vand.u32 %v1699, 4294901760
    %v2179 = vsub.f32 %v1699, %v2178
    %v2180 = vand.u32 %v2179, 4294901760
    %v2181 = vsub.f32 %v2179, %v2180
    %v2182 = vand.u32 %v2181, 4294901760
    %2183 = vmatprep.subr.mxu0 %v2182
    %v2184 = vand.u32 %v1698, 4294901760
    %v2185 = vsub.f32 %v1698, %v2184
    %v2186 = vand.u32 %v2185, 4294901760
    %v2187 = vsub.f32 %v2185, %v2186
    %v2188 = vand.u32 %v2187, 4294901760
    %2189 = vmatpush2.msra.mxu0 %v2188
    %v2190 = vand.u32 %v1696, 4294901760
    %v2191 = vsub.f32 %v1696, %v2190
    %v2192 = vand.u32 %v2191, 4294901760
    %v2193 = vsub.f32 %v2191, %v2192
    %v2194 = vand.u32 %v2193, 4294901760
    %2195 = vmatprep.subr.mxu0 %v2194
    %v2196 = vand.u32 %v1695, 4294901760
    %v2197 = vsub.f32 %v1695, %v2196
    %v2198 = vand.u32 %v2197, 4294901760
    %v2199 = vsub.f32 %v2197, %v2198
    %v2200 = vand.u32 %v2199, 4294901760
    %2201 = vmatpush2.msra.mxu0 %v2200
    %v2202 = vand.u32 %v1693, 4294901760
    %v2203 = vsub.f32 %v1693, %v2202
    %v2204 = vand.u32 %v2203, 4294901760
    %v2205 = vsub.f32 %v2203, %v2204
    %v2206 = vand.u32 %v2205, 4294901760
    %2207 = vmatprep.subr.mxu0 %v2206
    %v2208 = vand.u32 %v1692, 4294901760
    %v2209 = vsub.f32 %v1692, %v2208
    %v2210 = vand.u32 %v2209, 4294901760
    %v2211 = vsub.f32 %v2209, %v2210
    %v2212 = vand.u32 %v2211, 4294901760
    %2213 = vmatpush2.msra.mxu0 %v2212
    %v2214 = vand.u32 %v1690, 4294901760
    %v2215 = vsub.f32 %v1690, %v2214
    %v2216 = vand.u32 %v2215, 4294901760
    %v2217 = vsub.f32 %v2215, %v2216
    %v2218 = vand.u32 %v2217, 4294901760
    %2219 = vmatprep.subr.mxu0 %v2218
    %v2220 = vand.u32 %v1689, 4294901760
    %v2221 = vsub.f32 %v1689, %v2220
    %v2222 = vand.u32 %v2221, 4294901760
    %v2223 = vsub.f32 %v2221, %v2222
    %v2224 = vand.u32 %v2223, 4294901760
    %2225 = vmatpush2.msra.mxu0 %v2224
    %v2226 = vand.u32 %v1687, 4294901760
    %v2227 = vsub.f32 %v1687, %v2226
    %v2228 = vand.u32 %v2227, 4294901760
    %v2229 = vsub.f32 %v2227, %v2228
    %v2230 = vand.u32 %v2229, 4294901760
    %2231 = vmatprep.subr.mxu0 %v2230
    %v2232 = vand.u32 %v1686, 4294901760
    %v2233 = vsub.f32 %v1686, %v2232
    %v2234 = vand.u32 %v2233, 4294901760
    %v2235 = vsub.f32 %v2233, %v2234
    %v2236 = vand.u32 %v2235, 4294901760
    %2237 = vmatpush2.msra.mxu0 %v2236
    %v2238 = vand.u32 %v1684, 4294901760
    %v2239 = vsub.f32 %v1684, %v2238
    %v2240 = vand.u32 %v2239, 4294901760
    %v2241 = vsub.f32 %v2239, %v2240
    %v2242 = vand.u32 %v2241, 4294901760
    %2243 = vmatprep.subr.mxu0 %v2242
    %v2244 = vand.u32 %v1683, 4294901760
    %v2245 = vsub.f32 %v1683, %v2244
    %v2246 = vand.u32 %v2245, 4294901760
    %v2247 = vsub.f32 %v2245, %v2246
    %v2248 = vand.u32 %v2247, 4294901760
    %2249 = vmatpush2.msra.mxu0 %v2248
    %v2250 = vand.u32 %v1681, 4294901760
    %v2251 = vsub.f32 %v1681, %v2250
    %v2252 = vand.u32 %v2251, 4294901760
    %v2253 = vsub.f32 %v2251, %v2252
    %v2254 = vand.u32 %v2253, 4294901760
    %2255 = vmatprep.subr.mxu0 %v2254
    %v2256 = vand.u32 %v1680, 4294901760
    %v2257 = vsub.f32 %v1680, %v2256
    %v2258 = vand.u32 %v2257, 4294901760
    %v2259 = vsub.f32 %v2257, %v2258
    %v2260 = vand.u32 %v2259, 4294901760
    %2261 = vmatpush2.msra.mxu0 %v2260
    %v2262 = vand.u32 %v1678, 4294901760
    %v2263 = vsub.f32 %v1678, %v2262
    %v2264 = vand.u32 %v2263, 4294901760
    %v2265 = vsub.f32 %v2263, %v2264
    %v2266 = vand.u32 %v2265, 4294901760
    %2267 = vmatprep.subr.mxu0 %v2266
    %v2268 = vand.u32 %v1677, 4294901760
    %v2269 = vsub.f32 %v1677, %v2268
    %v2270 = vand.u32 %v2269, 4294901760
    %v2271 = vsub.f32 %v2269, %v2270
    %v2272 = vand.u32 %v2271, 4294901760
    %2273 = vmatpush2.msra.mxu0 %v2272
    %v2274 = vand.u32 %v1675, 4294901760
    %v2275 = vsub.f32 %v1675, %v2274
    %v2276 = vand.u32 %v2275, 4294901760
    %v2277 = vsub.f32 %v2275, %v2276
    %v2278 = vand.u32 %v2277, 4294901760
    %2279 = vmatprep.subr.mxu0 %v2278
    %v2280 = vand.u32 %v1674, 4294901760
    %v2281 = vsub.f32 %v1674, %v2280
    %v2282 = vand.u32 %v2281, 4294901760
    %v2283 = vsub.f32 %v2281, %v2282
    %v2284 = vand.u32 %v2283, 4294901760
    %2285 = vmatpush2.msra.mxu0 %v2284
    %v2286 = vand.u32 %v1672, 4294901760
    %v2287 = vsub.f32 %v1672, %v2286
    %v2288 = vand.u32 %v2287, 4294901760
    %v2289 = vsub.f32 %v2287, %v2288
    %v2290 = vand.u32 %v2289, 4294901760
    %2291 = vmatprep.subr.mxu0 %v2290
    %v2292 = vand.u32 %v1671, 4294901760
    %v2293 = vsub.f32 %v1671, %v2292
    %v2294 = vand.u32 %v2293, 4294901760
    %v2295 = vsub.f32 %v2293, %v2294
    %v2296 = vand.u32 %v2295, 4294901760
    %2297 = vmatpush2.msra.mxu0 %v2296
    %v2298 = vand.u32 %v1669, 4294901760
    %v2299 = vsub.f32 %v1669, %v2298
    %v2300 = vand.u32 %v2299, 4294901760
    %v2301 = vsub.f32 %v2299, %v2300
    %v2302 = vand.u32 %v2301, 4294901760
    %2303 = vmatprep.subr.mxu0 %v2302
    %v2304 = vand.u32 %v1668, 4294901760
    %v2305 = vsub.f32 %v1668, %v2304
    %v2306 = vand.u32 %v2305, 4294901760
    %v2307 = vsub.f32 %v2305, %v2306
    %v2308 = vand.u32 %v2307, 4294901760
    %2309 = vmatpush2.msra.mxu0 %v2308
    %v2310 = vand.u32 %v108, 4294901760
    %2311 = vmatprep.mubr.f32.mxu0 %v2310
    %v2312 = vand.u32 %v104, 4294901760
    %2313 = vmatmul.mubr.f32.gmra.mxu0 %v2312
    %v2314 = vpop.f32.mrf.mxu0
    %v2315 = vadd.f32 %v1922, %v2314
    %v2316 = vpop.f32.mrf.mxu0
    %v2317 = vadd.f32 %v1924, %v2316
    %2318 = vdwg.mxu0
    %v2319 = vand.u32 %v1666, 4294901760
    %v2320 = vsub.f32 %v1666, %v2319
    %2321 = vmatprep.subr.mxu0 %v2320
    %v2322 = vand.u32 %v1665, 4294901760
    %v2323 = vsub.f32 %v1665, %v2322
    %2324 = vmatpush1.msra.mxu0 %v2323
    %v2325 = vand.u32 %v1663, 4294901760
    %v2326 = vsub.f32 %v1663, %v2325
    %2327 = vmatprep.subr.mxu0 %v2326
    %v2328 = vand.u32 %v1662, 4294901760
    %v2329 = vsub.f32 %v1662, %v2328
    %2330 = vmatpush1.msra.mxu0 %v2329
    %v2331 = vand.u32 %v1660, 4294901760
    %v2332 = vsub.f32 %v1660, %v2331
    %2333 = vmatprep.subr.mxu0 %v2332
    %v2334 = vand.u32 %v1659, 4294901760
    %v2335 = vsub.f32 %v1659, %v2334
    %2336 = vmatpush1.msra.mxu0 %v2335
    %v2337 = vand.u32 %v1657, 4294901760
    %v2338 = vsub.f32 %v1657, %v2337
    %2339 = vmatprep.subr.mxu0 %v2338
    %v2340 = vand.u32 %v1656, 4294901760
    %v2341 = vsub.f32 %v1656, %v2340
    %2342 = vmatpush1.msra.mxu0 %v2341
    %v2343 = vand.u32 %v1654, 4294901760
    %v2344 = vsub.f32 %v1654, %v2343
    %2345 = vmatprep.subr.mxu0 %v2344
    %v2346 = vand.u32 %v1653, 4294901760
    %v2347 = vsub.f32 %v1653, %v2346
    %2348 = vmatpush1.msra.mxu0 %v2347
    %v2349 = vand.u32 %v1651, 4294901760
    %v2350 = vsub.f32 %v1651, %v2349
    %2351 = vmatprep.subr.mxu0 %v2350
    %v2352 = vand.u32 %v1650, 4294901760
    %v2353 = vsub.f32 %v1650, %v2352
    %2354 = vmatpush1.msra.mxu0 %v2353
    %v2355 = vand.u32 %v1648, 4294901760
    %v2356 = vsub.f32 %v1648, %v2355
    %2357 = vmatprep.subr.mxu0 %v2356
    %v2358 = vand.u32 %v1647, 4294901760
    %v2359 = vsub.f32 %v1647, %v2358
    %2360 = vmatpush1.msra.mxu0 %v2359
    %v2361 = vand.u32 %v1645, 4294901760
    %v2362 = vsub.f32 %v1645, %v2361
    %2363 = vmatprep.subr.mxu0 %v2362
    %v2364 = vand.u32 %v1644, 4294901760
    %v2365 = vsub.f32 %v1644, %v2364
    %2366 = vmatpush1.msra.mxu0 %v2365
    %v2367 = vand.u32 %v1642, 4294901760
    %v2368 = vsub.f32 %v1642, %v2367
    %2369 = vmatprep.subr.mxu0 %v2368
    %v2370 = vand.u32 %v1641, 4294901760
    %v2371 = vsub.f32 %v1641, %v2370
    %2372 = vmatpush1.msra.mxu0 %v2371
    %v2373 = vand.u32 %v1639, 4294901760
    %v2374 = vsub.f32 %v1639, %v2373
    %2375 = vmatprep.subr.mxu0 %v2374
    %v2376 = vand.u32 %v1638, 4294901760
    %v2377 = vsub.f32 %v1638, %v2376
    %2378 = vmatpush1.msra.mxu0 %v2377
    %v2379 = vand.u32 %v1636, 4294901760
    %v2380 = vsub.f32 %v1636, %v2379
    %2381 = vmatprep.subr.mxu0 %v2380
    %v2382 = vand.u32 %v1635, 4294901760
    %v2383 = vsub.f32 %v1635, %v2382
    %2384 = vmatpush1.msra.mxu0 %v2383
    %v2385 = vand.u32 %v1633, 4294901760
    %v2386 = vsub.f32 %v1633, %v2385
    %2387 = vmatprep.subr.mxu0 %v2386
    %v2388 = vand.u32 %v1632, 4294901760
    %v2389 = vsub.f32 %v1632, %v2388
    %2390 = vmatpush1.msra.mxu0 %v2389
    %v2391 = vand.u32 %v1630, 4294901760
    %v2392 = vsub.f32 %v1630, %v2391
    %2393 = vmatprep.subr.mxu0 %v2392
    %v2394 = vand.u32 %v1629, 4294901760
    %v2395 = vsub.f32 %v1629, %v2394
    %2396 = vmatpush1.msra.mxu0 %v2395
    %v2397 = vand.u32 %v1627, 4294901760
    %v2398 = vsub.f32 %v1627, %v2397
    %2399 = vmatprep.subr.mxu0 %v2398
    %v2400 = vand.u32 %v1626, 4294901760
    %v2401 = vsub.f32 %v1626, %v2400
    %2402 = vmatpush1.msra.mxu0 %v2401
    %v2403 = vand.u32 %v1624, 4294901760
    %v2404 = vsub.f32 %v1624, %v2403
    %2405 = vmatprep.subr.mxu0 %v2404
    %v2406 = vand.u32 %v1623, 4294901760
    %v2407 = vsub.f32 %v1623, %v2406
    %2408 = vmatpush1.msra.mxu0 %v2407
    %v2409 = vand.u32 %v1621, 4294901760
    %v2410 = vsub.f32 %v1621, %v2409
    %2411 = vmatprep.subr.mxu0 %v2410
    %v2412 = vand.u32 %v1620, 4294901760
    %v2413 = vsub.f32 %v1620, %v2412
    %2414 = vmatpush1.msra.mxu0 %v2413
    %v2415 = vand.u32 %v1714, 4294901760
    %v2416 = vsub.f32 %v1714, %v2415
    %2417 = vmatprep.subr.mxu0 %v2416
    %v2418 = vand.u32 %v1713, 4294901760
    %v2419 = vsub.f32 %v1713, %v2418
    %2420 = vmatpush2.msra.mxu0 %v2419
    %v2421 = vand.u32 %v1711, 4294901760
    %v2422 = vsub.f32 %v1711, %v2421
    %2423 = vmatprep.subr.mxu0 %v2422
    %v2424 = vand.u32 %v1710, 4294901760
    %v2425 = vsub.f32 %v1710, %v2424
    %2426 = vmatpush2.msra.mxu0 %v2425
    %v2427 = vand.u32 %v1708, 4294901760
    %v2428 = vsub.f32 %v1708, %v2427
    %2429 = vmatprep.subr.mxu0 %v2428
    %v2430 = vand.u32 %v1707, 4294901760
    %v2431 = vsub.f32 %v1707, %v2430
    %2432 = vmatpush2.msra.mxu0 %v2431
    %v2433 = vand.u32 %v1705, 4294901760
    %v2434 = vsub.f32 %v1705, %v2433
    %2435 = vmatprep.subr.mxu0 %v2434
    %v2436 = vand.u32 %v1704, 4294901760
    %v2437 = vsub.f32 %v1704, %v2436
    %2438 = vmatpush2.msra.mxu0 %v2437
    %v2439 = vand.u32 %v1702, 4294901760
    %v2440 = vsub.f32 %v1702, %v2439
    %2441 = vmatprep.subr.mxu0 %v2440
    %v2442 = vand.u32 %v1701, 4294901760
    %v2443 = vsub.f32 %v1701, %v2442
    %2444 = vmatpush2.msra.mxu0 %v2443
    %v2445 = vand.u32 %v1699, 4294901760
    %v2446 = vsub.f32 %v1699, %v2445
    %2447 = vmatprep.subr.mxu0 %v2446
    %v2448 = vand.u32 %v1698, 4294901760
    %v2449 = vsub.f32 %v1698, %v2448
    %2450 = vmatpush2.msra.mxu0 %v2449
    %v2451 = vand.u32 %v1696, 4294901760
    %v2452 = vsub.f32 %v1696, %v2451
    %2453 = vmatprep.subr.mxu0 %v2452
    %v2454 = vand.u32 %v1695, 4294901760
    %v2455 = vsub.f32 %v1695, %v2454
    %2456 = vmatpush2.msra.mxu0 %v2455
    %v2457 = vand.u32 %v1693, 4294901760
    %v2458 = vsub.f32 %v1693, %v2457
    %2459 = vmatprep.subr.mxu0 %v2458
    %v2460 = vand.u32 %v1692, 4294901760
    %v2461 = vsub.f32 %v1692, %v2460
    %2462 = vmatpush2.msra.mxu0 %v2461
    %v2463 = vand.u32 %v1690, 4294901760
    %v2464 = vsub.f32 %v1690, %v2463
    %2465 = vmatprep.subr.mxu0 %v2464
    %v2466 = vand.u32 %v1689, 4294901760
    %v2467 = vsub.f32 %v1689, %v2466
    %2468 = vmatpush2.msra.mxu0 %v2467
    %v2469 = vand.u32 %v1687, 4294901760
    %v2470 = vsub.f32 %v1687, %v2469
    %2471 = vmatprep.subr.mxu0 %v2470
    %v2472 = vand.u32 %v1686, 4294901760
    %v2473 = vsub.f32 %v1686, %v2472
    %2474 = vmatpush2.msra.mxu0 %v2473
    %v2475 = vand.u32 %v1684, 4294901760
    %v2476 = vsub.f32 %v1684, %v2475
    %2477 = vmatprep.subr.mxu0 %v2476
    %v2478 = vand.u32 %v1683, 4294901760
    %v2479 = vsub.f32 %v1683, %v2478
    %2480 = vmatpush2.msra.mxu0 %v2479
    %v2481 = vand.u32 %v1681, 4294901760
    %v2482 = vsub.f32 %v1681, %v2481
    %2483 = vmatprep.subr.mxu0 %v2482
    %v2484 = vand.u32 %v1680, 4294901760
    %v2485 = vsub.f32 %v1680, %v2484
    %2486 = vmatpush2.msra.mxu0 %v2485
    %v2487 = vand.u32 %v1678, 4294901760
    %v2488 = vsub.f32 %v1678, %v2487
    %2489 = vmatprep.subr.mxu0 %v2488
    %v2490 = vand.u32 %v1677, 4294901760
    %v2491 = vsub.f32 %v1677, %v2490
    %2492 = vmatpush2.msra.mxu0 %v2491
    %v2493 = vand.u32 %v1675, 4294901760
    %v2494 = vsub.f32 %v1675, %v2493
    %2495 = vmatprep.subr.mxu0 %v2494
    %v2496 = vand.u32 %v1674, 4294901760
    %v2497 = vsub.f32 %v1674, %v2496
    %2498 = vmatpush2.msra.mxu0 %v2497
    %v2499 = vand.u32 %v1672, 4294901760
    %v2500 = vsub.f32 %v1672, %v2499
    %2501 = vmatprep.subr.mxu0 %v2500
    %v2502 = vand.u32 %v1671, 4294901760
    %v2503 = vsub.f32 %v1671, %v2502
    %2504 = vmatpush2.msra.mxu0 %v2503
    %v2505 = vand.u32 %v1669, 4294901760
    %v2506 = vsub.f32 %v1669, %v2505
    %2507 = vmatprep.subr.mxu0 %v2506
    %v2508 = vand.u32 %v1668, 4294901760
    %v2509 = vsub.f32 %v1668, %v2508
    %2510 = vmatpush2.msra.mxu0 %v2509
    %v2511 = vand.u32 %v108, 4294901760
    %v2512 = vsub.f32 %v108, %v2511
    %2513 = vmatprep.mubr.f32.mxu0 %v2512
    %v2514 = vand.u32 %v104, 4294901760
    %v2515 = vsub.f32 %v104, %v2514
    %2516 = vmatmul.mubr.f32.gmra.mxu0 %v2515
    %v2517 = vpop.f32.mrf.mxu0
    %v2518 = vadd.f32 %v2315, %v2517
    %v2519 = vpop.f32.mrf.mxu0
    %v2520 = vadd.f32 %v2317, %v2519
    %2521 = vdwg.mxu0
    %v2522 = vand.u32 %v1666, 4294901760
    %2523 = vmatprep.subr.mxu0 %v2522
    %v2524 = vand.u32 %v1665, 4294901760
    %2525 = vmatpush1.msra.mxu0 %v2524
    %v2526 = vand.u32 %v1663, 4294901760
    %2527 = vmatprep.subr.mxu0 %v2526
    %v2528 = vand.u32 %v1662, 4294901760
    %2529 = vmatpush1.msra.mxu0 %v2528
    %v2530 = vand.u32 %v1660, 4294901760
    %2531 = vmatprep.subr.mxu0 %v2530
    %v2532 = vand.u32 %v1659, 4294901760
    %2533 = vmatpush1.msra.mxu0 %v2532
    %v2534 = vand.u32 %v1657, 4294901760
    %2535 = vmatprep.subr.mxu0 %v2534
    %v2536 = vand.u32 %v1656, 4294901760
    %2537 = vmatpush1.msra.mxu0 %v2536
    %v2538 = vand.u32 %v1654, 4294901760
    %2539 = vmatprep.subr.mxu0 %v2538
    %v2540 = vand.u32 %v1653, 4294901760
    %2541 = vmatpush1.msra.mxu0 %v2540
    %v2542 = vand.u32 %v1651, 4294901760
    %2543 = vmatprep.subr.mxu0 %v2542
    %v2544 = vand.u32 %v1650, 4294901760
    %2545 = vmatpush1.msra.mxu0 %v2544
    %v2546 = vand.u32 %v1648, 4294901760
    %2547 = vmatprep.subr.mxu0 %v2546
    %v2548 = vand.u32 %v1647, 4294901760
    %2549 = vmatpush1.msra.mxu0 %v2548
    %v2550 = vand.u32 %v1645, 4294901760
    %2551 = vmatprep.subr.mxu0 %v2550
    %v2552 = vand.u32 %v1644, 4294901760
    %2553 = vmatpush1.msra.mxu0 %v2552
    %v2554 = vand.u32 %v1642, 4294901760
    %2555 = vmatprep.subr.mxu0 %v2554
    %v2556 = vand.u32 %v1641, 4294901760
    %2557 = vmatpush1.msra.mxu0 %v2556
    %v2558 = vand.u32 %v1639, 4294901760
    %2559 = vmatprep.subr.mxu0 %v2558
    %v2560 = vand.u32 %v1638, 4294901760
    %2561 = vmatpush1.msra.mxu0 %v2560
    %v2562 = vand.u32 %v1636, 4294901760
    %2563 = vmatprep.subr.mxu0 %v2562
    %v2564 = vand.u32 %v1635, 4294901760
    %2565 = vmatpush1.msra.mxu0 %v2564
    %v2566 = vand.u32 %v1633, 4294901760
    %2567 = vmatprep.subr.mxu0 %v2566
    %v2568 = vand.u32 %v1632, 4294901760
    %2569 = vmatpush1.msra.mxu0 %v2568
    %v2570 = vand.u32 %v1630, 4294901760
    %2571 = vmatprep.subr.mxu0 %v2570
    %v2572 = vand.u32 %v1629, 4294901760
    %2573 = vmatpush1.msra.mxu0 %v2572
    %v2574 = vand.u32 %v1627, 4294901760
    %2575 = vmatprep.subr.mxu0 %v2574
    %v2576 = vand.u32 %v1626, 4294901760
    %2577 = vmatpush1.msra.mxu0 %v2576
    %v2578 = vand.u32 %v1624, 4294901760
    %2579 = vmatprep.subr.mxu0 %v2578
    %v2580 = vand.u32 %v1623, 4294901760
    %2581 = vmatpush1.msra.mxu0 %v2580
    %v2582 = vand.u32 %v1621, 4294901760
    %2583 = vmatprep.subr.mxu0 %v2582
    %v2584 = vand.u32 %v1620, 4294901760
    %2585 = vmatpush1.msra.mxu0 %v2584
    %v2586 = vand.u32 %v1714, 4294901760
    %2587 = vmatprep.subr.mxu0 %v2586
    %v2588 = vand.u32 %v1713, 4294901760
    %2589 = vmatpush2.msra.mxu0 %v2588
    %v2590 = vand.u32 %v1711, 4294901760
    %2591 = vmatprep.subr.mxu0 %v2590
    %v2592 = vand.u32 %v1710, 4294901760
    %2593 = vmatpush2.msra.mxu0 %v2592
    %v2594 = vand.u32 %v1708, 4294901760
    %2595 = vmatprep.subr.mxu0 %v2594
    %v2596 = vand.u32 %v1707, 4294901760
    %2597 = vmatpush2.msra.mxu0 %v2596
    %v2598 = vand.u32 %v1705, 4294901760
    %2599 = vmatprep.subr.mxu0 %v2598
    %v2600 = vand.u32 %v1704, 4294901760
    %2601 = vmatpush2.msra.mxu0 %v2600
    %v2602 = vand.u32 %v1702, 4294901760
    %2603 = vmatprep.subr.mxu0 %v2602
    %v2604 = vand.u32 %v1701, 4294901760
    %2605 = vmatpush2.msra.mxu0 %v2604
    %v2606 = vand.u32 %v1699, 4294901760
    %2607 = vmatprep.subr.mxu0 %v2606
    %v2608 = vand.u32 %v1698, 4294901760
    %2609 = vmatpush2.msra.mxu0 %v2608
    %v2610 = vand.u32 %v1696, 4294901760
    %2611 = vmatprep.subr.mxu0 %v2610
    %v2612 = vand.u32 %v1695, 4294901760
    %2613 = vmatpush2.msra.mxu0 %v2612
    %v2614 = vand.u32 %v1693, 4294901760
    %2615 = vmatprep.subr.mxu0 %v2614
    %v2616 = vand.u32 %v1692, 4294901760
    %2617 = vmatpush2.msra.mxu0 %v2616
    %v2618 = vand.u32 %v1690, 4294901760
    %2619 = vmatprep.subr.mxu0 %v2618
    %v2620 = vand.u32 %v1689, 4294901760
    %2621 = vmatpush2.msra.mxu0 %v2620
    %v2622 = vand.u32 %v1687, 4294901760
    %2623 = vmatprep.subr.mxu0 %v2622
    %v2624 = vand.u32 %v1686, 4294901760
    %2625 = vmatpush2.msra.mxu0 %v2624
    %v2626 = vand.u32 %v1684, 4294901760
    %2627 = vmatprep.subr.mxu0 %v2626
    %v2628 = vand.u32 %v1683, 4294901760
    %2629 = vmatpush2.msra.mxu0 %v2628
    %v2630 = vand.u32 %v1681, 4294901760
    %2631 = vmatprep.subr.mxu0 %v2630
    %v2632 = vand.u32 %v1680, 4294901760
    %2633 = vmatpush2.msra.mxu0 %v2632
    %v2634 = vand.u32 %v1678, 4294901760
    %2635 = vmatprep.subr.mxu0 %v2634
    %v2636 = vand.u32 %v1677, 4294901760
    %2637 = vmatpush2.msra.mxu0 %v2636
    %v2638 = vand.u32 %v1675, 4294901760
    %2639 = vmatprep.subr.mxu0 %v2638
    %v2640 = vand.u32 %v1674, 4294901760
    %2641 = vmatpush2.msra.mxu0 %v2640
    %v2642 = vand.u32 %v1672, 4294901760
    %2643 = vmatprep.subr.mxu0 %v2642
    %v2644 = vand.u32 %v1671, 4294901760
    %2645 = vmatpush2.msra.mxu0 %v2644
    %v2646 = vand.u32 %v1669, 4294901760
    %2647 = vmatprep.subr.mxu0 %v2646
    %v2648 = vand.u32 %v1668, 4294901760
    %2649 = vmatpush2.msra.mxu0 %v2648
    %v2650 = vand.u32 %v108, 4294901760
    %v2651 = vsub.f32 %v108, %v2650
    %v2652 = vand.u32 %v2651, 4294901760
    %2653 = vmatprep.mubr.f32.mxu0 %v2652
    %v2654 = vand.u32 %v104, 4294901760
    %v2655 = vsub.f32 %v104, %v2654
    %v2656 = vand.u32 %v2655, 4294901760
    %2657 = vmatmul.mubr.f32.gmra.mxu0 %v2656
    %v2658 = vpop.f32.mrf.mxu0
    %v2659 = vadd.f32 %v2518, %v2658
    %v2660 = vpop.f32.mrf.mxu0
    %v2661 = vadd.f32 %v2520, %v2660
    %2662 = vdwg.mxu0
    %v2663 = vand.u32 %v1666, 4294901760
    %v2664 = vsub.f32 %v1666, %v2663
    %v2665 = vand.u32 %v2664, 4294901760
    %2666 = vmatprep.subr.mxu0 %v2665
    %v2667 = vand.u32 %v1665, 4294901760
    %v2668 = vsub.f32 %v1665, %v2667
    %v2669 = vand.u32 %v2668, 4294901760
    %2670 = vmatpush1.msra.mxu0 %v2669
    %v2671 = vand.u32 %v1663, 4294901760
    %v2672 = vsub.f32 %v1663, %v2671
    %v2673 = vand.u32 %v2672, 4294901760
    %2674 = vmatprep.subr.mxu0 %v2673
    %v2675 = vand.u32 %v1662, 4294901760
    %v2676 = vsub.f32 %v1662, %v2675
    %v2677 = vand.u32 %v2676, 4294901760
    %2678 = vmatpush1.msra.mxu0 %v2677
    %v2679 = vand.u32 %v1660, 4294901760
    %v2680 = vsub.f32 %v1660, %v2679
    %v2681 = vand.u32 %v2680, 4294901760
    %2682 = vmatprep.subr.mxu0 %v2681
    %v2683 = vand.u32 %v1659, 4294901760
    %v2684 = vsub.f32 %v1659, %v2683
    %v2685 = vand.u32 %v2684, 4294901760
    %2686 = vmatpush1.msra.mxu0 %v2685
    %v2687 = vand.u32 %v1657, 4294901760
    %v2688 = vsub.f32 %v1657, %v2687
    %v2689 = vand.u32 %v2688, 4294901760
    %2690 = vmatprep.subr.mxu0 %v2689
    %v2691 = vand.u32 %v1656, 4294901760
    %v2692 = vsub.f32 %v1656, %v2691
    %v2693 = vand.u32 %v2692, 4294901760
    %2694 = vmatpush1.msra.mxu0 %v2693
    %v2695 = vand.u32 %v1654, 4294901760
    %v2696 = vsub.f32 %v1654, %v2695
    %v2697 = vand.u32 %v2696, 4294901760
    %2698 = vmatprep.subr.mxu0 %v2697
    %v2699 = vand.u32 %v1653, 4294901760
    %v2700 = vsub.f32 %v1653, %v2699
    %v2701 = vand.u32 %v2700, 4294901760
    %2702 = vmatpush1.msra.mxu0 %v2701
    %v2703 = vand.u32 %v1651, 4294901760
    %v2704 = vsub.f32 %v1651, %v2703
    %v2705 = vand.u32 %v2704, 4294901760
    %2706 = vmatprep.subr.mxu0 %v2705
    %v2707 = vand.u32 %v1650, 4294901760
    %v2708 = vsub.f32 %v1650, %v2707
    %v2709 = vand.u32 %v2708, 4294901760
    %2710 = vmatpush1.msra.mxu0 %v2709
    %v2711 = vand.u32 %v1648, 4294901760
    %v2712 = vsub.f32 %v1648, %v2711
    %v2713 = vand.u32 %v2712, 4294901760
    %2714 = vmatprep.subr.mxu0 %v2713
    %v2715 = vand.u32 %v1647, 4294901760
    %v2716 = vsub.f32 %v1647, %v2715
    %v2717 = vand.u32 %v2716, 4294901760
    %2718 = vmatpush1.msra.mxu0 %v2717
    %v2719 = vand.u32 %v1645, 4294901760
    %v2720 = vsub.f32 %v1645, %v2719
    %v2721 = vand.u32 %v2720, 4294901760
    %2722 = vmatprep.subr.mxu0 %v2721
    %v2723 = vand.u32 %v1644, 4294901760
    %v2724 = vsub.f32 %v1644, %v2723
    %v2725 = vand.u32 %v2724, 4294901760
    %2726 = vmatpush1.msra.mxu0 %v2725
    %v2727 = vand.u32 %v1642, 4294901760
    %v2728 = vsub.f32 %v1642, %v2727
    %v2729 = vand.u32 %v2728, 4294901760
    %2730 = vmatprep.subr.mxu0 %v2729
    %v2731 = vand.u32 %v1641, 4294901760
    %v2732 = vsub.f32 %v1641, %v2731
    %v2733 = vand.u32 %v2732, 4294901760
    %2734 = vmatpush1.msra.mxu0 %v2733
    %v2735 = vand.u32 %v1639, 4294901760
    %v2736 = vsub.f32 %v1639, %v2735
    %v2737 = vand.u32 %v2736, 4294901760
    %2738 = vmatprep.subr.mxu0 %v2737
    %v2739 = vand.u32 %v1638, 4294901760
    %v2740 = vsub.f32 %v1638, %v2739
    %v2741 = vand.u32 %v2740, 4294901760
    %2742 = vmatpush1.msra.mxu0 %v2741
    %v2743 = vand.u32 %v1636, 4294901760
    %v2744 = vsub.f32 %v1636, %v2743
    %v2745 = vand.u32 %v2744, 4294901760
    %2746 = vmatprep.subr.mxu0 %v2745
    %v2747 = vand.u32 %v1635, 4294901760
    %v2748 = vsub.f32 %v1635, %v2747
    %v2749 = vand.u32 %v2748, 4294901760
    %2750 = vmatpush1.msra.mxu0 %v2749
    %v2751 = vand.u32 %v1633, 4294901760
    %v2752 = vsub.f32 %v1633, %v2751
    %v2753 = vand.u32 %v2752, 4294901760
    %2754 = vmatprep.subr.mxu0 %v2753
    %v2755 = vand.u32 %v1632, 4294901760
    %v2756 = vsub.f32 %v1632, %v2755
    %v2757 = vand.u32 %v2756, 4294901760
    %2758 = vmatpush1.msra.mxu0 %v2757
    %v2759 = vand.u32 %v1630, 4294901760
    %v2760 = vsub.f32 %v1630, %v2759
    %v2761 = vand.u32 %v2760, 4294901760
    %2762 = vmatprep.subr.mxu0 %v2761
    %v2763 = vand.u32 %v1629, 4294901760
    %v2764 = vsub.f32 %v1629, %v2763
    %v2765 = vand.u32 %v2764, 4294901760
    %2766 = vmatpush1.msra.mxu0 %v2765
    %v2767 = vand.u32 %v1627, 4294901760
    %v2768 = vsub.f32 %v1627, %v2767
    %v2769 = vand.u32 %v2768, 4294901760
    %2770 = vmatprep.subr.mxu0 %v2769
    %v2771 = vand.u32 %v1626, 4294901760
    %v2772 = vsub.f32 %v1626, %v2771
    %v2773 = vand.u32 %v2772, 4294901760
    %2774 = vmatpush1.msra.mxu0 %v2773
    %v2775 = vand.u32 %v1624, 4294901760
    %v2776 = vsub.f32 %v1624, %v2775
    %v2777 = vand.u32 %v2776, 4294901760
    %2778 = vmatprep.subr.mxu0 %v2777
    %v2779 = vand.u32 %v1623, 4294901760
    %v2780 = vsub.f32 %v1623, %v2779
    %v2781 = vand.u32 %v2780, 4294901760
    %2782 = vmatpush1.msra.mxu0 %v2781
    %v2783 = vand.u32 %v1621, 4294901760
    %v2784 = vsub.f32 %v1621, %v2783
    %v2785 = vand.u32 %v2784, 4294901760
    %2786 = vmatprep.subr.mxu0 %v2785
    %v2787 = vand.u32 %v1620, 4294901760
    %v2788 = vsub.f32 %v1620, %v2787
    %v2789 = vand.u32 %v2788, 4294901760
    %2790 = vmatpush1.msra.mxu0 %v2789
    %v2791 = vand.u32 %v1714, 4294901760
    %v2792 = vsub.f32 %v1714, %v2791
    %v2793 = vand.u32 %v2792, 4294901760
    %2794 = vmatprep.subr.mxu0 %v2793
    %v2795 = vand.u32 %v1713, 4294901760
    %v2796 = vsub.f32 %v1713, %v2795
    %v2797 = vand.u32 %v2796, 4294901760
    %2798 = vmatpush2.msra.mxu0 %v2797
    %v2799 = vand.u32 %v1711, 4294901760
    %v2800 = vsub.f32 %v1711, %v2799
    %v2801 = vand.u32 %v2800, 4294901760
    %2802 = vmatprep.subr.mxu0 %v2801
    %v2803 = vand.u32 %v1710, 4294901760
    %v2804 = vsub.f32 %v1710, %v2803
    %v2805 = vand.u32 %v2804, 4294901760
    %2806 = vmatpush2.msra.mxu0 %v2805
    %v2807 = vand.u32 %v1708, 4294901760
    %v2808 = vsub.f32 %v1708, %v2807
    %v2809 = vand.u32 %v2808, 4294901760
    %2810 = vmatprep.subr.mxu0 %v2809
    %v2811 = vand.u32 %v1707, 4294901760
    %v2812 = vsub.f32 %v1707, %v2811
    %v2813 = vand.u32 %v2812, 4294901760
    %2814 = vmatpush2.msra.mxu0 %v2813
    %v2815 = vand.u32 %v1705, 4294901760
    %v2816 = vsub.f32 %v1705, %v2815
    %v2817 = vand.u32 %v2816, 4294901760
    %2818 = vmatprep.subr.mxu0 %v2817
    %v2819 = vand.u32 %v1704, 4294901760
    %v2820 = vsub.f32 %v1704, %v2819
    %v2821 = vand.u32 %v2820, 4294901760
    %2822 = vmatpush2.msra.mxu0 %v2821
    %v2823 = vand.u32 %v1702, 4294901760
    %v2824 = vsub.f32 %v1702, %v2823
    %v2825 = vand.u32 %v2824, 4294901760
    %2826 = vmatprep.subr.mxu0 %v2825
    %v2827 = vand.u32 %v1701, 4294901760
    %v2828 = vsub.f32 %v1701, %v2827
    %v2829 = vand.u32 %v2828, 4294901760
    %2830 = vmatpush2.msra.mxu0 %v2829
    %v2831 = vand.u32 %v1699, 4294901760
    %v2832 = vsub.f32 %v1699, %v2831
    %v2833 = vand.u32 %v2832, 4294901760
    %2834 = vmatprep.subr.mxu0 %v2833
    %v2835 = vand.u32 %v1698, 4294901760
    %v2836 = vsub.f32 %v1698, %v2835
    %v2837 = vand.u32 %v2836, 4294901760
    %2838 = vmatpush2.msra.mxu0 %v2837
    %v2839 = vand.u32 %v1696, 4294901760
    %v2840 = vsub.f32 %v1696, %v2839
    %v2841 = vand.u32 %v2840, 4294901760
    %2842 = vmatprep.subr.mxu0 %v2841
    %v2843 = vand.u32 %v1695, 4294901760
    %v2844 = vsub.f32 %v1695, %v2843
    %v2845 = vand.u32 %v2844, 4294901760
    %2846 = vmatpush2.msra.mxu0 %v2845
    %v2847 = vand.u32 %v1693, 4294901760
    %v2848 = vsub.f32 %v1693, %v2847
    %v2849 = vand.u32 %v2848, 4294901760
    %2850 = vmatprep.subr.mxu0 %v2849
    %v2851 = vand.u32 %v1692, 4294901760
    %v2852 = vsub.f32 %v1692, %v2851
    %v2853 = vand.u32 %v2852, 4294901760
    %2854 = vmatpush2.msra.mxu0 %v2853
    %v2855 = vand.u32 %v1690, 4294901760
    %v2856 = vsub.f32 %v1690, %v2855
    %v2857 = vand.u32 %v2856, 4294901760
    %2858 = vmatprep.subr.mxu0 %v2857
    %v2859 = vand.u32 %v1689, 4294901760
    %v2860 = vsub.f32 %v1689, %v2859
    %v2861 = vand.u32 %v2860, 4294901760
    %2862 = vmatpush2.msra.mxu0 %v2861
    %v2863 = vand.u32 %v1687, 4294901760
    %v2864 = vsub.f32 %v1687, %v2863
    %v2865 = vand.u32 %v2864, 4294901760
    %2866 = vmatprep.subr.mxu0 %v2865
    %v2867 = vand.u32 %v1686, 4294901760
    %v2868 = vsub.f32 %v1686, %v2867
    %v2869 = vand.u32 %v2868, 4294901760
    %2870 = vmatpush2.msra.mxu0 %v2869
    %v2871 = vand.u32 %v1684, 4294901760
    %v2872 = vsub.f32 %v1684, %v2871
    %v2873 = vand.u32 %v2872, 4294901760
    %2874 = vmatprep.subr.mxu0 %v2873
    %v2875 = vand.u32 %v1683, 4294901760
    %v2876 = vsub.f32 %v1683, %v2875
    %v2877 = vand.u32 %v2876, 4294901760
    %2878 = vmatpush2.msra.mxu0 %v2877
    %v2879 = vand.u32 %v1681, 4294901760
    %v2880 = vsub.f32 %v1681, %v2879
    %v2881 = vand.u32 %v2880, 4294901760
    %2882 = vmatprep.subr.mxu0 %v2881
    %v2883 = vand.u32 %v1680, 4294901760
    %v2884 = vsub.f32 %v1680, %v2883
    %v2885 = vand.u32 %v2884, 4294901760
    %2886 = vmatpush2.msra.mxu0 %v2885
    %v2887 = vand.u32 %v1678, 4294901760
    %v2888 = vsub.f32 %v1678, %v2887
    %v2889 = vand.u32 %v2888, 4294901760
    %2890 = vmatprep.subr.mxu0 %v2889
    %v2891 = vand.u32 %v1677, 4294901760
    %v2892 = vsub.f32 %v1677, %v2891
    %v2893 = vand.u32 %v2892, 4294901760
    %2894 = vmatpush2.msra.mxu0 %v2893
    %v2895 = vand.u32 %v1675, 4294901760
    %v2896 = vsub.f32 %v1675, %v2895
    %v2897 = vand.u32 %v2896, 4294901760
    %2898 = vmatprep.subr.mxu0 %v2897
    %v2899 = vand.u32 %v1674, 4294901760
    %v2900 = vsub.f32 %v1674, %v2899
    %v2901 = vand.u32 %v2900, 4294901760
    %2902 = vmatpush2.msra.mxu0 %v2901
    %v2903 = vand.u32 %v1672, 4294901760
    %v2904 = vsub.f32 %v1672, %v2903
    %v2905 = vand.u32 %v2904, 4294901760
    %2906 = vmatprep.subr.mxu0 %v2905
    %v2907 = vand.u32 %v1671, 4294901760
    %v2908 = vsub.f32 %v1671, %v2907
    %v2909 = vand.u32 %v2908, 4294901760
    %2910 = vmatpush2.msra.mxu0 %v2909
    %v2911 = vand.u32 %v1669, 4294901760
    %v2912 = vsub.f32 %v1669, %v2911
    %v2913 = vand.u32 %v2912, 4294901760
    %2914 = vmatprep.subr.mxu0 %v2913
    %v2915 = vand.u32 %v1668, 4294901760
    %v2916 = vsub.f32 %v1668, %v2915
    %v2917 = vand.u32 %v2916, 4294901760
    %2918 = vmatpush2.msra.mxu0 %v2917
    %v2919 = vand.u32 %v108, 4294901760
    %2920 = vmatprep.mubr.f32.mxu0 %v2919
    %v2921 = vand.u32 %v104, 4294901760
    %2922 = vmatmul.mubr.f32.gmra.mxu0 %v2921
    %v2923 = vpop.f32.mrf.mxu0
    %v2924 = vadd.f32 %v2659, %v2923
    %v2925 = vpop.f32.mrf.mxu0
    %v2926 = vadd.f32 %v2661, %v2925
    %2927 = vdwg.mxu0
    %v2928 = vand.u32 %v1666, 4294901760
    %2929 = vmatprep.subr.mxu0 %v2928
    %v2930 = vand.u32 %v1665, 4294901760
    %2931 = vmatpush1.msra.mxu0 %v2930
    %v2932 = vand.u32 %v1663, 4294901760
    %2933 = vmatprep.subr.mxu0 %v2932
    %v2934 = vand.u32 %v1662, 4294901760
    %2935 = vmatpush1.msra.mxu0 %v2934
    %v2936 = vand.u32 %v1660, 4294901760
    %2937 = vmatprep.subr.mxu0 %v2936
    %v2938 = vand.u32 %v1659, 4294901760
    %2939 = vmatpush1.msra.mxu0 %v2938
    %v2940 = vand.u32 %v1657, 4294901760
    %2941 = vmatprep.subr.mxu0 %v2940
    %v2942 = vand.u32 %v1656, 4294901760
    %2943 = vmatpush1.msra.mxu0 %v2942
    %v2944 = vand.u32 %v1654, 4294901760
    %2945 = vmatprep.subr.mxu0 %v2944
    %v2946 = vand.u32 %v1653, 4294901760
    %2947 = vmatpush1.msra.mxu0 %v2946
    %v2948 = vand.u32 %v1651, 4294901760
    %2949 = vmatprep.subr.mxu0 %v2948
    %v2950 = vand.u32 %v1650, 4294901760
    %2951 = vmatpush1.msra.mxu0 %v2950
    %v2952 = vand.u32 %v1648, 4294901760
    %2953 = vmatprep.subr.mxu0 %v2952
    %v2954 = vand.u32 %v1647, 4294901760
    %2955 = vmatpush1.msra.mxu0 %v2954
    %v2956 = vand.u32 %v1645, 4294901760
    %2957 = vmatprep.subr.mxu0 %v2956
    %v2958 = vand.u32 %v1644, 4294901760
    %2959 = vmatpush1.msra.mxu0 %v2958
    %v2960 = vand.u32 %v1642, 4294901760
    %2961 = vmatprep.subr.mxu0 %v2960
    %v2962 = vand.u32 %v1641, 4294901760
    %2963 = vmatpush1.msra.mxu0 %v2962
    %v2964 = vand.u32 %v1639, 4294901760
    %2965 = vmatprep.subr.mxu0 %v2964
    %v2966 = vand.u32 %v1638, 4294901760
    %2967 = vmatpush1.msra.mxu0 %v2966
    %v2968 = vand.u32 %v1636, 4294901760
    %2969 = vmatprep.subr.mxu0 %v2968
    %v2970 = vand.u32 %v1635, 4294901760
    %2971 = vmatpush1.msra.mxu0 %v2970
    %v2972 = vand.u32 %v1633, 4294901760
    %2973 = vmatprep.subr.mxu0 %v2972
    %v2974 = vand.u32 %v1632, 4294901760
    %2975 = vmatpush1.msra.mxu0 %v2974
    %v2976 = vand.u32 %v1630, 4294901760
    %2977 = vmatprep.subr.mxu0 %v2976
    %v2978 = vand.u32 %v1629, 4294901760
    %2979 = vmatpush1.msra.mxu0 %v2978
    %v2980 = vand.u32 %v1627, 4294901760
    %2981 = vmatprep.subr.mxu0 %v2980
    %v2982 = vand.u32 %v1626, 4294901760
    %2983 = vmatpush1.msra.mxu0 %v2982
    %v2984 = vand.u32 %v1624, 4294901760
    %2985 = vmatprep.subr.mxu0 %v2984
    %v2986 = vand.u32 %v1623, 4294901760
    %2987 = vmatpush1.msra.mxu0 %v2986
    %v2988 = vand.u32 %v1621, 4294901760
    %2989 = vmatprep.subr.mxu0 %v2988
    %v2990 = vand.u32 %v1620, 4294901760
    %2991 = vmatpush1.msra.mxu0 %v2990
    %v2992 = vand.u32 %v1714, 4294901760
    %2993 = vmatprep.subr.mxu0 %v2992
    %v2994 = vand.u32 %v1713, 4294901760
    %2995 = vmatpush2.msra.mxu0 %v2994
    %v2996 = vand.u32 %v1711, 4294901760
    %2997 = vmatprep.subr.mxu0 %v2996
    %v2998 = vand.u32 %v1710, 4294901760
    %2999 = vmatpush2.msra.mxu0 %v2998
    %v3000 = vand.u32 %v1708, 4294901760
    %3001 = vmatprep.subr.mxu0 %v3000
    %v3002 = vand.u32 %v1707, 4294901760
    %3003 = vmatpush2.msra.mxu0 %v3002
    %v3004 = vand.u32 %v1705, 4294901760
    %3005 = vmatprep.subr.mxu0 %v3004
    %v3006 = vand.u32 %v1704, 4294901760
    %3007 = vmatpush2.msra.mxu0 %v3006
    %v3008 = vand.u32 %v1702, 4294901760
    %3009 = vmatprep.subr.mxu0 %v3008
    %v3010 = vand.u32 %v1701, 4294901760
    %3011 = vmatpush2.msra.mxu0 %v3010
    %v3012 = vand.u32 %v1699, 4294901760
    %3013 = vmatprep.subr.mxu0 %v3012
    %v3014 = vand.u32 %v1698, 4294901760
    %3015 = vmatpush2.msra.mxu0 %v3014
    %v3016 = vand.u32 %v1696, 4294901760
    %3017 = vmatprep.subr.mxu0 %v3016
    %v3018 = vand.u32 %v1695, 4294901760
    %3019 = vmatpush2.msra.mxu0 %v3018
    %v3020 = vand.u32 %v1693, 4294901760
    %3021 = vmatprep.subr.mxu0 %v3020
    %v3022 = vand.u32 %v1692, 4294901760
    %3023 = vmatpush2.msra.mxu0 %v3022
    %v3024 = vand.u32 %v1690, 4294901760
    %3025 = vmatprep.subr.mxu0 %v3024
    %v3026 = vand.u32 %v1689, 4294901760
    %3027 = vmatpush2.msra.mxu0 %v3026
    %v3028 = vand.u32 %v1687, 4294901760
    %3029 = vmatprep.subr.mxu0 %v3028
    %v3030 = vand.u32 %v1686, 4294901760
    %3031 = vmatpush2.msra.mxu0 %v3030
    %v3032 = vand.u32 %v1684, 4294901760
    %3033 = vmatprep.subr.mxu0 %v3032
    %v3034 = vand.u32 %v1683, 4294901760
    %3035 = vmatpush2.msra.mxu0 %v3034
    %v3036 = vand.u32 %v1681, 4294901760
    %3037 = vmatprep.subr.mxu0 %v3036
    %v3038 = vand.u32 %v1680, 4294901760
    %3039 = vmatpush2.msra.mxu0 %v3038
    %v3040 = vand.u32 %v1678, 4294901760
    %3041 = vmatprep.subr.mxu0 %v3040
    %v3042 = vand.u32 %v1677, 4294901760
    %3043 = vmatpush2.msra.mxu0 %v3042
    %v3044 = vand.u32 %v1675, 4294901760
    %3045 = vmatprep.subr.mxu0 %v3044
    %v3046 = vand.u32 %v1674, 4294901760
    %3047 = vmatpush2.msra.mxu0 %v3046
    %v3048 = vand.u32 %v1672, 4294901760
    %3049 = vmatprep.subr.mxu0 %v3048
    %v3050 = vand.u32 %v1671, 4294901760
    %3051 = vmatpush2.msra.mxu0 %v3050
    %v3052 = vand.u32 %v1669, 4294901760
    %3053 = vmatprep.subr.mxu0 %v3052
    %v3054 = vand.u32 %v1668, 4294901760
    %3055 = vmatpush2.msra.mxu0 %v3054
    %v3056 = vand.u32 %v108, 4294901760
    %3057 = vmatprep.mubr.f32.mxu0 %v3056
    %v3058 = vand.u32 %v104, 4294901760
    %3059 = vmatmul.mubr.f32.gmra.mxu0 %v3058
    %v3060 = vpop.f32.mrf.mxu0
    %v3061 = vadd.f32 %v2924, %v3060
    %v3062 = vpop.f32.mrf.mxu0
    %v3063 = vadd.f32 %v2926, %v3062
    %3064 = vdwg.mxu0
    %v3065 = vand.u32 %v1762, 4294901760
    %3066 = vmatprep.subr.mxu0 %v3065
    %v3067 = vand.u32 %v1761, 4294901760
    %3068 = vmatpush1.msra.mxu0 %v3067
    %v3069 = vand.u32 %v1759, 4294901760
    %3070 = vmatprep.subr.mxu0 %v3069
    %v3071 = vand.u32 %v1758, 4294901760
    %3072 = vmatpush1.msra.mxu0 %v3071
    %v3073 = vand.u32 %v1756, 4294901760
    %3074 = vmatprep.subr.mxu0 %v3073
    %v3075 = vand.u32 %v1755, 4294901760
    %3076 = vmatpush1.msra.mxu0 %v3075
    %v3077 = vand.u32 %v1753, 4294901760
    %3078 = vmatprep.subr.mxu0 %v3077
    %v3079 = vand.u32 %v1752, 4294901760
    %3080 = vmatpush1.msra.mxu0 %v3079
    %v3081 = vand.u32 %v1750, 4294901760
    %3082 = vmatprep.subr.mxu0 %v3081
    %v3083 = vand.u32 %v1749, 4294901760
    %3084 = vmatpush1.msra.mxu0 %v3083
    %v3085 = vand.u32 %v1747, 4294901760
    %3086 = vmatprep.subr.mxu0 %v3085
    %v3087 = vand.u32 %v1746, 4294901760
    %3088 = vmatpush1.msra.mxu0 %v3087
    %v3089 = vand.u32 %v1744, 4294901760
    %3090 = vmatprep.subr.mxu0 %v3089
    %v3091 = vand.u32 %v1743, 4294901760
    %3092 = vmatpush1.msra.mxu0 %v3091
    %v3093 = vand.u32 %v1741, 4294901760
    %3094 = vmatprep.subr.mxu0 %v3093
    %v3095 = vand.u32 %v1740, 4294901760
    %3096 = vmatpush1.msra.mxu0 %v3095
    %v3097 = vand.u32 %v1738, 4294901760
    %3098 = vmatprep.subr.mxu0 %v3097
    %v3099 = vand.u32 %v1737, 4294901760
    %3100 = vmatpush1.msra.mxu0 %v3099
    %v3101 = vand.u32 %v1735, 4294901760
    %3102 = vmatprep.subr.mxu0 %v3101
    %v3103 = vand.u32 %v1734, 4294901760
    %3104 = vmatpush1.msra.mxu0 %v3103
    %v3105 = vand.u32 %v1732, 4294901760
    %3106 = vmatprep.subr.mxu0 %v3105
    %v3107 = vand.u32 %v1731, 4294901760
    %3108 = vmatpush1.msra.mxu0 %v3107
    %v3109 = vand.u32 %v1729, 4294901760
    %3110 = vmatprep.subr.mxu0 %v3109
    %v3111 = vand.u32 %v1728, 4294901760
    %3112 = vmatpush1.msra.mxu0 %v3111
    %v3113 = vand.u32 %v1726, 4294901760
    %3114 = vmatprep.subr.mxu0 %v3113
    %v3115 = vand.u32 %v1725, 4294901760
    %3116 = vmatpush1.msra.mxu0 %v3115
    %v3117 = vand.u32 %v1723, 4294901760
    %3118 = vmatprep.subr.mxu0 %v3117
    %v3119 = vand.u32 %v1722, 4294901760
    %3120 = vmatpush1.msra.mxu0 %v3119
    %v3121 = vand.u32 %v1720, 4294901760
    %3122 = vmatprep.subr.mxu0 %v3121
    %v3123 = vand.u32 %v1719, 4294901760
    %3124 = vmatpush1.msra.mxu0 %v3123
    %v3125 = vand.u32 %v1717, 4294901760
    %3126 = vmatprep.subr.mxu0 %v3125
    %v3127 = vand.u32 %v1716, 4294901760
    %3128 = vmatpush1.msra.mxu0 %v3127
    %3129 = vmatprep.subr.mxu0 0.0
    %3130 = vmatpush2.msra.mxu0 0.0
    %3131 = vmatprep.subr.mxu0 0.0
    %3132 = vmatpush2.msra.mxu0 0.0
    %3133 = vmatprep.subr.mxu0 0.0
    %3134 = vmatpush2.msra.mxu0 0.0
    %3135 = vmatprep.subr.mxu0 0.0
    %3136 = vmatpush2.msra.mxu0 0.0
    %3137 = vmatprep.subr.mxu0 0.0
    %3138 = vmatpush2.msra.mxu0 0.0
    %3139 = vmatprep.subr.mxu0 0.0
    %3140 = vmatpush2.msra.mxu0 0.0
    %3141 = vmatprep.subr.mxu0 0.0
    %3142 = vmatpush2.msra.mxu0 0.0
    %3143 = vmatprep.subr.mxu0 0.0
    %3144 = vmatpush2.msra.mxu0 0.0
    %3145 = vmatprep.subr.mxu0 0.0
    %3146 = vmatpush2.msra.mxu0 0.0
    %3147 = vmatprep.subr.mxu0 0.0
    %3148 = vmatpush2.msra.mxu0 0.0
    %3149 = vmatprep.subr.mxu0 0.0
    %3150 = vmatpush2.msra.mxu0 0.0
    %3151 = vmatprep.subr.mxu0 0.0
    %3152 = vmatpush2.msra.mxu0 0.0
    %3153 = vmatprep.subr.mxu0 0.0
    %3154 = vmatpush2.msra.mxu0 0.0
    %3155 = vmatprep.subr.mxu0 0.0
    %3156 = vmatpush2.msra.mxu0 0.0
    %3157 = vmatprep.subr.mxu0 0.0
    %3158 = vmatpush2.msra.mxu0 0.0
    %3159 = vmatprep.subr.mxu0 0.0
    %3160 = vmatpush2.msra.mxu0 0.0
    %3161 = vmatprep.mubr.f32.mxu0 0.0
    %v3162 = vand.u32 %v112, 4294901760
    %v3163 = vsub.f32 %v112, %v3162
    %v3164 = vand.u32 %v3163, 4294901760
    %v3165 = vsub.f32 %v3163, %v3164
    %v3166 = vand.u32 %v3165, 4294901760
    %3167 = vmatmul.mubr.f32.gmra.mxu0 %v3166
    %v3168 = vpop.f32.mrf.mxu0
    %v3169 = vadd.f32 %v3061, %v3168
    %v3170 = vpop.f32.mrf.mxu0
    %v3171 = vadd.f32 %v3063, %v3170
    %3172 = vdwg.mxu0
    %v3173 = vand.u32 %v1762, 4294901760
    %v3174 = vsub.f32 %v1762, %v3173
    %v3175 = vand.u32 %v3174, 4294901760
    %v3176 = vsub.f32 %v3174, %v3175
    %v3177 = vand.u32 %v3176, 4294901760
    %3178 = vmatprep.subr.mxu0 %v3177
    %v3179 = vand.u32 %v1761, 4294901760
    %v3180 = vsub.f32 %v1761, %v3179
    %v3181 = vand.u32 %v3180, 4294901760
    %v3182 = vsub.f32 %v3180, %v3181
    %v3183 = vand.u32 %v3182, 4294901760
    %3184 = vmatpush1.msra.mxu0 %v3183
    %v3185 = vand.u32 %v1759, 4294901760
    %v3186 = vsub.f32 %v1759, %v3185
    %v3187 = vand.u32 %v3186, 4294901760
    %v3188 = vsub.f32 %v3186, %v3187
    %v3189 = vand.u32 %v3188, 4294901760
    %3190 = vmatprep.subr.mxu0 %v3189
    %v3191 = vand.u32 %v1758, 4294901760
    %v3192 = vsub.f32 %v1758, %v3191
    %v3193 = vand.u32 %v3192, 4294901760
    %v3194 = vsub.f32 %v3192, %v3193
    %v3195 = vand.u32 %v3194, 4294901760
    %3196 = vmatpush1.msra.mxu0 %v3195
    %v3197 = vand.u32 %v1756, 4294901760
    %v3198 = vsub.f32 %v1756, %v3197
    %v3199 = vand.u32 %v3198, 4294901760
    %v3200 = vsub.f32 %v3198, %v3199
    %v3201 = vand.u32 %v3200, 4294901760
    %3202 = vmatprep.subr.mxu0 %v3201
    %v3203 = vand.u32 %v1755, 4294901760
    %v3204 = vsub.f32 %v1755, %v3203
    %v3205 = vand.u32 %v3204, 4294901760
    %v3206 = vsub.f32 %v3204, %v3205
    %v3207 = vand.u32 %v3206, 4294901760
    %3208 = vmatpush1.msra.mxu0 %v3207
    %v3209 = vand.u32 %v1753, 4294901760
    %v3210 = vsub.f32 %v1753, %v3209
    %v3211 = vand.u32 %v3210, 4294901760
    %v3212 = vsub.f32 %v3210, %v3211
    %v3213 = vand.u32 %v3212, 4294901760
    %3214 = vmatprep.subr.mxu0 %v3213
    %v3215 = vand.u32 %v1752, 4294901760
    %v3216 = vsub.f32 %v1752, %v3215
    %v3217 = vand.u32 %v3216, 4294901760
    %v3218 = vsub.f32 %v3216, %v3217
    %v3219 = vand.u32 %v3218, 4294901760
    %3220 = vmatpush1.msra.mxu0 %v3219
    %v3221 = vand.u32 %v1750, 4294901760
    %v3222 = vsub.f32 %v1750, %v3221
    %v3223 = vand.u32 %v3222, 4294901760
    %v3224 = vsub.f32 %v3222, %v3223
    %v3225 = vand.u32 %v3224, 4294901760
    %3226 = vmatprep.subr.mxu0 %v3225
    %v3227 = vand.u32 %v1749, 4294901760
    %v3228 = vsub.f32 %v1749, %v3227
    %v3229 = vand.u32 %v3228, 4294901760
    %v3230 = vsub.f32 %v3228, %v3229
    %v3231 = vand.u32 %v3230, 4294901760
    %3232 = vmatpush1.msra.mxu0 %v3231
    %v3233 = vand.u32 %v1747, 4294901760
    %v3234 = vsub.f32 %v1747, %v3233
    %v3235 = vand.u32 %v3234, 4294901760
    %v3236 = vsub.f32 %v3234, %v3235
    %v3237 = vand.u32 %v3236, 4294901760
    %3238 = vmatprep.subr.mxu0 %v3237
    %v3239 = vand.u32 %v1746, 4294901760
    %v3240 = vsub.f32 %v1746, %v3239
    %v3241 = vand.u32 %v3240, 4294901760
    %v3242 = vsub.f32 %v3240, %v3241
    %v3243 = vand.u32 %v3242, 4294901760
    %3244 = vmatpush1.msra.mxu0 %v3243
    %v3245 = vand.u32 %v1744, 4294901760
    %v3246 = vsub.f32 %v1744, %v3245
    %v3247 = vand.u32 %v3246, 4294901760
    %v3248 = vsub.f32 %v3246, %v3247
    %v3249 = vand.u32 %v3248, 4294901760
    %3250 = vmatprep.subr.mxu0 %v3249
    %v3251 = vand.u32 %v1743, 4294901760
    %v3252 = vsub.f32 %v1743, %v3251
    %v3253 = vand.u32 %v3252, 4294901760
    %v3254 = vsub.f32 %v3252, %v3253
    %v3255 = vand.u32 %v3254, 4294901760
    %3256 = vmatpush1.msra.mxu0 %v3255
    %v3257 = vand.u32 %v1741, 4294901760
    %v3258 = vsub.f32 %v1741, %v3257
    %v3259 = vand.u32 %v3258, 4294901760
    %v3260 = vsub.f32 %v3258, %v3259
    %v3261 = vand.u32 %v3260, 4294901760
    %3262 = vmatprep.subr.mxu0 %v3261
    %v3263 = vand.u32 %v1740, 4294901760
    %v3264 = vsub.f32 %v1740, %v3263
    %v3265 = vand.u32 %v3264, 4294901760
    %v3266 = vsub.f32 %v3264, %v3265
    %v3267 = vand.u32 %v3266, 4294901760
    %3268 = vmatpush1.msra.mxu0 %v3267
    %v3269 = vand.u32 %v1738, 4294901760
    %v3270 = vsub.f32 %v1738, %v3269
    %v3271 = vand.u32 %v3270, 4294901760
    %v3272 = vsub.f32 %v3270, %v3271
    %v3273 = vand.u32 %v3272, 4294901760
    %3274 = vmatprep.subr.mxu0 %v3273
    %v3275 = vand.u32 %v1737, 4294901760
    %v3276 = vsub.f32 %v1737, %v3275
    %v3277 = vand.u32 %v3276, 4294901760
    %v3278 = vsub.f32 %v3276, %v3277
    %v3279 = vand.u32 %v3278, 4294901760
    %3280 = vmatpush1.msra.mxu0 %v3279
    %v3281 = vand.u32 %v1735, 4294901760
    %v3282 = vsub.f32 %v1735, %v3281
    %v3283 = vand.u32 %v3282, 4294901760
    %v3284 = vsub.f32 %v3282, %v3283
    %v3285 = vand.u32 %v3284, 4294901760
    %3286 = vmatprep.subr.mxu0 %v3285
    %v3287 = vand.u32 %v1734, 4294901760
    %v3288 = vsub.f32 %v1734, %v3287
    %v3289 = vand.u32 %v3288, 4294901760
    %v3290 = vsub.f32 %v3288, %v3289
    %v3291 = vand.u32 %v3290, 4294901760
    %3292 = vmatpush1.msra.mxu0 %v3291
    %v3293 = vand.u32 %v1732, 4294901760
    %v3294 = vsub.f32 %v1732, %v3293
    %v3295 = vand.u32 %v3294, 4294901760
    %v3296 = vsub.f32 %v3294, %v3295
    %v3297 = vand.u32 %v3296, 4294901760
    %3298 = vmatprep.subr.mxu0 %v3297
    %v3299 = vand.u32 %v1731, 4294901760
    %v3300 = vsub.f32 %v1731, %v3299
    %v3301 = vand.u32 %v3300, 4294901760
    %v3302 = vsub.f32 %v3300, %v3301
    %v3303 = vand.u32 %v3302, 4294901760
    %3304 = vmatpush1.msra.mxu0 %v3303
    %v3305 = vand.u32 %v1729, 4294901760
    %v3306 = vsub.f32 %v1729, %v3305
    %v3307 = vand.u32 %v3306, 4294901760
    %v3308 = vsub.f32 %v3306, %v3307
    %v3309 = vand.u32 %v3308, 4294901760
    %3310 = vmatprep.subr.mxu0 %v3309
    %v3311 = vand.u32 %v1728, 4294901760
    %v3312 = vsub.f32 %v1728, %v3311
    %v3313 = vand.u32 %v3312, 4294901760
    %v3314 = vsub.f32 %v3312, %v3313
    %v3315 = vand.u32 %v3314, 4294901760
    %3316 = vmatpush1.msra.mxu0 %v3315
    %v3317 = vand.u32 %v1726, 4294901760
    %v3318 = vsub.f32 %v1726, %v3317
    %v3319 = vand.u32 %v3318, 4294901760
    %v3320 = vsub.f32 %v3318, %v3319
    %v3321 = vand.u32 %v3320, 4294901760
    %3322 = vmatprep.subr.mxu0 %v3321
    %v3323 = vand.u32 %v1725, 4294901760
    %v3324 = vsub.f32 %v1725, %v3323
    %v3325 = vand.u32 %v3324, 4294901760
    %v3326 = vsub.f32 %v3324, %v3325
    %v3327 = vand.u32 %v3326, 4294901760
    %3328 = vmatpush1.msra.mxu0 %v3327
    %v3329 = vand.u32 %v1723, 4294901760
    %v3330 = vsub.f32 %v1723, %v3329
    %v3331 = vand.u32 %v3330, 4294901760
    %v3332 = vsub.f32 %v3330, %v3331
    %v3333 = vand.u32 %v3332, 4294901760
    %3334 = vmatprep.subr.mxu0 %v3333
    %v3335 = vand.u32 %v1722, 4294901760
    %v3336 = vsub.f32 %v1722, %v3335
    %v3337 = vand.u32 %v3336, 4294901760
    %v3338 = vsub.f32 %v3336, %v3337
    %v3339 = vand.u32 %v3338, 4294901760
    %3340 = vmatpush1.msra.mxu0 %v3339
    %v3341 = vand.u32 %v1720, 4294901760
    %v3342 = vsub.f32 %v1720, %v3341
    %v3343 = vand.u32 %v3342, 4294901760
    %v3344 = vsub.f32 %v3342, %v3343
    %v3345 = vand.u32 %v3344, 4294901760
    %3346 = vmatprep.subr.mxu0 %v3345
    %v3347 = vand.u32 %v1719, 4294901760
    %v3348 = vsub.f32 %v1719, %v3347
    %v3349 = vand.u32 %v3348, 4294901760
    %v3350 = vsub.f32 %v3348, %v3349
    %v3351 = vand.u32 %v3350, 4294901760
    %3352 = vmatpush1.msra.mxu0 %v3351
    %v3353 = vand.u32 %v1717, 4294901760
    %v3354 = vsub.f32 %v1717, %v3353
    %v3355 = vand.u32 %v3354, 4294901760
    %v3356 = vsub.f32 %v3354, %v3355
    %v3357 = vand.u32 %v3356, 4294901760
    %3358 = vmatprep.subr.mxu0 %v3357
    %v3359 = vand.u32 %v1716, 4294901760
    %v3360 = vsub.f32 %v1716, %v3359
    %v3361 = vand.u32 %v3360, 4294901760
    %v3362 = vsub.f32 %v3360, %v3361
    %v3363 = vand.u32 %v3362, 4294901760
    %3364 = vmatpush1.msra.mxu0 %v3363
    %3365 = vmatprep.subr.mxu0 0.0
    %3366 = vmatpush2.msra.mxu0 0.0
    %3367 = vmatprep.subr.mxu0 0.0
    %3368 = vmatpush2.msra.mxu0 0.0
    %3369 = vmatprep.subr.mxu0 0.0
    %3370 = vmatpush2.msra.mxu0 0.0
    %3371 = vmatprep.subr.mxu0 0.0
    %3372 = vmatpush2.msra.mxu0 0.0
    %3373 = vmatprep.subr.mxu0 0.0
    %3374 = vmatpush2.msra.mxu0 0.0
    %3375 = vmatprep.subr.mxu0 0.0
    %3376 = vmatpush2.msra.mxu0 0.0
    %3377 = vmatprep.subr.mxu0 0.0
    %3378 = vmatpush2.msra.mxu0 0.0
    %3379 = vmatprep.subr.mxu0 0.0
    %3380 = vmatpush2.msra.mxu0 0.0
    %3381 = vmatprep.subr.mxu0 0.0
    %3382 = vmatpush2.msra.mxu0 0.0
    %3383 = vmatprep.subr.mxu0 0.0
    %3384 = vmatpush2.msra.mxu0 0.0
    %3385 = vmatprep.subr.mxu0 0.0
    %3386 = vmatpush2.msra.mxu0 0.0
    %3387 = vmatprep.subr.mxu0 0.0
    %3388 = vmatpush2.msra.mxu0 0.0
    %3389 = vmatprep.subr.mxu0 0.0
    %3390 = vmatpush2.msra.mxu0 0.0
    %3391 = vmatprep.subr.mxu0 0.0
    %3392 = vmatpush2.msra.mxu0 0.0
    %3393 = vmatprep.subr.mxu0 0.0
    %3394 = vmatpush2.msra.mxu0 0.0
    %3395 = vmatprep.subr.mxu0 0.0
    %3396 = vmatpush2.msra.mxu0 0.0
    %3397 = vmatprep.mubr.f32.mxu0 0.0
    %v3398 = vand.u32 %v112, 4294901760
    %3399 = vmatmul.mubr.f32.gmra.mxu0 %v3398
    %v3400 = vpop.f32.mrf.mxu0
    %v3401 = vadd.f32 %v3169, %v3400
    %v3402 = vpop.f32.mrf.mxu0
    %v3403 = vadd.f32 %v3171, %v3402
    %3404 = vdwg.mxu0
    %v3405 = vand.u32 %v1762, 4294901760
    %v3406 = vsub.f32 %v1762, %v3405
    %3407 = vmatprep.subr.mxu0 %v3406
    %v3408 = vand.u32 %v1761, 4294901760
    %v3409 = vsub.f32 %v1761, %v3408
    %3410 = vmatpush1.msra.mxu0 %v3409
    %v3411 = vand.u32 %v1759, 4294901760
    %v3412 = vsub.f32 %v1759, %v3411
    %3413 = vmatprep.subr.mxu0 %v3412
    %v3414 = vand.u32 %v1758, 4294901760
    %v3415 = vsub.f32 %v1758, %v3414
    %3416 = vmatpush1.msra.mxu0 %v3415
    %v3417 = vand.u32 %v1756, 4294901760
    %v3418 = vsub.f32 %v1756, %v3417
    %3419 = vmatprep.subr.mxu0 %v3418
    %v3420 = vand.u32 %v1755, 4294901760
    %v3421 = vsub.f32 %v1755, %v3420
    %3422 = vmatpush1.msra.mxu0 %v3421
    %v3423 = vand.u32 %v1753, 4294901760
    %v3424 = vsub.f32 %v1753, %v3423
    %3425 = vmatprep.subr.mxu0 %v3424
    %v3426 = vand.u32 %v1752, 4294901760
    %v3427 = vsub.f32 %v1752, %v3426
    %3428 = vmatpush1.msra.mxu0 %v3427
    %v3429 = vand.u32 %v1750, 4294901760
    %v3430 = vsub.f32 %v1750, %v3429
    %3431 = vmatprep.subr.mxu0 %v3430
    %v3432 = vand.u32 %v1749, 4294901760
    %v3433 = vsub.f32 %v1749, %v3432
    %3434 = vmatpush1.msra.mxu0 %v3433
    %v3435 = vand.u32 %v1747, 4294901760
    %v3436 = vsub.f32 %v1747, %v3435
    %3437 = vmatprep.subr.mxu0 %v3436
    %v3438 = vand.u32 %v1746, 4294901760
    %v3439 = vsub.f32 %v1746, %v3438
    %3440 = vmatpush1.msra.mxu0 %v3439
    %v3441 = vand.u32 %v1744, 4294901760
    %v3442 = vsub.f32 %v1744, %v3441
    %3443 = vmatprep.subr.mxu0 %v3442
    %v3444 = vand.u32 %v1743, 4294901760
    %v3445 = vsub.f32 %v1743, %v3444
    %3446 = vmatpush1.msra.mxu0 %v3445
    %v3447 = vand.u32 %v1741, 4294901760
    %v3448 = vsub.f32 %v1741, %v3447
    %3449 = vmatprep.subr.mxu0 %v3448
    %v3450 = vand.u32 %v1740, 4294901760
    %v3451 = vsub.f32 %v1740, %v3450
    %3452 = vmatpush1.msra.mxu0 %v3451
    %v3453 = vand.u32 %v1738, 4294901760
    %v3454 = vsub.f32 %v1738, %v3453
    %3455 = vmatprep.subr.mxu0 %v3454
    %v3456 = vand.u32 %v1737, 4294901760
    %v3457 = vsub.f32 %v1737, %v3456
    %3458 = vmatpush1.msra.mxu0 %v3457
    %v3459 = vand.u32 %v1735, 4294901760
    %v3460 = vsub.f32 %v1735, %v3459
    %3461 = vmatprep.subr.mxu0 %v3460
    %v3462 = vand.u32 %v1734, 4294901760
    %v3463 = vsub.f32 %v1734, %v3462
    %3464 = vmatpush1.msra.mxu0 %v3463
    %v3465 = vand.u32 %v1732, 4294901760
    %v3466 = vsub.f32 %v1732, %v3465
    %3467 = vmatprep.subr.mxu0 %v3466
    %v3468 = vand.u32 %v1731, 4294901760
    %v3469 = vsub.f32 %v1731, %v3468
    %3470 = vmatpush1.msra.mxu0 %v3469
    %v3471 = vand.u32 %v1729, 4294901760
    %v3472 = vsub.f32 %v1729, %v3471
    %3473 = vmatprep.subr.mxu0 %v3472
    %v3474 = vand.u32 %v1728, 4294901760
    %v3475 = vsub.f32 %v1728, %v3474
    %3476 = vmatpush1.msra.mxu0 %v3475
    %v3477 = vand.u32 %v1726, 4294901760
    %v3478 = vsub.f32 %v1726, %v3477
    %3479 = vmatprep.subr.mxu0 %v3478
    %v3480 = vand.u32 %v1725, 4294901760
    %v3481 = vsub.f32 %v1725, %v3480
    %3482 = vmatpush1.msra.mxu0 %v3481
    %v3483 = vand.u32 %v1723, 4294901760
    %v3484 = vsub.f32 %v1723, %v3483
    %3485 = vmatprep.subr.mxu0 %v3484
    %v3486 = vand.u32 %v1722, 4294901760
    %v3487 = vsub.f32 %v1722, %v3486
    %3488 = vmatpush1.msra.mxu0 %v3487
    %v3489 = vand.u32 %v1720, 4294901760
    %v3490 = vsub.f32 %v1720, %v3489
    %3491 = vmatprep.subr.mxu0 %v3490
    %v3492 = vand.u32 %v1719, 4294901760
    %v3493 = vsub.f32 %v1719, %v3492
    %3494 = vmatpush1.msra.mxu0 %v3493
    %v3495 = vand.u32 %v1717, 4294901760
    %v3496 = vsub.f32 %v1717, %v3495
    %3497 = vmatprep.subr.mxu0 %v3496
    %v3498 = vand.u32 %v1716, 4294901760
    %v3499 = vsub.f32 %v1716, %v3498
    %3500 = vmatpush1.msra.mxu0 %v3499
    %3501 = vmatprep.subr.mxu0 0.0
    %3502 = vmatpush2.msra.mxu0 0.0
    %3503 = vmatprep.subr.mxu0 0.0
    %3504 = vmatpush2.msra.mxu0 0.0
    %3505 = vmatprep.subr.mxu0 0.0
    %3506 = vmatpush2.msra.mxu0 0.0
    %3507 = vmatprep.subr.mxu0 0.0
    %3508 = vmatpush2.msra.mxu0 0.0
    %3509 = vmatprep.subr.mxu0 0.0
    %3510 = vmatpush2.msra.mxu0 0.0
    %3511 = vmatprep.subr.mxu0 0.0
    %3512 = vmatpush2.msra.mxu0 0.0
    %3513 = vmatprep.subr.mxu0 0.0
    %3514 = vmatpush2.msra.mxu0 0.0
    %3515 = vmatprep.subr.mxu0 0.0
    %3516 = vmatpush2.msra.mxu0 0.0
    %3517 = vmatprep.subr.mxu0 0.0
    %3518 = vmatpush2.msra.mxu0 0.0
    %3519 = vmatprep.subr.mxu0 0.0
    %3520 = vmatpush2.msra.mxu0 0.0
    %3521 = vmatprep.subr.mxu0 0.0
    %3522 = vmatpush2.msra.mxu0 0.0
    %3523 = vmatprep.subr.mxu0 0.0
    %3524 = vmatpush2.msra.mxu0 0.0
    %3525 = vmatprep.subr.mxu0 0.0
    %3526 = vmatpush2.msra.mxu0 0.0
    %3527 = vmatprep.subr.mxu0 0.0
    %3528 = vmatpush2.msra.mxu0 0.0
    %3529 = vmatprep.subr.mxu0 0.0
    %3530 = vmatpush2.msra.mxu0 0.0
    %3531 = vmatprep.subr.mxu0 0.0
    %3532 = vmatpush2.msra.mxu0 0.0
    %3533 = vmatprep.mubr.f32.mxu0 0.0
    %v3534 = vand.u32 %v112, 4294901760
    %v3535 = vsub.f32 %v112, %v3534
    %3536 = vmatmul.mubr.f32.gmra.mxu0 %v3535
    %v3537 = vpop.f32.mrf.mxu0
    %v3538 = vadd.f32 %v3401, %v3537
    %v3539 = vpop.f32.mrf.mxu0
    %v3540 = vadd.f32 %v3403, %v3539
    %3541 = vdwg.mxu0
    %v3542 = vand.u32 %v1762, 4294901760
    %3543 = vmatprep.subr.mxu0 %v3542
    %v3544 = vand.u32 %v1761, 4294901760
    %3545 = vmatpush1.msra.mxu0 %v3544
    %v3546 = vand.u32 %v1759, 4294901760
    %3547 = vmatprep.subr.mxu0 %v3546
    %v3548 = vand.u32 %v1758, 4294901760
    %3549 = vmatpush1.msra.mxu0 %v3548
    %v3550 = vand.u32 %v1756, 4294901760
    %3551 = vmatprep.subr.mxu0 %v3550
    %v3552 = vand.u32 %v1755, 4294901760
    %3553 = vmatpush1.msra.mxu0 %v3552
    %v3554 = vand.u32 %v1753, 4294901760
    %3555 = vmatprep.subr.mxu0 %v3554
    %v3556 = vand.u32 %v1752, 4294901760
    %3557 = vmatpush1.msra.mxu0 %v3556
    %v3558 = vand.u32 %v1750, 4294901760
    %3559 = vmatprep.subr.mxu0 %v3558
    %v3560 = vand.u32 %v1749, 4294901760
    %3561 = vmatpush1.msra.mxu0 %v3560
    %v3562 = vand.u32 %v1747, 4294901760
    %3563 = vmatprep.subr.mxu0 %v3562
    %v3564 = vand.u32 %v1746, 4294901760
    %3565 = vmatpush1.msra.mxu0 %v3564
    %v3566 = vand.u32 %v1744, 4294901760
    %3567 = vmatprep.subr.mxu0 %v3566
    %v3568 = vand.u32 %v1743, 4294901760
    %3569 = vmatpush1.msra.mxu0 %v3568
    %v3570 = vand.u32 %v1741, 4294901760
    %3571 = vmatprep.subr.mxu0 %v3570
    %v3572 = vand.u32 %v1740, 4294901760
    %3573 = vmatpush1.msra.mxu0 %v3572
    %v3574 = vand.u32 %v1738, 4294901760
    %3575 = vmatprep.subr.mxu0 %v3574
    %v3576 = vand.u32 %v1737, 4294901760
    %3577 = vmatpush1.msra.mxu0 %v3576
    %v3578 = vand.u32 %v1735, 4294901760
    %3579 = vmatprep.subr.mxu0 %v3578
    %v3580 = vand.u32 %v1734, 4294901760
    %3581 = vmatpush1.msra.mxu0 %v3580
    %v3582 = vand.u32 %v1732, 4294901760
    %3583 = vmatprep.subr.mxu0 %v3582
    %v3584 = vand.u32 %v1731, 4294901760
    %3585 = vmatpush1.msra.mxu0 %v3584
    %v3586 = vand.u32 %v1729, 4294901760
    %3587 = vmatprep.subr.mxu0 %v3586
    %v3588 = vand.u32 %v1728, 4294901760
    %3589 = vmatpush1.msra.mxu0 %v3588
    %v3590 = vand.u32 %v1726, 4294901760
    %3591 = vmatprep.subr.mxu0 %v3590
    %v3592 = vand.u32 %v1725, 4294901760
    %3593 = vmatpush1.msra.mxu0 %v3592
    %v3594 = vand.u32 %v1723, 4294901760
    %3595 = vmatprep.subr.mxu0 %v3594
    %v3596 = vand.u32 %v1722, 4294901760
    %3597 = vmatpush1.msra.mxu0 %v3596
    %v3598 = vand.u32 %v1720, 4294901760
    %3599 = vmatprep.subr.mxu0 %v3598
    %v3600 = vand.u32 %v1719, 4294901760
    %3601 = vmatpush1.msra.mxu0 %v3600
    %v3602 = vand.u32 %v1717, 4294901760
    %3603 = vmatprep.subr.mxu0 %v3602
    %v3604 = vand.u32 %v1716, 4294901760
    %3605 = vmatpush1.msra.mxu0 %v3604
    %3606 = vmatprep.subr.mxu0 0.0
    %3607 = vmatpush2.msra.mxu0 0.0
    %3608 = vmatprep.subr.mxu0 0.0
    %3609 = vmatpush2.msra.mxu0 0.0
    %3610 = vmatprep.subr.mxu0 0.0
    %3611 = vmatpush2.msra.mxu0 0.0
    %3612 = vmatprep.subr.mxu0 0.0
    %3613 = vmatpush2.msra.mxu0 0.0
    %3614 = vmatprep.subr.mxu0 0.0
    %3615 = vmatpush2.msra.mxu0 0.0
    %3616 = vmatprep.subr.mxu0 0.0
    %3617 = vmatpush2.msra.mxu0 0.0
    %3618 = vmatprep.subr.mxu0 0.0
    %3619 = vmatpush2.msra.mxu0 0.0
    %3620 = vmatprep.subr.mxu0 0.0
    %3621 = vmatpush2.msra.mxu0 0.0
    %3622 = vmatprep.subr.mxu0 0.0
    %3623 = vmatpush2.msra.mxu0 0.0
    %3624 = vmatprep.subr.mxu0 0.0
    %3625 = vmatpush2.msra.mxu0 0.0
    %3626 = vmatprep.subr.mxu0 0.0
    %3627 = vmatpush2.msra.mxu0 0.0
    %3628 = vmatprep.subr.mxu0 0.0
    %3629 = vmatpush2.msra.mxu0 0.0
    %3630 = vmatprep.subr.mxu0 0.0
    %3631 = vmatpush2.msra.mxu0 0.0
    %3632 = vmatprep.subr.mxu0 0.0
    %3633 = vmatpush2.msra.mxu0 0.0
    %3634 = vmatprep.subr.mxu0 0.0
    %3635 = vmatpush2.msra.mxu0 0.0
    %3636 = vmatprep.subr.mxu0 0.0
    %3637 = vmatpush2.msra.mxu0 0.0
    %3638 = vmatprep.mubr.f32.mxu0 0.0
    %v3639 = vand.u32 %v112, 4294901760
    %v3640 = vsub.f32 %v112, %v3639
    %v3641 = vand.u32 %v3640, 4294901760
    %3642 = vmatmul.mubr.f32.gmra.mxu0 %v3641
    %v3643 = vpop.f32.mrf.mxu0
    %v3644 = vadd.f32 %v3538, %v3643
    %v3645 = vpop.f32.mrf.mxu0
    %v3646 = vadd.f32 %v3540, %v3645
    %3647 = vdwg.mxu0
    %v3648 = vand.u32 %v1762, 4294901760
    %v3649 = vsub.f32 %v1762, %v3648
    %v3650 = vand.u32 %v3649, 4294901760
    %3651 = vmatprep.subr.mxu0 %v3650
    %v3652 = vand.u32 %v1761, 4294901760
    %v3653 = vsub.f32 %v1761, %v3652
    %v3654 = vand.u32 %v3653, 4294901760
    %3655 = vmatpush1.msra.mxu0 %v3654
    %v3656 = vand.u32 %v1759, 4294901760
    %v3657 = vsub.f32 %v1759, %v3656
    %v3658 = vand.u32 %v3657, 4294901760
    %3659 = vmatprep.subr.mxu0 %v3658
    %v3660 = vand.u32 %v1758, 4294901760
    %v3661 = vsub.f32 %v1758, %v3660
    %v3662 = vand.u32 %v3661, 4294901760
    %3663 = vmatpush1.msra.mxu0 %v3662
    %v3664 = vand.u32 %v1756, 4294901760
    %v3665 = vsub.f32 %v1756, %v3664
    %v3666 = vand.u32 %v3665, 4294901760
    %3667 = vmatprep.subr.mxu0 %v3666
    %v3668 = vand.u32 %v1755, 4294901760
    %v3669 = vsub.f32 %v1755, %v3668
    %v3670 = vand.u32 %v3669, 4294901760
    %3671 = vmatpush1.msra.mxu0 %v3670
    %v3672 = vand.u32 %v1753, 4294901760
    %v3673 = vsub.f32 %v1753, %v3672
    %v3674 = vand.u32 %v3673, 4294901760
    %3675 = vmatprep.subr.mxu0 %v3674
    %v3676 = vand.u32 %v1752, 4294901760
    %v3677 = vsub.f32 %v1752, %v3676
    %v3678 = vand.u32 %v3677, 4294901760
    %3679 = vmatpush1.msra.mxu0 %v3678
    %v3680 = vand.u32 %v1750, 4294901760
    %v3681 = vsub.f32 %v1750, %v3680
    %v3682 = vand.u32 %v3681, 4294901760
    %3683 = vmatprep.subr.mxu0 %v3682
    %v3684 = vand.u32 %v1749, 4294901760
    %v3685 = vsub.f32 %v1749, %v3684
    %v3686 = vand.u32 %v3685, 4294901760
    %3687 = vmatpush1.msra.mxu0 %v3686
    %v3688 = vand.u32 %v1747, 4294901760
    %v3689 = vsub.f32 %v1747, %v3688
    %v3690 = vand.u32 %v3689, 4294901760
    %3691 = vmatprep.subr.mxu0 %v3690
    %v3692 = vand.u32 %v1746, 4294901760
    %v3693 = vsub.f32 %v1746, %v3692
    %v3694 = vand.u32 %v3693, 4294901760
    %3695 = vmatpush1.msra.mxu0 %v3694
    %v3696 = vand.u32 %v1744, 4294901760
    %v3697 = vsub.f32 %v1744, %v3696
    %v3698 = vand.u32 %v3697, 4294901760
    %3699 = vmatprep.subr.mxu0 %v3698
    %v3700 = vand.u32 %v1743, 4294901760
    %v3701 = vsub.f32 %v1743, %v3700
    %v3702 = vand.u32 %v3701, 4294901760
    %3703 = vmatpush1.msra.mxu0 %v3702
    %v3704 = vand.u32 %v1741, 4294901760
    %v3705 = vsub.f32 %v1741, %v3704
    %v3706 = vand.u32 %v3705, 4294901760
    %3707 = vmatprep.subr.mxu0 %v3706
    %v3708 = vand.u32 %v1740, 4294901760
    %v3709 = vsub.f32 %v1740, %v3708
    %v3710 = vand.u32 %v3709, 4294901760
    %3711 = vmatpush1.msra.mxu0 %v3710
    %v3712 = vand.u32 %v1738, 4294901760
    %v3713 = vsub.f32 %v1738, %v3712
    %v3714 = vand.u32 %v3713, 4294901760
    %3715 = vmatprep.subr.mxu0 %v3714
    %v3716 = vand.u32 %v1737, 4294901760
    %v3717 = vsub.f32 %v1737, %v3716
    %v3718 = vand.u32 %v3717, 4294901760
    %3719 = vmatpush1.msra.mxu0 %v3718
    %v3720 = vand.u32 %v1735, 4294901760
    %v3721 = vsub.f32 %v1735, %v3720
    %v3722 = vand.u32 %v3721, 4294901760
    %3723 = vmatprep.subr.mxu0 %v3722
    %v3724 = vand.u32 %v1734, 4294901760
    %v3725 = vsub.f32 %v1734, %v3724
    %v3726 = vand.u32 %v3725, 4294901760
    %3727 = vmatpush1.msra.mxu0 %v3726
    %v3728 = vand.u32 %v1732, 4294901760
    %v3729 = vsub.f32 %v1732, %v3728
    %v3730 = vand.u32 %v3729, 4294901760
    %3731 = vmatprep.subr.mxu0 %v3730
    %v3732 = vand.u32 %v1731, 4294901760
    %v3733 = vsub.f32 %v1731, %v3732
    %v3734 = vand.u32 %v3733, 4294901760
    %3735 = vmatpush1.msra.mxu0 %v3734
    %v3736 = vand.u32 %v1729, 4294901760
    %v3737 = vsub.f32 %v1729, %v3736
    %v3738 = vand.u32 %v3737, 4294901760
    %3739 = vmatprep.subr.mxu0 %v3738
    %v3740 = vand.u32 %v1728, 4294901760
    %v3741 = vsub.f32 %v1728, %v3740
    %v3742 = vand.u32 %v3741, 4294901760
    %3743 = vmatpush1.msra.mxu0 %v3742
    %v3744 = vand.u32 %v1726, 4294901760
    %v3745 = vsub.f32 %v1726, %v3744
    %v3746 = vand.u32 %v3745, 4294901760
    %3747 = vmatprep.subr.mxu0 %v3746
    %v3748 = vand.u32 %v1725, 4294901760
    %v3749 = vsub.f32 %v1725, %v3748
    %v3750 = vand.u32 %v3749, 4294901760
    %3751 = vmatpush1.msra.mxu0 %v3750
    %v3752 = vand.u32 %v1723, 4294901760
    %v3753 = vsub.f32 %v1723, %v3752
    %v3754 = vand.u32 %v3753, 4294901760
    %3755 = vmatprep.subr.mxu0 %v3754
    %v3756 = vand.u32 %v1722, 4294901760
    %v3757 = vsub.f32 %v1722, %v3756
    %v3758 = vand.u32 %v3757, 4294901760
    %3759 = vmatpush1.msra.mxu0 %v3758
    %v3760 = vand.u32 %v1720, 4294901760
    %v3761 = vsub.f32 %v1720, %v3760
    %v3762 = vand.u32 %v3761, 4294901760
    %3763 = vmatprep.subr.mxu0 %v3762
    %v3764 = vand.u32 %v1719, 4294901760
    %v3765 = vsub.f32 %v1719, %v3764
    %v3766 = vand.u32 %v3765, 4294901760
    %3767 = vmatpush1.msra.mxu0 %v3766
    %v3768 = vand.u32 %v1717, 4294901760
    %v3769 = vsub.f32 %v1717, %v3768
    %v3770 = vand.u32 %v3769, 4294901760
    %3771 = vmatprep.subr.mxu0 %v3770
    %v3772 = vand.u32 %v1716, 4294901760
    %v3773 = vsub.f32 %v1716, %v3772
    %v3774 = vand.u32 %v3773, 4294901760
    %3775 = vmatpush1.msra.mxu0 %v3774
    %3776 = vmatprep.subr.mxu0 0.0
    %3777 = vmatpush2.msra.mxu0 0.0
    %3778 = vmatprep.subr.mxu0 0.0
    %3779 = vmatpush2.msra.mxu0 0.0
    %3780 = vmatprep.subr.mxu0 0.0
    %3781 = vmatpush2.msra.mxu0 0.0
    %3782 = vmatprep.subr.mxu0 0.0
    %3783 = vmatpush2.msra.mxu0 0.0
    %3784 = vmatprep.subr.mxu0 0.0
    %3785 = vmatpush2.msra.mxu0 0.0
    %3786 = vmatprep.subr.mxu0 0.0
    %3787 = vmatpush2.msra.mxu0 0.0
    %3788 = vmatprep.subr.mxu0 0.0
    %3789 = vmatpush2.msra.mxu0 0.0
    %3790 = vmatprep.subr.mxu0 0.0
    %3791 = vmatpush2.msra.mxu0 0.0
    %3792 = vmatprep.subr.mxu0 0.0
    %3793 = vmatpush2.msra.mxu0 0.0
    %3794 = vmatprep.subr.mxu0 0.0
    %3795 = vmatpush2.msra.mxu0 0.0
    %3796 = vmatprep.subr.mxu0 0.0
    %3797 = vmatpush2.msra.mxu0 0.0
    %3798 = vmatprep.subr.mxu0 0.0
    %3799 = vmatpush2.msra.mxu0 0.0
    %3800 = vmatprep.subr.mxu0 0.0
    %3801 = vmatpush2.msra.mxu0 0.0
    %3802 = vmatprep.subr.mxu0 0.0
    %3803 = vmatpush2.msra.mxu0 0.0
    %3804 = vmatprep.subr.mxu0 0.0
    %3805 = vmatpush2.msra.mxu0 0.0
    %3806 = vmatprep.subr.mxu0 0.0
    %3807 = vmatpush2.msra.mxu0 0.0
    %3808 = vmatprep.mubr.f32.mxu0 0.0
    %v3809 = vand.u32 %v112, 4294901760
    %3810 = vmatmul.mubr.f32.gmra.mxu0 %v3809
    %v3811 = vpop.f32.mrf.mxu0
    %v3812 = vadd.f32 %v3644, %v3811
    %v3813 = vpop.f32.mrf.mxu0
    %v3814 = vadd.f32 %v3646, %v3813
    %3815 = vdwg.mxu0
    %v3816 = vand.u32 %v1762, 4294901760
    %3817 = vmatprep.subr.mxu0 %v3816
    %v3818 = vand.u32 %v1761, 4294901760
    %3819 = vmatpush1.msra.mxu0 %v3818
    %v3820 = vand.u32 %v1759, 4294901760
    %3821 = vmatprep.subr.mxu0 %v3820
    %v3822 = vand.u32 %v1758, 4294901760
    %3823 = vmatpush1.msra.mxu0 %v3822
    %v3824 = vand.u32 %v1756, 4294901760
    %3825 = vmatprep.subr.mxu0 %v3824
    %v3826 = vand.u32 %v1755, 4294901760
    %3827 = vmatpush1.msra.mxu0 %v3826
    %v3828 = vand.u32 %v1753, 4294901760
    %3829 = vmatprep.subr.mxu0 %v3828
    %v3830 = vand.u32 %v1752, 4294901760
    %3831 = vmatpush1.msra.mxu0 %v3830
    %v3832 = vand.u32 %v1750, 4294901760
    %3833 = vmatprep.subr.mxu0 %v3832
    %v3834 = vand.u32 %v1749, 4294901760
    %3835 = vmatpush1.msra.mxu0 %v3834
    %v3836 = vand.u32 %v1747, 4294901760
    %3837 = vmatprep.subr.mxu0 %v3836
    %v3838 = vand.u32 %v1746, 4294901760
    %3839 = vmatpush1.msra.mxu0 %v3838
    %v3840 = vand.u32 %v1744, 4294901760
    %3841 = vmatprep.subr.mxu0 %v3840
    %v3842 = vand.u32 %v1743, 4294901760
    %3843 = vmatpush1.msra.mxu0 %v3842
    %v3844 = vand.u32 %v1741, 4294901760
    %3845 = vmatprep.subr.mxu0 %v3844
    %v3846 = vand.u32 %v1740, 4294901760
    %3847 = vmatpush1.msra.mxu0 %v3846
    %v3848 = vand.u32 %v1738, 4294901760
    %3849 = vmatprep.subr.mxu0 %v3848
    %v3850 = vand.u32 %v1737, 4294901760
    %3851 = vmatpush1.msra.mxu0 %v3850
    %v3852 = vand.u32 %v1735, 4294901760
    %3853 = vmatprep.subr.mxu0 %v3852
    %v3854 = vand.u32 %v1734, 4294901760
    %3855 = vmatpush1.msra.mxu0 %v3854
    %v3856 = vand.u32 %v1732, 4294901760
    %3857 = vmatprep.subr.mxu0 %v3856
    %v3858 = vand.u32 %v1731, 4294901760
    %3859 = vmatpush1.msra.mxu0 %v3858
    %v3860 = vand.u32 %v1729, 4294901760
    %3861 = vmatprep.subr.mxu0 %v3860
    %v3862 = vand.u32 %v1728, 4294901760
    %3863 = vmatpush1.msra.mxu0 %v3862
    %v3864 = vand.u32 %v1726, 4294901760
    %3865 = vmatprep.subr.mxu0 %v3864
    %v3866 = vand.u32 %v1725, 4294901760
    %3867 = vmatpush1.msra.mxu0 %v3866
    %v3868 = vand.u32 %v1723, 4294901760
    %3869 = vmatprep.subr.mxu0 %v3868
    %v3870 = vand.u32 %v1722, 4294901760
    %3871 = vmatpush1.msra.mxu0 %v3870
    %v3872 = vand.u32 %v1720, 4294901760
    %3873 = vmatprep.subr.mxu0 %v3872
    %v3874 = vand.u32 %v1719, 4294901760
    %3875 = vmatpush1.msra.mxu0 %v3874
    %v3876 = vand.u32 %v1717, 4294901760
    %3877 = vmatprep.subr.mxu0 %v3876
    %v3878 = vand.u32 %v1716, 4294901760
    %3879 = vmatpush1.msra.mxu0 %v3878
    %3880 = vmatprep.subr.mxu0 0.0
    %3881 = vmatpush2.msra.mxu0 0.0
    %3882 = vmatprep.subr.mxu0 0.0
    %3883 = vmatpush2.msra.mxu0 0.0
    %3884 = vmatprep.subr.mxu0 0.0
    %3885 = vmatpush2.msra.mxu0 0.0
    %3886 = vmatprep.subr.mxu0 0.0
    %3887 = vmatpush2.msra.mxu0 0.0
    %3888 = vmatprep.subr.mxu0 0.0
    %3889 = vmatpush2.msra.mxu0 0.0
    %3890 = vmatprep.subr.mxu0 0.0
    %3891 = vmatpush2.msra.mxu0 0.0
    %3892 = vmatprep.subr.mxu0 0.0
    %3893 = vmatpush2.msra.mxu0 0.0
    %3894 = vmatprep.subr.mxu0 0.0
    %3895 = vmatpush2.msra.mxu0 0.0
    %3896 = vmatprep.subr.mxu0 0.0
    %3897 = vmatpush2.msra.mxu0 0.0
    %3898 = vmatprep.subr.mxu0 0.0
    %3899 = vmatpush2.msra.mxu0 0.0
    %3900 = vmatprep.subr.mxu0 0.0
    %3901 = vmatpush2.msra.mxu0 0.0
    %3902 = vmatprep.subr.mxu0 0.0
    %3903 = vmatpush2.msra.mxu0 0.0
    %3904 = vmatprep.subr.mxu0 0.0
    %3905 = vmatpush2.msra.mxu0 0.0
    %3906 = vmatprep.subr.mxu0 0.0
    %3907 = vmatpush2.msra.mxu0 0.0
    %3908 = vmatprep.subr.mxu0 0.0
    %3909 = vmatpush2.msra.mxu0 0.0
    %3910 = vmatprep.subr.mxu0 0.0
    %3911 = vmatpush2.msra.mxu0 0.0
    %3912 = vmatprep.mubr.f32.mxu0 0.0
    %v3913 = vand.u32 %v112, 4294901760
    %3914 = vmatmul.mubr.f32.gmra.mxu0 %v3913
    %v3915 = vpop.f32.mrf.mxu0
    %v3916 = vadd.f32 %v3812, %v3915
    %v3917 = vpop.f32.mrf.mxu0
    %v3918 = vadd.f32 %v3814, %v3917
    %3919 = vdwg.mxu0
    %3920 = vmatprep.subr.mxu0 0.0
    %v3921 = vand.u32 %v1667, 4294901760
    %3922 = vmatpush1.msra.mxu0 %v3921
    %3923 = vmatprep.subr.mxu0 0.0
    %v3924 = vand.u32 %v1664, 4294901760
    %3925 = vmatpush1.msra.mxu0 %v3924
    %3926 = vmatprep.subr.mxu0 0.0
    %v3927 = vand.u32 %v1661, 4294901760
    %3928 = vmatpush1.msra.mxu0 %v3927
    %3929 = vmatprep.subr.mxu0 0.0
    %v3930 = vand.u32 %v1658, 4294901760
    %3931 = vmatpush1.msra.mxu0 %v3930
    %3932 = vmatprep.subr.mxu0 0.0
    %v3933 = vand.u32 %v1655, 4294901760
    %3934 = vmatpush1.msra.mxu0 %v3933
    %3935 = vmatprep.subr.mxu0 0.0
    %v3936 = vand.u32 %v1652, 4294901760
    %3937 = vmatpush1.msra.mxu0 %v3936
    %3938 = vmatprep.subr.mxu0 0.0
    %v3939 = vand.u32 %v1649, 4294901760
    %3940 = vmatpush1.msra.mxu0 %v3939
    %3941 = vmatprep.subr.mxu0 0.0
    %v3942 = vand.u32 %v1646, 4294901760
    %3943 = vmatpush1.msra.mxu0 %v3942
    %3944 = vmatprep.subr.mxu0 0.0
    %v3945 = vand.u32 %v1643, 4294901760
    %3946 = vmatpush1.msra.mxu0 %v3945
    %3947 = vmatprep.subr.mxu0 0.0
    %v3948 = vand.u32 %v1640, 4294901760
    %3949 = vmatpush1.msra.mxu0 %v3948
    %3950 = vmatprep.subr.mxu0 0.0
    %v3951 = vand.u32 %v1637, 4294901760
    %3952 = vmatpush1.msra.mxu0 %v3951
    %3953 = vmatprep.subr.mxu0 0.0
    %v3954 = vand.u32 %v1634, 4294901760
    %3955 = vmatpush1.msra.mxu0 %v3954
    %3956 = vmatprep.subr.mxu0 0.0
    %v3957 = vand.u32 %v1631, 4294901760
    %3958 = vmatpush1.msra.mxu0 %v3957
    %3959 = vmatprep.subr.mxu0 0.0
    %v3960 = vand.u32 %v1628, 4294901760
    %3961 = vmatpush1.msra.mxu0 %v3960
    %3962 = vmatprep.subr.mxu0 0.0
    %v3963 = vand.u32 %v1625, 4294901760
    %3964 = vmatpush1.msra.mxu0 %v3963
    %3965 = vmatprep.subr.mxu0 0.0
    %v3966 = vand.u32 %v1622, 4294901760
    %3967 = vmatpush1.msra.mxu0 %v3966
    %3968 = vmatprep.subr.mxu0 0.0
    %v3969 = vand.u32 %v1715, 4294901760
    %3970 = vmatpush2.msra.mxu0 %v3969
    %3971 = vmatprep.subr.mxu0 0.0
    %v3972 = vand.u32 %v1712, 4294901760
    %3973 = vmatpush2.msra.mxu0 %v3972
    %3974 = vmatprep.subr.mxu0 0.0
    %v3975 = vand.u32 %v1709, 4294901760
    %3976 = vmatpush2.msra.mxu0 %v3975
    %3977 = vmatprep.subr.mxu0 0.0
    %v3978 = vand.u32 %v1706, 4294901760
    %3979 = vmatpush2.msra.mxu0 %v3978
    %3980 = vmatprep.subr.mxu0 0.0
    %v3981 = vand.u32 %v1703, 4294901760
    %3982 = vmatpush2.msra.mxu0 %v3981
    %3983 = vmatprep.subr.mxu0 0.0
    %v3984 = vand.u32 %v1700, 4294901760
    %3985 = vmatpush2.msra.mxu0 %v3984
    %3986 = vmatprep.subr.mxu0 0.0
    %v3987 = vand.u32 %v1697, 4294901760
    %3988 = vmatpush2.msra.mxu0 %v3987
    %3989 = vmatprep.subr.mxu0 0.0
    %v3990 = vand.u32 %v1694, 4294901760
    %3991 = vmatpush2.msra.mxu0 %v3990
    %3992 = vmatprep.subr.mxu0 0.0
    %v3993 = vand.u32 %v1691, 4294901760
    %3994 = vmatpush2.msra.mxu0 %v3993
    %3995 = vmatprep.subr.mxu0 0.0
    %v3996 = vand.u32 %v1688, 4294901760
    %3997 = vmatpush2.msra.mxu0 %v3996
    %3998 = vmatprep.subr.mxu0 0.0
    %v3999 = vand.u32 %v1685, 4294901760
    %4000 = vmatpush2.msra.mxu0 %v3999
    %4001 = vmatprep.subr.mxu0 0.0
    %v4002 = vand.u32 %v1682, 4294901760
    %4003 = vmatpush2.msra.mxu0 %v4002
    %4004 = vmatprep.subr.mxu0 0.0
    %v4005 = vand.u32 %v1679, 4294901760
    %4006 = vmatpush2.msra.mxu0 %v4005
    %4007 = vmatprep.subr.mxu0 0.0
    %v4008 = vand.u32 %v1676, 4294901760
    %4009 = vmatpush2.msra.mxu0 %v4008
    %4010 = vmatprep.subr.mxu0 0.0
    %v4011 = vand.u32 %v1673, 4294901760
    %4012 = vmatpush2.msra.mxu0 %v4011
    %4013 = vmatprep.subr.mxu0 0.0
    %v4014 = vand.u32 %v1670, 4294901760
    %4015 = vmatpush2.msra.mxu0 %v4014
    %v4016 = vand.u32 %v108, 4294901760
    %v4017 = vsub.f32 %v108, %v4016
    %v4018 = vand.u32 %v4017, 4294901760
    %v4019 = vsub.f32 %v4017, %v4018
    %v4020 = vand.u32 %v4019, 4294901760
    %4021 = vmatprep.mubr.f32.mxu0 %v4020
    %v4022 = vand.u32 %v104, 4294901760
    %v4023 = vsub.f32 %v104, %v4022
    %v4024 = vand.u32 %v4023, 4294901760
    %v4025 = vsub.f32 %v4023, %v4024
    %v4026 = vand.u32 %v4025, 4294901760
    %4027 = vmatmul.mubr.f32.gmra.mxu0 %v4026
    %v4028 = vpop.f32.mrf.mxu0
    %v4029 = vadd.f32 %v1777, %v4028
    %v4030 = vpop.f32.mrf.mxu0
    %4031 = vdwg.mxu0
    %4032 = vmatprep.subr.mxu0 0.0
    %v4033 = vand.u32 %v1667, 4294901760
    %v4034 = vsub.f32 %v1667, %v4033
    %v4035 = vand.u32 %v4034, 4294901760
    %v4036 = vsub.f32 %v4034, %v4035
    %v4037 = vand.u32 %v4036, 4294901760
    %4038 = vmatpush1.msra.mxu0 %v4037
    %4039 = vmatprep.subr.mxu0 0.0
    %v4040 = vand.u32 %v1664, 4294901760
    %v4041 = vsub.f32 %v1664, %v4040
    %v4042 = vand.u32 %v4041, 4294901760
    %v4043 = vsub.f32 %v4041, %v4042
    %v4044 = vand.u32 %v4043, 4294901760
    %4045 = vmatpush1.msra.mxu0 %v4044
    %4046 = vmatprep.subr.mxu0 0.0
    %v4047 = vand.u32 %v1661, 4294901760
    %v4048 = vsub.f32 %v1661, %v4047
    %v4049 = vand.u32 %v4048, 4294901760
    %v4050 = vsub.f32 %v4048, %v4049
    %v4051 = vand.u32 %v4050, 4294901760
    %4052 = vmatpush1.msra.mxu0 %v4051
    %4053 = vmatprep.subr.mxu0 0.0
    %v4054 = vand.u32 %v1658, 4294901760
    %v4055 = vsub.f32 %v1658, %v4054
    %v4056 = vand.u32 %v4055, 4294901760
    %v4057 = vsub.f32 %v4055, %v4056
    %v4058 = vand.u32 %v4057, 4294901760
    %4059 = vmatpush1.msra.mxu0 %v4058
    %4060 = vmatprep.subr.mxu0 0.0
    %v4061 = vand.u32 %v1655, 4294901760
    %v4062 = vsub.f32 %v1655, %v4061
    %v4063 = vand.u32 %v4062, 4294901760
    %v4064 = vsub.f32 %v4062, %v4063
    %v4065 = vand.u32 %v4064, 4294901760
    %4066 = vmatpush1.msra.mxu0 %v4065
    %4067 = vmatprep.subr.mxu0 0.0
    %v4068 = vand.u32 %v1652, 4294901760
    %v4069 = vsub.f32 %v1652, %v4068
    %v4070 = vand.u32 %v4069, 4294901760
    %v4071 = vsub.f32 %v4069, %v4070
    %v4072 = vand.u32 %v4071, 4294901760
    %4073 = vmatpush1.msra.mxu0 %v4072
    %4074 = vmatprep.subr.mxu0 0.0
    %v4075 = vand.u32 %v1649, 4294901760
    %v4076 = vsub.f32 %v1649, %v4075
    %v4077 = vand.u32 %v4076, 4294901760
    %v4078 = vsub.f32 %v4076, %v4077
    %v4079 = vand.u32 %v4078, 4294901760
    %4080 = vmatpush1.msra.mxu0 %v4079
    %4081 = vmatprep.subr.mxu0 0.0
    %v4082 = vand.u32 %v1646, 4294901760
    %v4083 = vsub.f32 %v1646, %v4082
    %v4084 = vand.u32 %v4083, 4294901760
    %v4085 = vsub.f32 %v4083, %v4084
    %v4086 = vand.u32 %v4085, 4294901760
    %4087 = vmatpush1.msra.mxu0 %v4086
    %4088 = vmatprep.subr.mxu0 0.0
    %v4089 = vand.u32 %v1643, 4294901760
    %v4090 = vsub.f32 %v1643, %v4089
    %v4091 = vand.u32 %v4090, 4294901760
    %v4092 = vsub.f32 %v4090, %v4091
    %v4093 = vand.u32 %v4092, 4294901760
    %4094 = vmatpush1.msra.mxu0 %v4093
    %4095 = vmatprep.subr.mxu0 0.0
    %v4096 = vand.u32 %v1640, 4294901760
    %v4097 = vsub.f32 %v1640, %v4096
    %v4098 = vand.u32 %v4097, 4294901760
    %v4099 = vsub.f32 %v4097, %v4098
    %v4100 = vand.u32 %v4099, 4294901760
    %4101 = vmatpush1.msra.mxu0 %v4100
    %4102 = vmatprep.subr.mxu0 0.0
    %v4103 = vand.u32 %v1637, 4294901760
    %v4104 = vsub.f32 %v1637, %v4103
    %v4105 = vand.u32 %v4104, 4294901760
    %v4106 = vsub.f32 %v4104, %v4105
    %v4107 = vand.u32 %v4106, 4294901760
    %4108 = vmatpush1.msra.mxu0 %v4107
    %4109 = vmatprep.subr.mxu0 0.0
    %v4110 = vand.u32 %v1634, 4294901760
    %v4111 = vsub.f32 %v1634, %v4110
    %v4112 = vand.u32 %v4111, 4294901760
    %v4113 = vsub.f32 %v4111, %v4112
    %v4114 = vand.u32 %v4113, 4294901760
    %4115 = vmatpush1.msra.mxu0 %v4114
    %4116 = vmatprep.subr.mxu0 0.0
    %v4117 = vand.u32 %v1631, 4294901760
    %v4118 = vsub.f32 %v1631, %v4117
    %v4119 = vand.u32 %v4118, 4294901760
    %v4120 = vsub.f32 %v4118, %v4119
    %v4121 = vand.u32 %v4120, 4294901760
    %4122 = vmatpush1.msra.mxu0 %v4121
    %4123 = vmatprep.subr.mxu0 0.0
    %v4124 = vand.u32 %v1628, 4294901760
    %v4125 = vsub.f32 %v1628, %v4124
    %v4126 = vand.u32 %v4125, 4294901760
    %v4127 = vsub.f32 %v4125, %v4126
    %v4128 = vand.u32 %v4127, 4294901760
    %4129 = vmatpush1.msra.mxu0 %v4128
    %4130 = vmatprep.subr.mxu0 0.0
    %v4131 = vand.u32 %v1625, 4294901760
    %v4132 = vsub.f32 %v1625, %v4131
    %v4133 = vand.u32 %v4132, 4294901760
    %v4134 = vsub.f32 %v4132, %v4133
    %v4135 = vand.u32 %v4134, 4294901760
    %4136 = vmatpush1.msra.mxu0 %v4135
    %4137 = vmatprep.subr.mxu0 0.0
    %v4138 = vand.u32 %v1622, 4294901760
    %v4139 = vsub.f32 %v1622, %v4138
    %v4140 = vand.u32 %v4139, 4294901760
    %v4141 = vsub.f32 %v4139, %v4140
    %v4142 = vand.u32 %v4141, 4294901760
    %4143 = vmatpush1.msra.mxu0 %v4142
    %4144 = vmatprep.subr.mxu0 0.0
    %v4145 = vand.u32 %v1715, 4294901760
    %v4146 = vsub.f32 %v1715, %v4145
    %v4147 = vand.u32 %v4146, 4294901760
    %v4148 = vsub.f32 %v4146, %v4147
    %v4149 = vand.u32 %v4148, 4294901760
    %4150 = vmatpush2.msra.mxu0 %v4149
    %4151 = vmatprep.subr.mxu0 0.0
    %v4152 = vand.u32 %v1712, 4294901760
    %v4153 = vsub.f32 %v1712, %v4152
    %v4154 = vand.u32 %v4153, 4294901760
    %v4155 = vsub.f32 %v4153, %v4154
    %v4156 = vand.u32 %v4155, 4294901760
    %4157 = vmatpush2.msra.mxu0 %v4156
    %4158 = vmatprep.subr.mxu0 0.0
    %v4159 = vand.u32 %v1709, 4294901760
    %v4160 = vsub.f32 %v1709, %v4159
    %v4161 = vand.u32 %v4160, 4294901760
    %v4162 = vsub.f32 %v4160, %v4161
    %v4163 = vand.u32 %v4162, 4294901760
    %4164 = vmatpush2.msra.mxu0 %v4163
    %4165 = vmatprep.subr.mxu0 0.0
    %v4166 = vand.u32 %v1706, 4294901760
    %v4167 = vsub.f32 %v1706, %v4166
    %v4168 = vand.u32 %v4167, 4294901760
    %v4169 = vsub.f32 %v4167, %v4168
    %v4170 = vand.u32 %v4169, 4294901760
    %4171 = vmatpush2.msra.mxu0 %v4170
    %4172 = vmatprep.subr.mxu0 0.0
    %v4173 = vand.u32 %v1703, 4294901760
    %v4174 = vsub.f32 %v1703, %v4173
    %v4175 = vand.u32 %v4174, 4294901760
    %v4176 = vsub.f32 %v4174, %v4175
    %v4177 = vand.u32 %v4176, 4294901760
    %4178 = vmatpush2.msra.mxu0 %v4177
    %4179 = vmatprep.subr.mxu0 0.0
    %v4180 = vand.u32 %v1700, 4294901760
    %v4181 = vsub.f32 %v1700, %v4180
    %v4182 = vand.u32 %v4181, 4294901760
    %v4183 = vsub.f32 %v4181, %v4182
    %v4184 = vand.u32 %v4183, 4294901760
    %4185 = vmatpush2.msra.mxu0 %v4184
    %4186 = vmatprep.subr.mxu0 0.0
    %v4187 = vand.u32 %v1697, 4294901760
    %v4188 = vsub.f32 %v1697, %v4187
    %v4189 = vand.u32 %v4188, 4294901760
    %v4190 = vsub.f32 %v4188, %v4189
    %v4191 = vand.u32 %v4190, 4294901760
    %4192 = vmatpush2.msra.mxu0 %v4191
    %4193 = vmatprep.subr.mxu0 0.0
    %v4194 = vand.u32 %v1694, 4294901760
    %v4195 = vsub.f32 %v1694, %v4194
    %v4196 = vand.u32 %v4195, 4294901760
    %v4197 = vsub.f32 %v4195, %v4196
    %v4198 = vand.u32 %v4197, 4294901760
    %4199 = vmatpush2.msra.mxu0 %v4198
    %4200 = vmatprep.subr.mxu0 0.0
    %v4201 = vand.u32 %v1691, 4294901760
    %v4202 = vsub.f32 %v1691, %v4201
    %v4203 = vand.u32 %v4202, 4294901760
    %v4204 = vsub.f32 %v4202, %v4203
    %v4205 = vand.u32 %v4204, 4294901760
    %4206 = vmatpush2.msra.mxu0 %v4205
    %4207 = vmatprep.subr.mxu0 0.0
    %v4208 = vand.u32 %v1688, 4294901760
    %v4209 = vsub.f32 %v1688, %v4208
    %v4210 = vand.u32 %v4209, 4294901760
    %v4211 = vsub.f32 %v4209, %v4210
    %v4212 = vand.u32 %v4211, 4294901760
    %4213 = vmatpush2.msra.mxu0 %v4212
    %4214 = vmatprep.subr.mxu0 0.0
    %v4215 = vand.u32 %v1685, 4294901760
    %v4216 = vsub.f32 %v1685, %v4215
    %v4217 = vand.u32 %v4216, 4294901760
    %v4218 = vsub.f32 %v4216, %v4217
    %v4219 = vand.u32 %v4218, 4294901760
    %4220 = vmatpush2.msra.mxu0 %v4219
    %4221 = vmatprep.subr.mxu0 0.0
    %v4222 = vand.u32 %v1682, 4294901760
    %v4223 = vsub.f32 %v1682, %v4222
    %v4224 = vand.u32 %v4223, 4294901760
    %v4225 = vsub.f32 %v4223, %v4224
    %v4226 = vand.u32 %v4225, 4294901760
    %4227 = vmatpush2.msra.mxu0 %v4226
    %4228 = vmatprep.subr.mxu0 0.0
    %v4229 = vand.u32 %v1679, 4294901760
    %v4230 = vsub.f32 %v1679, %v4229
    %v4231 = vand.u32 %v4230, 4294901760
    %v4232 = vsub.f32 %v4230, %v4231
    %v4233 = vand.u32 %v4232, 4294901760
    %4234 = vmatpush2.msra.mxu0 %v4233
    %4235 = vmatprep.subr.mxu0 0.0
    %v4236 = vand.u32 %v1676, 4294901760
    %v4237 = vsub.f32 %v1676, %v4236
    %v4238 = vand.u32 %v4237, 4294901760
    %v4239 = vsub.f32 %v4237, %v4238
    %v4240 = vand.u32 %v4239, 4294901760
    %4241 = vmatpush2.msra.mxu0 %v4240
    %4242 = vmatprep.subr.mxu0 0.0
    %v4243 = vand.u32 %v1673, 4294901760
    %v4244 = vsub.f32 %v1673, %v4243
    %v4245 = vand.u32 %v4244, 4294901760
    %v4246 = vsub.f32 %v4244, %v4245
    %v4247 = vand.u32 %v4246, 4294901760
    %4248 = vmatpush2.msra.mxu0 %v4247
    %4249 = vmatprep.subr.mxu0 0.0
    %v4250 = vand.u32 %v1670, 4294901760
    %v4251 = vsub.f32 %v1670, %v4250
    %v4252 = vand.u32 %v4251, 4294901760
    %v4253 = vsub.f32 %v4251, %v4252
    %v4254 = vand.u32 %v4253, 4294901760
    %4255 = vmatpush2.msra.mxu0 %v4254
    %v4256 = vand.u32 %v108, 4294901760
    %4257 = vmatprep.mubr.f32.mxu0 %v4256
    %v4258 = vand.u32 %v104, 4294901760
    %4259 = vmatmul.mubr.f32.gmra.mxu0 %v4258
    %v4260 = vpop.f32.mrf.mxu0
    %v4261 = vadd.f32 %v4029, %v4260
    %v4262 = vpop.f32.mrf.mxu0
    %4263 = vdwg.mxu0
    %4264 = vmatprep.subr.mxu0 0.0
    %v4265 = vand.u32 %v1667, 4294901760
    %v4266 = vsub.f32 %v1667, %v4265
    %4267 = vmatpush1.msra.mxu0 %v4266
    %4268 = vmatprep.subr.mxu0 0.0
    %v4269 = vand.u32 %v1664, 4294901760
    %v4270 = vsub.f32 %v1664, %v4269
    %4271 = vmatpush1.msra.mxu0 %v4270
    %4272 = vmatprep.subr.mxu0 0.0
    %v4273 = vand.u32 %v1661, 4294901760
    %v4274 = vsub.f32 %v1661, %v4273
    %4275 = vmatpush1.msra.mxu0 %v4274
    %4276 = vmatprep.subr.mxu0 0.0
    %v4277 = vand.u32 %v1658, 4294901760
    %v4278 = vsub.f32 %v1658, %v4277
    %4279 = vmatpush1.msra.mxu0 %v4278
    %4280 = vmatprep.subr.mxu0 0.0
    %v4281 = vand.u32 %v1655, 4294901760
    %v4282 = vsub.f32 %v1655, %v4281
    %4283 = vmatpush1.msra.mxu0 %v4282
    %4284 = vmatprep.subr.mxu0 0.0
    %v4285 = vand.u32 %v1652, 4294901760
    %v4286 = vsub.f32 %v1652, %v4285
    %4287 = vmatpush1.msra.mxu0 %v4286
    %4288 = vmatprep.subr.mxu0 0.0
    %v4289 = vand.u32 %v1649, 4294901760
    %v4290 = vsub.f32 %v1649, %v4289
    %4291 = vmatpush1.msra.mxu0 %v4290
    %4292 = vmatprep.subr.mxu0 0.0
    %v4293 = vand.u32 %v1646, 4294901760
    %v4294 = vsub.f32 %v1646, %v4293
    %4295 = vmatpush1.msra.mxu0 %v4294
    %4296 = vmatprep.subr.mxu0 0.0
    %v4297 = vand.u32 %v1643, 4294901760
    %v4298 = vsub.f32 %v1643, %v4297
    %4299 = vmatpush1.msra.mxu0 %v4298
    %4300 = vmatprep.subr.mxu0 0.0
    %v4301 = vand.u32 %v1640, 4294901760
    %v4302 = vsub.f32 %v1640, %v4301
    %4303 = vmatpush1.msra.mxu0 %v4302
    %4304 = vmatprep.subr.mxu0 0.0
    %v4305 = vand.u32 %v1637, 4294901760
    %v4306 = vsub.f32 %v1637, %v4305
    %4307 = vmatpush1.msra.mxu0 %v4306
    %4308 = vmatprep.subr.mxu0 0.0
    %v4309 = vand.u32 %v1634, 4294901760
    %v4310 = vsub.f32 %v1634, %v4309
    %4311 = vmatpush1.msra.mxu0 %v4310
    %4312 = vmatprep.subr.mxu0 0.0
    %v4313 = vand.u32 %v1631, 4294901760
    %v4314 = vsub.f32 %v1631, %v4313
    %4315 = vmatpush1.msra.mxu0 %v4314
    %4316 = vmatprep.subr.mxu0 0.0
    %v4317 = vand.u32 %v1628, 4294901760
    %v4318 = vsub.f32 %v1628, %v4317
    %4319 = vmatpush1.msra.mxu0 %v4318
    %4320 = vmatprep.subr.mxu0 0.0
    %v4321 = vand.u32 %v1625, 4294901760
    %v4322 = vsub.f32 %v1625, %v4321
    %4323 = vmatpush1.msra.mxu0 %v4322
    %4324 = vmatprep.subr.mxu0 0.0
    %v4325 = vand.u32 %v1622, 4294901760
    %v4326 = vsub.f32 %v1622, %v4325
    %4327 = vmatpush1.msra.mxu0 %v4326
    %4328 = vmatprep.subr.mxu0 0.0
    %v4329 = vand.u32 %v1715, 4294901760
    %v4330 = vsub.f32 %v1715, %v4329
    %4331 = vmatpush2.msra.mxu0 %v4330
    %4332 = vmatprep.subr.mxu0 0.0
    %v4333 = vand.u32 %v1712, 4294901760
    %v4334 = vsub.f32 %v1712, %v4333
    %4335 = vmatpush2.msra.mxu0 %v4334
    %4336 = vmatprep.subr.mxu0 0.0
    %v4337 = vand.u32 %v1709, 4294901760
    %v4338 = vsub.f32 %v1709, %v4337
    %4339 = vmatpush2.msra.mxu0 %v4338
    %4340 = vmatprep.subr.mxu0 0.0
    %v4341 = vand.u32 %v1706, 4294901760
    %v4342 = vsub.f32 %v1706, %v4341
    %4343 = vmatpush2.msra.mxu0 %v4342
    %4344 = vmatprep.subr.mxu0 0.0
    %v4345 = vand.u32 %v1703, 4294901760
    %v4346 = vsub.f32 %v1703, %v4345
    %4347 = vmatpush2.msra.mxu0 %v4346
    %4348 = vmatprep.subr.mxu0 0.0
    %v4349 = vand.u32 %v1700, 4294901760
    %v4350 = vsub.f32 %v1700, %v4349
    %4351 = vmatpush2.msra.mxu0 %v4350
    %4352 = vmatprep.subr.mxu0 0.0
    %v4353 = vand.u32 %v1697, 4294901760
    %v4354 = vsub.f32 %v1697, %v4353
    %4355 = vmatpush2.msra.mxu0 %v4354
    %4356 = vmatprep.subr.mxu0 0.0
    %v4357 = vand.u32 %v1694, 4294901760
    %v4358 = vsub.f32 %v1694, %v4357
    %4359 = vmatpush2.msra.mxu0 %v4358
    %4360 = vmatprep.subr.mxu0 0.0
    %v4361 = vand.u32 %v1691, 4294901760
    %v4362 = vsub.f32 %v1691, %v4361
    %4363 = vmatpush2.msra.mxu0 %v4362
    %4364 = vmatprep.subr.mxu0 0.0
    %v4365 = vand.u32 %v1688, 4294901760
    %v4366 = vsub.f32 %v1688, %v4365
    %4367 = vmatpush2.msra.mxu0 %v4366
    %4368 = vmatprep.subr.mxu0 0.0
    %v4369 = vand.u32 %v1685, 4294901760
    %v4370 = vsub.f32 %v1685, %v4369
    %4371 = vmatpush2.msra.mxu0 %v4370
    %4372 = vmatprep.subr.mxu0 0.0
    %v4373 = vand.u32 %v1682, 4294901760
    %v4374 = vsub.f32 %v1682, %v4373
    %4375 = vmatpush2.msra.mxu0 %v4374
    %4376 = vmatprep.subr.mxu0 0.0
    %v4377 = vand.u32 %v1679, 4294901760
    %v4378 = vsub.f32 %v1679, %v4377
    %4379 = vmatpush2.msra.mxu0 %v4378
    %4380 = vmatprep.subr.mxu0 0.0
    %v4381 = vand.u32 %v1676, 4294901760
    %v4382 = vsub.f32 %v1676, %v4381
    %4383 = vmatpush2.msra.mxu0 %v4382
    %4384 = vmatprep.subr.mxu0 0.0
    %v4385 = vand.u32 %v1673, 4294901760
    %v4386 = vsub.f32 %v1673, %v4385
    %4387 = vmatpush2.msra.mxu0 %v4386
    %4388 = vmatprep.subr.mxu0 0.0
    %v4389 = vand.u32 %v1670, 4294901760
    %v4390 = vsub.f32 %v1670, %v4389
    %4391 = vmatpush2.msra.mxu0 %v4390
    %v4392 = vand.u32 %v108, 4294901760
    %v4393 = vsub.f32 %v108, %v4392
    %4394 = vmatprep.mubr.f32.mxu0 %v4393
    %v4395 = vand.u32 %v104, 4294901760
    %v4396 = vsub.f32 %v104, %v4395
    %4397 = vmatmul.mubr.f32.gmra.mxu0 %v4396
    %v4398 = vpop.f32.mrf.mxu0
    %v4399 = vadd.f32 %v4261, %v4398
    %v4400 = vpop.f32.mrf.mxu0
    %4401 = vdwg.mxu0
    %4402 = vmatprep.subr.mxu0 0.0
    %v4403 = vand.u32 %v1667, 4294901760
    %4404 = vmatpush1.msra.mxu0 %v4403
    %4405 = vmatprep.subr.mxu0 0.0
    %v4406 = vand.u32 %v1664, 4294901760
    %4407 = vmatpush1.msra.mxu0 %v4406
    %4408 = vmatprep.subr.mxu0 0.0
    %v4409 = vand.u32 %v1661, 4294901760
    %4410 = vmatpush1.msra.mxu0 %v4409
    %4411 = vmatprep.subr.mxu0 0.0
    %v4412 = vand.u32 %v1658, 4294901760
    %4413 = vmatpush1.msra.mxu0 %v4412
    %4414 = vmatprep.subr.mxu0 0.0
    %v4415 = vand.u32 %v1655, 4294901760
    %4416 = vmatpush1.msra.mxu0 %v4415
    %4417 = vmatprep.subr.mxu0 0.0
    %v4418 = vand.u32 %v1652, 4294901760
    %4419 = vmatpush1.msra.mxu0 %v4418
    %4420 = vmatprep.subr.mxu0 0.0
    %v4421 = vand.u32 %v1649, 4294901760
    %4422 = vmatpush1.msra.mxu0 %v4421
    %4423 = vmatprep.subr.mxu0 0.0
    %v4424 = vand.u32 %v1646, 4294901760
    %4425 = vmatpush1.msra.mxu0 %v4424
    %4426 = vmatprep.subr.mxu0 0.0
    %v4427 = vand.u32 %v1643, 4294901760
    %4428 = vmatpush1.msra.mxu0 %v4427
    %4429 = vmatprep.subr.mxu0 0.0
    %v4430 = vand.u32 %v1640, 4294901760
    %4431 = vmatpush1.msra.mxu0 %v4430
    %4432 = vmatprep.subr.mxu0 0.0
    %v4433 = vand.u32 %v1637, 4294901760
    %4434 = vmatpush1.msra.mxu0 %v4433
    %4435 = vmatprep.subr.mxu0 0.0
    %v4436 = vand.u32 %v1634, 4294901760
    %4437 = vmatpush1.msra.mxu0 %v4436
    %4438 = vmatprep.subr.mxu0 0.0
    %v4439 = vand.u32 %v1631, 4294901760
    %4440 = vmatpush1.msra.mxu0 %v4439
    %4441 = vmatprep.subr.mxu0 0.0
    %v4442 = vand.u32 %v1628, 4294901760
    %4443 = vmatpush1.msra.mxu0 %v4442
    %4444 = vmatprep.subr.mxu0 0.0
    %v4445 = vand.u32 %v1625, 4294901760
    %4446 = vmatpush1.msra.mxu0 %v4445
    %4447 = vmatprep.subr.mxu0 0.0
    %v4448 = vand.u32 %v1622, 4294901760
    %4449 = vmatpush1.msra.mxu0 %v4448
    %4450 = vmatprep.subr.mxu0 0.0
    %v4451 = vand.u32 %v1715, 4294901760
    %4452 = vmatpush2.msra.mxu0 %v4451
    %4453 = vmatprep.subr.mxu0 0.0
    %v4454 = vand.u32 %v1712, 4294901760
    %4455 = vmatpush2.msra.mxu0 %v4454
    %4456 = vmatprep.subr.mxu0 0.0
    %v4457 = vand.u32 %v1709, 4294901760
    %4458 = vmatpush2.msra.mxu0 %v4457
    %4459 = vmatprep.subr.mxu0 0.0
    %v4460 = vand.u32 %v1706, 4294901760
    %4461 = vmatpush2.msra.mxu0 %v4460
    %4462 = vmatprep.subr.mxu0 0.0
    %v4463 = vand.u32 %v1703, 4294901760
    %4464 = vmatpush2.msra.mxu0 %v4463
    %4465 = vmatprep.subr.mxu0 0.0
    %v4466 = vand.u32 %v1700, 4294901760
    %4467 = vmatpush2.msra.mxu0 %v4466
    %4468 = vmatprep.subr.mxu0 0.0
    %v4469 = vand.u32 %v1697, 4294901760
    %4470 = vmatpush2.msra.mxu0 %v4469
    %4471 = vmatprep.subr.mxu0 0.0
    %v4472 = vand.u32 %v1694, 4294901760
    %4473 = vmatpush2.msra.mxu0 %v4472
    %4474 = vmatprep.subr.mxu0 0.0
    %v4475 = vand.u32 %v1691, 4294901760
    %4476 = vmatpush2.msra.mxu0 %v4475
    %4477 = vmatprep.subr.mxu0 0.0
    %v4478 = vand.u32 %v1688, 4294901760
    %4479 = vmatpush2.msra.mxu0 %v4478
    %4480 = vmatprep.subr.mxu0 0.0
    %v4481 = vand.u32 %v1685, 4294901760
    %4482 = vmatpush2.msra.mxu0 %v4481
    %4483 = vmatprep.subr.mxu0 0.0
    %v4484 = vand.u32 %v1682, 4294901760
    %4485 = vmatpush2.msra.mxu0 %v4484
    %4486 = vmatprep.subr.mxu0 0.0
    %v4487 = vand.u32 %v1679, 4294901760
    %4488 = vmatpush2.msra.mxu0 %v4487
    %4489 = vmatprep.subr.mxu0 0.0
    %v4490 = vand.u32 %v1676, 4294901760
    %4491 = vmatpush2.msra.mxu0 %v4490
    %4492 = vmatprep.subr.mxu0 0.0
    %v4493 = vand.u32 %v1673, 4294901760
    %4494 = vmatpush2.msra.mxu0 %v4493
    %4495 = vmatprep.subr.mxu0 0.0
    %v4496 = vand.u32 %v1670, 4294901760
    %4497 = vmatpush2.msra.mxu0 %v4496
    %v4498 = vand.u32 %v108, 4294901760
    %v4499 = vsub.f32 %v108, %v4498
    %v4500 = vand.u32 %v4499, 4294901760
    %4501 = vmatprep.mubr.f32.mxu0 %v4500
    %v4502 = vand.u32 %v104, 4294901760
    %v4503 = vsub.f32 %v104, %v4502
    %v4504 = vand.u32 %v4503, 4294901760
    %4505 = vmatmul.mubr.f32.gmra.mxu0 %v4504
    %v4506 = vpop.f32.mrf.mxu0
    %v4507 = vadd.f32 %v4399, %v4506
    %v4508 = vpop.f32.mrf.mxu0
    %4509 = vdwg.mxu0
    %4510 = vmatprep.subr.mxu0 0.0
    %v4511 = vand.u32 %v1667, 4294901760
    %v4512 = vsub.f32 %v1667, %v4511
    %v4513 = vand.u32 %v4512, 4294901760
    %4514 = vmatpush1.msra.mxu0 %v4513
    %4515 = vmatprep.subr.mxu0 0.0
    %v4516 = vand.u32 %v1664, 4294901760
    %v4517 = vsub.f32 %v1664, %v4516
    %v4518 = vand.u32 %v4517, 4294901760
    %4519 = vmatpush1.msra.mxu0 %v4518
    %4520 = vmatprep.subr.mxu0 0.0
    %v4521 = vand.u32 %v1661, 4294901760
    %v4522 = vsub.f32 %v1661, %v4521
    %v4523 = vand.u32 %v4522, 4294901760
    %4524 = vmatpush1.msra.mxu0 %v4523
    %4525 = vmatprep.subr.mxu0 0.0
    %v4526 = vand.u32 %v1658, 4294901760
    %v4527 = vsub.f32 %v1658, %v4526
    %v4528 = vand.u32 %v4527, 4294901760
    %4529 = vmatpush1.msra.mxu0 %v4528
    %4530 = vmatprep.subr.mxu0 0.0
    %v4531 = vand.u32 %v1655, 4294901760
    %v4532 = vsub.f32 %v1655, %v4531
    %v4533 = vand.u32 %v4532, 4294901760
    %4534 = vmatpush1.msra.mxu0 %v4533
    %4535 = vmatprep.subr.mxu0 0.0
    %v4536 = vand.u32 %v1652, 4294901760
    %v4537 = vsub.f32 %v1652, %v4536
    %v4538 = vand.u32 %v4537, 4294901760
    %4539 = vmatpush1.msra.mxu0 %v4538
    %4540 = vmatprep.subr.mxu0 0.0
    %v4541 = vand.u32 %v1649, 4294901760
    %v4542 = vsub.f32 %v1649, %v4541
    %v4543 = vand.u32 %v4542, 4294901760
    %4544 = vmatpush1.msra.mxu0 %v4543
    %4545 = vmatprep.subr.mxu0 0.0
    %v4546 = vand.u32 %v1646, 4294901760
    %v4547 = vsub.f32 %v1646, %v4546
    %v4548 = vand.u32 %v4547, 4294901760
    %4549 = vmatpush1.msra.mxu0 %v4548
    %4550 = vmatprep.subr.mxu0 0.0
    %v4551 = vand.u32 %v1643, 4294901760
    %v4552 = vsub.f32 %v1643, %v4551
    %v4553 = vand.u32 %v4552, 4294901760
    %4554 = vmatpush1.msra.mxu0 %v4553
    %4555 = vmatprep.subr.mxu0 0.0
    %v4556 = vand.u32 %v1640, 4294901760
    %v4557 = vsub.f32 %v1640, %v4556
    %v4558 = vand.u32 %v4557, 4294901760
    %4559 = vmatpush1.msra.mxu0 %v4558
    %4560 = vmatprep.subr.mxu0 0.0
    %v4561 = vand.u32 %v1637, 4294901760
    %v4562 = vsub.f32 %v1637, %v4561
    %v4563 = vand.u32 %v4562, 4294901760
    %4564 = vmatpush1.msra.mxu0 %v4563
    %4565 = vmatprep.subr.mxu0 0.0
    %v4566 = vand.u32 %v1634, 4294901760
    %v4567 = vsub.f32 %v1634, %v4566
    %v4568 = vand.u32 %v4567, 4294901760
    %4569 = vmatpush1.msra.mxu0 %v4568
    %4570 = vmatprep.subr.mxu0 0.0
    %v4571 = vand.u32 %v1631, 4294901760
    %v4572 = vsub.f32 %v1631, %v4571
    %v4573 = vand.u32 %v4572, 4294901760
    %4574 = vmatpush1.msra.mxu0 %v4573
    %4575 = vmatprep.subr.mxu0 0.0
    %v4576 = vand.u32 %v1628, 4294901760
    %v4577 = vsub.f32 %v1628, %v4576
    %v4578 = vand.u32 %v4577, 4294901760
    %4579 = vmatpush1.msra.mxu0 %v4578
    %4580 = vmatprep.subr.mxu0 0.0
    %v4581 = vand.u32 %v1625, 4294901760
    %v4582 = vsub.f32 %v1625, %v4581
    %v4583 = vand.u32 %v4582, 4294901760
    %4584 = vmatpush1.msra.mxu0 %v4583
    %4585 = vmatprep.subr.mxu0 0.0
    %v4586 = vand.u32 %v1622, 4294901760
    %v4587 = vsub.f32 %v1622, %v4586
    %v4588 = vand.u32 %v4587, 4294901760
    %4589 = vmatpush1.msra.mxu0 %v4588
    %4590 = vmatprep.subr.mxu0 0.0
    %v4591 = vand.u32 %v1715, 4294901760
    %v4592 = vsub.f32 %v1715, %v4591
    %v4593 = vand.u32 %v4592, 4294901760
    %4594 = vmatpush2.msra.mxu0 %v4593
    %4595 = vmatprep.subr.mxu0 0.0
    %v4596 = vand.u32 %v1712, 4294901760
    %v4597 = vsub.f32 %v1712, %v4596
    %v4598 = vand.u32 %v4597, 4294901760
    %4599 = vmatpush2.msra.mxu0 %v4598
    %4600 = vmatprep.subr.mxu0 0.0
    %v4601 = vand.u32 %v1709, 4294901760
    %v4602 = vsub.f32 %v1709, %v4601
    %v4603 = vand.u32 %v4602, 4294901760
    %4604 = vmatpush2.msra.mxu0 %v4603
    %4605 = vmatprep.subr.mxu0 0.0
    %v4606 = vand.u32 %v1706, 4294901760
    %v4607 = vsub.f32 %v1706, %v4606
    %v4608 = vand.u32 %v4607, 4294901760
    %4609 = vmatpush2.msra.mxu0 %v4608
    %4610 = vmatprep.subr.mxu0 0.0
    %v4611 = vand.u32 %v1703, 4294901760
    %v4612 = vsub.f32 %v1703, %v4611
    %v4613 = vand.u32 %v4612, 4294901760
    %4614 = vmatpush2.msra.mxu0 %v4613
    %4615 = vmatprep.subr.mxu0 0.0
    %v4616 = vand.u32 %v1700, 4294901760
    %v4617 = vsub.f32 %v1700, %v4616
    %v4618 = vand.u32 %v4617, 4294901760
    %4619 = vmatpush2.msra.mxu0 %v4618
    %4620 = vmatprep.subr.mxu0 0.0
    %v4621 = vand.u32 %v1697, 4294901760
    %v4622 = vsub.f32 %v1697, %v4621
    %v4623 = vand.u32 %v4622, 4294901760
    %4624 = vmatpush2.msra.mxu0 %v4623
    %4625 = vmatprep.subr.mxu0 0.0
    %v4626 = vand.u32 %v1694, 4294901760
    %v4627 = vsub.f32 %v1694, %v4626
    %v4628 = vand.u32 %v4627, 4294901760
    %4629 = vmatpush2.msra.mxu0 %v4628
    %4630 = vmatprep.subr.mxu0 0.0
    %v4631 = vand.u32 %v1691, 4294901760
    %v4632 = vsub.f32 %v1691, %v4631
    %v4633 = vand.u32 %v4632, 4294901760
    %4634 = vmatpush2.msra.mxu0 %v4633
    %4635 = vmatprep.subr.mxu0 0.0
    %v4636 = vand.u32 %v1688, 4294901760
    %v4637 = vsub.f32 %v1688, %v4636
    %v4638 = vand.u32 %v4637, 4294901760
    %4639 = vmatpush2.msra.mxu0 %v4638
    %4640 = vmatprep.subr.mxu0 0.0
    %v4641 = vand.u32 %v1685, 4294901760
    %v4642 = vsub.f32 %v1685, %v4641
    %v4643 = vand.u32 %v4642, 4294901760
    %4644 = vmatpush2.msra.mxu0 %v4643
    %4645 = vmatprep.subr.mxu0 0.0
    %v4646 = vand.u32 %v1682, 4294901760
    %v4647 = vsub.f32 %v1682, %v4646
    %v4648 = vand.u32 %v4647, 4294901760
    %4649 = vmatpush2.msra.mxu0 %v4648
    %4650 = vmatprep.subr.mxu0 0.0
    %v4651 = vand.u32 %v1679, 4294901760
    %v4652 = vsub.f32 %v1679, %v4651
    %v4653 = vand.u32 %v4652, 4294901760
    %4654 = vmatpush2.msra.mxu0 %v4653
    %4655 = vmatprep.subr.mxu0 0.0
    %v4656 = vand.u32 %v1676, 4294901760
    %v4657 = vsub.f32 %v1676, %v4656
    %v4658 = vand.u32 %v4657, 4294901760
    %4659 = vmatpush2.msra.mxu0 %v4658
    %4660 = vmatprep.subr.mxu0 0.0
    %v4661 = vand.u32 %v1673, 4294901760
    %v4662 = vsub.f32 %v1673, %v4661
    %v4663 = vand.u32 %v4662, 4294901760
    %4664 = vmatpush2.msra.mxu0 %v4663
    %4665 = vmatprep.subr.mxu0 0.0
    %v4666 = vand.u32 %v1670, 4294901760
    %v4667 = vsub.f32 %v1670, %v4666
    %v4668 = vand.u32 %v4667, 4294901760
    %4669 = vmatpush2.msra.mxu0 %v4668
    %v4670 = vand.u32 %v108, 4294901760
    %4671 = vmatprep.mubr.f32.mxu0 %v4670
    %v4672 = vand.u32 %v104, 4294901760
    %4673 = vmatmul.mubr.f32.gmra.mxu0 %v4672
    %v4674 = vpop.f32.mrf.mxu0
    %v4675 = vadd.f32 %v4507, %v4674
    %v4676 = vpop.f32.mrf.mxu0
    %4677 = vdwg.mxu0
    %4678 = vmatprep.subr.mxu0 0.0
    %v4679 = vand.u32 %v1667, 4294901760
    %4680 = vmatpush1.msra.mxu0 %v4679
    %4681 = vmatprep.subr.mxu0 0.0
    %v4682 = vand.u32 %v1664, 4294901760
    %4683 = vmatpush1.msra.mxu0 %v4682
    %4684 = vmatprep.subr.mxu0 0.0
    %v4685 = vand.u32 %v1661, 4294901760
    %4686 = vmatpush1.msra.mxu0 %v4685
    %4687 = vmatprep.subr.mxu0 0.0
    %v4688 = vand.u32 %v1658, 4294901760
    %4689 = vmatpush1.msra.mxu0 %v4688
    %4690 = vmatprep.subr.mxu0 0.0
    %v4691 = vand.u32 %v1655, 4294901760
    %4692 = vmatpush1.msra.mxu0 %v4691
    %4693 = vmatprep.subr.mxu0 0.0
    %v4694 = vand.u32 %v1652, 4294901760
    %4695 = vmatpush1.msra.mxu0 %v4694
    %4696 = vmatprep.subr.mxu0 0.0
    %v4697 = vand.u32 %v1649, 4294901760
    %4698 = vmatpush1.msra.mxu0 %v4697
    %4699 = vmatprep.subr.mxu0 0.0
    %v4700 = vand.u32 %v1646, 4294901760
    %4701 = vmatpush1.msra.mxu0 %v4700
    %4702 = vmatprep.subr.mxu0 0.0
    %v4703 = vand.u32 %v1643, 4294901760
    %4704 = vmatpush1.msra.mxu0 %v4703
    %4705 = vmatprep.subr.mxu0 0.0
    %v4706 = vand.u32 %v1640, 4294901760
    %4707 = vmatpush1.msra.mxu0 %v4706
    %4708 = vmatprep.subr.mxu0 0.0
    %v4709 = vand.u32 %v1637, 4294901760
    %4710 = vmatpush1.msra.mxu0 %v4709
    %4711 = vmatprep.subr.mxu0 0.0
    %v4712 = vand.u32 %v1634, 4294901760
    %4713 = vmatpush1.msra.mxu0 %v4712
    %4714 = vmatprep.subr.mxu0 0.0
    %v4715 = vand.u32 %v1631, 4294901760
    %4716 = vmatpush1.msra.mxu0 %v4715
    %4717 = vmatprep.subr.mxu0 0.0
    %v4718 = vand.u32 %v1628, 4294901760
    %4719 = vmatpush1.msra.mxu0 %v4718
    %4720 = vmatprep.subr.mxu0 0.0
    %v4721 = vand.u32 %v1625, 4294901760
    %4722 = vmatpush1.msra.mxu0 %v4721
    %4723 = vmatprep.subr.mxu0 0.0
    %v4724 = vand.u32 %v1622, 4294901760
    %4725 = vmatpush1.msra.mxu0 %v4724
    %4726 = vmatprep.subr.mxu0 0.0
    %v4727 = vand.u32 %v1715, 4294901760
    %4728 = vmatpush2.msra.mxu0 %v4727
    %4729 = vmatprep.subr.mxu0 0.0
    %v4730 = vand.u32 %v1712, 4294901760
    %4731 = vmatpush2.msra.mxu0 %v4730
    %4732 = vmatprep.subr.mxu0 0.0
    %v4733 = vand.u32 %v1709, 4294901760
    %4734 = vmatpush2.msra.mxu0 %v4733
    %4735 = vmatprep.subr.mxu0 0.0
    %v4736 = vand.u32 %v1706, 4294901760
    %4737 = vmatpush2.msra.mxu0 %v4736
    %4738 = vmatprep.subr.mxu0 0.0
    %v4739 = vand.u32 %v1703, 4294901760
    %4740 = vmatpush2.msra.mxu0 %v4739
    %4741 = vmatprep.subr.mxu0 0.0
    %v4742 = vand.u32 %v1700, 4294901760
    %4743 = vmatpush2.msra.mxu0 %v4742
    %4744 = vmatprep.subr.mxu0 0.0
    %v4745 = vand.u32 %v1697, 4294901760
    %4746 = vmatpush2.msra.mxu0 %v4745
    %4747 = vmatprep.subr.mxu0 0.0
    %v4748 = vand.u32 %v1694, 4294901760
    %4749 = vmatpush2.msra.mxu0 %v4748
    %4750 = vmatprep.subr.mxu0 0.0
    %v4751 = vand.u32 %v1691, 4294901760
    %4752 = vmatpush2.msra.mxu0 %v4751
    %4753 = vmatprep.subr.mxu0 0.0
    %v4754 = vand.u32 %v1688, 4294901760
    %4755 = vmatpush2.msra.mxu0 %v4754
    %4756 = vmatprep.subr.mxu0 0.0
    %v4757 = vand.u32 %v1685, 4294901760
    %4758 = vmatpush2.msra.mxu0 %v4757
    %4759 = vmatprep.subr.mxu0 0.0
    %v4760 = vand.u32 %v1682, 4294901760
    %4761 = vmatpush2.msra.mxu0 %v4760
    %4762 = vmatprep.subr.mxu0 0.0
    %v4763 = vand.u32 %v1679, 4294901760
    %4764 = vmatpush2.msra.mxu0 %v4763
    %4765 = vmatprep.subr.mxu0 0.0
    %v4766 = vand.u32 %v1676, 4294901760
    %4767 = vmatpush2.msra.mxu0 %v4766
    %4768 = vmatprep.subr.mxu0 0.0
    %v4769 = vand.u32 %v1673, 4294901760
    %4770 = vmatpush2.msra.mxu0 %v4769
    %4771 = vmatprep.subr.mxu0 0.0
    %v4772 = vand.u32 %v1670, 4294901760
    %4773 = vmatpush2.msra.mxu0 %v4772
    %v4774 = vand.u32 %v108, 4294901760
    %4775 = vmatprep.mubr.f32.mxu0 %v4774
    %v4776 = vand.u32 %v104, 4294901760
    %4777 = vmatmul.mubr.f32.gmra.mxu0 %v4776
    %v4778 = vpop.f32.mrf.mxu0
    %v4779 = vadd.f32 %v4675, %v4778
    %v4780 = vpop.f32.mrf.mxu0
    %4781 = vdwg.mxu0
    %4782 = vmatprep.subr.mxu0 0.0
    %v4783 = vand.u32 %v1763, 4294901760
    %4784 = vmatpush1.msra.mxu0 %v4783
    %4785 = vmatprep.subr.mxu0 0.0
    %v4786 = vand.u32 %v1760, 4294901760
    %4787 = vmatpush1.msra.mxu0 %v4786
    %4788 = vmatprep.subr.mxu0 0.0
    %v4789 = vand.u32 %v1757, 4294901760
    %4790 = vmatpush1.msra.mxu0 %v4789
    %4791 = vmatprep.subr.mxu0 0.0
    %v4792 = vand.u32 %v1754, 4294901760
    %4793 = vmatpush1.msra.mxu0 %v4792
    %4794 = vmatprep.subr.mxu0 0.0
    %v4795 = vand.u32 %v1751, 4294901760
    %4796 = vmatpush1.msra.mxu0 %v4795
    %4797 = vmatprep.subr.mxu0 0.0
    %v4798 = vand.u32 %v1748, 4294901760
    %4799 = vmatpush1.msra.mxu0 %v4798
    %4800 = vmatprep.subr.mxu0 0.0
    %v4801 = vand.u32 %v1745, 4294901760
    %4802 = vmatpush1.msra.mxu0 %v4801
    %4803 = vmatprep.subr.mxu0 0.0
    %v4804 = vand.u32 %v1742, 4294901760
    %4805 = vmatpush1.msra.mxu0 %v4804
    %4806 = vmatprep.subr.mxu0 0.0
    %v4807 = vand.u32 %v1739, 4294901760
    %4808 = vmatpush1.msra.mxu0 %v4807
    %4809 = vmatprep.subr.mxu0 0.0
    %v4810 = vand.u32 %v1736, 4294901760
    %4811 = vmatpush1.msra.mxu0 %v4810
    %4812 = vmatprep.subr.mxu0 0.0
    %v4813 = vand.u32 %v1733, 4294901760
    %4814 = vmatpush1.msra.mxu0 %v4813
    %4815 = vmatprep.subr.mxu0 0.0
    %v4816 = vand.u32 %v1730, 4294901760
    %4817 = vmatpush1.msra.mxu0 %v4816
    %4818 = vmatprep.subr.mxu0 0.0
    %v4819 = vand.u32 %v1727, 4294901760
    %4820 = vmatpush1.msra.mxu0 %v4819
    %4821 = vmatprep.subr.mxu0 0.0
    %v4822 = vand.u32 %v1724, 4294901760
    %4823 = vmatpush1.msra.mxu0 %v4822
    %4824 = vmatprep.subr.mxu0 0.0
    %v4825 = vand.u32 %v1721, 4294901760
    %4826 = vmatpush1.msra.mxu0 %v4825
    %4827 = vmatprep.subr.mxu0 0.0
    %v4828 = vand.u32 %v1718, 4294901760
    %4829 = vmatpush1.msra.mxu0 %v4828
    %4830 = vmatprep.subr.mxu0 0.0
    %4831 = vmatpush2.msra.mxu0 0.0
    %4832 = vmatprep.subr.mxu0 0.0
    %4833 = vmatpush2.msra.mxu0 0.0
    %4834 = vmatprep.subr.mxu0 0.0
    %4835 = vmatpush2.msra.mxu0 0.0
    %4836 = vmatprep.subr.mxu0 0.0
    %4837 = vmatpush2.msra.mxu0 0.0
    %4838 = vmatprep.subr.mxu0 0.0
    %4839 = vmatpush2.msra.mxu0 0.0
    %4840 = vmatprep.subr.mxu0 0.0
    %4841 = vmatpush2.msra.mxu0 0.0
    %4842 = vmatprep.subr.mxu0 0.0
    %4843 = vmatpush2.msra.mxu0 0.0
    %4844 = vmatprep.subr.mxu0 0.0
    %4845 = vmatpush2.msra.mxu0 0.0
    %4846 = vmatprep.subr.mxu0 0.0
    %4847 = vmatpush2.msra.mxu0 0.0
    %4848 = vmatprep.subr.mxu0 0.0
    %4849 = vmatpush2.msra.mxu0 0.0
    %4850 = vmatprep.subr.mxu0 0.0
    %4851 = vmatpush2.msra.mxu0 0.0
    %4852 = vmatprep.subr.mxu0 0.0
    %4853 = vmatpush2.msra.mxu0 0.0
    %4854 = vmatprep.subr.mxu0 0.0
    %4855 = vmatpush2.msra.mxu0 0.0
    %4856 = vmatprep.subr.mxu0 0.0
    %4857 = vmatpush2.msra.mxu0 0.0
    %4858 = vmatprep.subr.mxu0 0.0
    %4859 = vmatpush2.msra.mxu0 0.0
    %4860 = vmatprep.subr.mxu0 0.0
    %4861 = vmatpush2.msra.mxu0 0.0
    %4862 = vmatprep.mubr.f32.mxu0 0.0
    %v4863 = vand.u32 %v112, 4294901760
    %v4864 = vsub.f32 %v112, %v4863
    %v4865 = vand.u32 %v4864, 4294901760
    %v4866 = vsub.f32 %v4864, %v4865
    %v4867 = vand.u32 %v4866, 4294901760
    %4868 = vmatmul.mubr.f32.gmra.mxu0 %v4867
    %v4869 = vpop.f32.mrf.mxu0
    %v4870 = vadd.f32 %v4779, %v4869
    %v4871 = vpop.f32.mrf.mxu0
    %4872 = vdwg.mxu0
    %4873 = vmatprep.subr.mxu0 0.0
    %v4874 = vand.u32 %v1763, 4294901760
    %v4875 = vsub.f32 %v1763, %v4874
    %v4876 = vand.u32 %v4875, 4294901760
    %v4877 = vsub.f32 %v4875, %v4876
    %v4878 = vand.u32 %v4877, 4294901760
    %4879 = vmatpush1.msra.mxu0 %v4878
    %4880 = vmatprep.subr.mxu0 0.0
    %v4881 = vand.u32 %v1760, 4294901760
    %v4882 = vsub.f32 %v1760, %v4881
    %v4883 = vand.u32 %v4882, 4294901760
    %v4884 = vsub.f32 %v4882, %v4883
    %v4885 = vand.u32 %v4884, 4294901760
    %4886 = vmatpush1.msra.mxu0 %v4885
    %4887 = vmatprep.subr.mxu0 0.0
    %v4888 = vand.u32 %v1757, 4294901760
    %v4889 = vsub.f32 %v1757, %v4888
    %v4890 = vand.u32 %v4889, 4294901760
    %v4891 = vsub.f32 %v4889, %v4890
    %v4892 = vand.u32 %v4891, 4294901760
    %4893 = vmatpush1.msra.mxu0 %v4892
    %4894 = vmatprep.subr.mxu0 0.0
    %v4895 = vand.u32 %v1754, 4294901760
    %v4896 = vsub.f32 %v1754, %v4895
    %v4897 = vand.u32 %v4896, 4294901760
    %v4898 = vsub.f32 %v4896, %v4897
    %v4899 = vand.u32 %v4898, 4294901760
    %4900 = vmatpush1.msra.mxu0 %v4899
    %4901 = vmatprep.subr.mxu0 0.0
    %v4902 = vand.u32 %v1751, 4294901760
    %v4903 = vsub.f32 %v1751, %v4902
    %v4904 = vand.u32 %v4903, 4294901760
    %v4905 = vsub.f32 %v4903, %v4904
    %v4906 = vand.u32 %v4905, 4294901760
    %4907 = vmatpush1.msra.mxu0 %v4906
    %4908 = vmatprep.subr.mxu0 0.0
    %v4909 = vand.u32 %v1748, 4294901760
    %v4910 = vsub.f32 %v1748, %v4909
    %v4911 = vand.u32 %v4910, 4294901760
    %v4912 = vsub.f32 %v4910, %v4911
    %v4913 = vand.u32 %v4912, 4294901760
    %4914 = vmatpush1.msra.mxu0 %v4913
    %4915 = vmatprep.subr.mxu0 0.0
    %v4916 = vand.u32 %v1745, 4294901760
    %v4917 = vsub.f32 %v1745, %v4916
    %v4918 = vand.u32 %v4917, 4294901760
    %v4919 = vsub.f32 %v4917, %v4918
    %v4920 = vand.u32 %v4919, 4294901760
    %4921 = vmatpush1.msra.mxu0 %v4920
    %4922 = vmatprep.subr.mxu0 0.0
    %v4923 = vand.u32 %v1742, 4294901760
    %v4924 = vsub.f32 %v1742, %v4923
    %v4925 = vand.u32 %v4924, 4294901760
    %v4926 = vsub.f32 %v4924, %v4925
    %v4927 = vand.u32 %v4926, 4294901760
    %4928 = vmatpush1.msra.mxu0 %v4927
    %4929 = vmatprep.subr.mxu0 0.0
    %v4930 = vand.u32 %v1739, 4294901760
    %v4931 = vsub.f32 %v1739, %v4930
    %v4932 = vand.u32 %v4931, 4294901760
    %v4933 = vsub.f32 %v4931, %v4932
    %v4934 = vand.u32 %v4933, 4294901760
    %4935 = vmatpush1.msra.mxu0 %v4934
    %4936 = vmatprep.subr.mxu0 0.0
    %v4937 = vand.u32 %v1736, 4294901760
    %v4938 = vsub.f32 %v1736, %v4937
    %v4939 = vand.u32 %v4938, 4294901760
    %v4940 = vsub.f32 %v4938, %v4939
    %v4941 = vand.u32 %v4940, 4294901760
    %4942 = vmatpush1.msra.mxu0 %v4941
    %4943 = vmatprep.subr.mxu0 0.0
    %v4944 = vand.u32 %v1733, 4294901760
    %v4945 = vsub.f32 %v1733, %v4944
    %v4946 = vand.u32 %v4945, 4294901760
    %v4947 = vsub.f32 %v4945, %v4946
    %v4948 = vand.u32 %v4947, 4294901760
    %4949 = vmatpush1.msra.mxu0 %v4948
    %4950 = vmatprep.subr.mxu0 0.0
    %v4951 = vand.u32 %v1730, 4294901760
    %v4952 = vsub.f32 %v1730, %v4951
    %v4953 = vand.u32 %v4952, 4294901760
    %v4954 = vsub.f32 %v4952, %v4953
    %v4955 = vand.u32 %v4954, 4294901760
    %4956 = vmatpush1.msra.mxu0 %v4955
    %4957 = vmatprep.subr.mxu0 0.0
    %v4958 = vand.u32 %v1727, 4294901760
    %v4959 = vsub.f32 %v1727, %v4958
    %v4960 = vand.u32 %v4959, 4294901760
    %v4961 = vsub.f32 %v4959, %v4960
    %v4962 = vand.u32 %v4961, 4294901760
    %4963 = vmatpush1.msra.mxu0 %v4962
    %4964 = vmatprep.subr.mxu0 0.0
    %v4965 = vand.u32 %v1724, 4294901760
    %v4966 = vsub.f32 %v1724, %v4965
    %v4967 = vand.u32 %v4966, 4294901760
    %v4968 = vsub.f32 %v4966, %v4967
    %v4969 = vand.u32 %v4968, 4294901760
    %4970 = vmatpush1.msra.mxu0 %v4969
    %4971 = vmatprep.subr.mxu0 0.0
    %v4972 = vand.u32 %v1721, 4294901760
    %v4973 = vsub.f32 %v1721, %v4972
    %v4974 = vand.u32 %v4973, 4294901760
    %v4975 = vsub.f32 %v4973, %v4974
    %v4976 = vand.u32 %v4975, 4294901760
    %4977 = vmatpush1.msra.mxu0 %v4976
    %4978 = vmatprep.subr.mxu0 0.0
    %v4979 = vand.u32 %v1718, 4294901760
    %v4980 = vsub.f32 %v1718, %v4979
    %v4981 = vand.u32 %v4980, 4294901760
    %v4982 = vsub.f32 %v4980, %v4981
    %v4983 = vand.u32 %v4982, 4294901760
    %4984 = vmatpush1.msra.mxu0 %v4983
    %4985 = vmatprep.subr.mxu0 0.0
    %4986 = vmatpush2.msra.mxu0 0.0
    %4987 = vmatprep.subr.mxu0 0.0
    %4988 = vmatpush2.msra.mxu0 0.0
    %4989 = vmatprep.subr.mxu0 0.0
    %4990 = vmatpush2.msra.mxu0 0.0
    %4991 = vmatprep.subr.mxu0 0.0
    %4992 = vmatpush2.msra.mxu0 0.0
    %4993 = vmatprep.subr.mxu0 0.0
    %4994 = vmatpush2.msra.mxu0 0.0
    %4995 = vmatprep.subr.mxu0 0.0
    %4996 = vmatpush2.msra.mxu0 0.0
    %4997 = vmatprep.subr.mxu0 0.0
    %4998 = vmatpush2.msra.mxu0 0.0
    %4999 = vmatprep.subr.mxu0 0.0
    %5000 = vmatpush2.msra.mxu0 0.0
    %5001 = vmatprep.subr.mxu0 0.0
    %5002 = vmatpush2.msra.mxu0 0.0
    %5003 = vmatprep.subr.mxu0 0.0
    %5004 = vmatpush2.msra.mxu0 0.0
    %5005 = vmatprep.subr.mxu0 0.0
    %5006 = vmatpush2.msra.mxu0 0.0
    %5007 = vmatprep.subr.mxu0 0.0
    %5008 = vmatpush2.msra.mxu0 0.0
    %5009 = vmatprep.subr.mxu0 0.0
    %5010 = vmatpush2.msra.mxu0 0.0
    %5011 = vmatprep.subr.mxu0 0.0
    %5012 = vmatpush2.msra.mxu0 0.0
    %5013 = vmatprep.subr.mxu0 0.0
    %5014 = vmatpush2.msra.mxu0 0.0
    %5015 = vmatprep.subr.mxu0 0.0
    %5016 = vmatpush2.msra.mxu0 0.0
    %5017 = vmatprep.mubr.f32.mxu0 0.0
    %v5018 = vand.u32 %v112, 4294901760
    %5019 = vmatmul.mubr.f32.gmra.mxu0 %v5018
    %v5020 = vpop.f32.mrf.mxu0
    %v5021 = vadd.f32 %v4870, %v5020
    %v5022 = vpop.f32.mrf.mxu0
    %5023 = vdwg.mxu0
    %5024 = vmatprep.subr.mxu0 0.0
    %v5025 = vand.u32 %v1763, 4294901760
    %v5026 = vsub.f32 %v1763, %v5025
    %5027 = vmatpush1.msra.mxu0 %v5026
    %5028 = vmatprep.subr.mxu0 0.0
    %v5029 = vand.u32 %v1760, 4294901760
    %v5030 = vsub.f32 %v1760, %v5029
    %5031 = vmatpush1.msra.mxu0 %v5030
    %5032 = vmatprep.subr.mxu0 0.0
    %v5033 = vand.u32 %v1757, 4294901760
    %v5034 = vsub.f32 %v1757, %v5033
    %5035 = vmatpush1.msra.mxu0 %v5034
    %5036 = vmatprep.subr.mxu0 0.0
    %v5037 = vand.u32 %v1754, 4294901760
    %v5038 = vsub.f32 %v1754, %v5037
    %5039 = vmatpush1.msra.mxu0 %v5038
    %5040 = vmatprep.subr.mxu0 0.0
    %v5041 = vand.u32 %v1751, 4294901760
    %v5042 = vsub.f32 %v1751, %v5041
    %5043 = vmatpush1.msra.mxu0 %v5042
    %5044 = vmatprep.subr.mxu0 0.0
    %v5045 = vand.u32 %v1748, 4294901760
    %v5046 = vsub.f32 %v1748, %v5045
    %5047 = vmatpush1.msra.mxu0 %v5046
    %5048 = vmatprep.subr.mxu0 0.0
    %v5049 = vand.u32 %v1745, 4294901760
    %v5050 = vsub.f32 %v1745, %v5049
    %5051 = vmatpush1.msra.mxu0 %v5050
    %5052 = vmatprep.subr.mxu0 0.0
    %v5053 = vand.u32 %v1742, 4294901760
    %v5054 = vsub.f32 %v1742, %v5053
    %5055 = vmatpush1.msra.mxu0 %v5054
    %5056 = vmatprep.subr.mxu0 0.0
    %v5057 = vand.u32 %v1739, 4294901760
    %v5058 = vsub.f32 %v1739, %v5057
    %5059 = vmatpush1.msra.mxu0 %v5058
    %5060 = vmatprep.subr.mxu0 0.0
    %v5061 = vand.u32 %v1736, 4294901760
    %v5062 = vsub.f32 %v1736, %v5061
    %5063 = vmatpush1.msra.mxu0 %v5062
    %5064 = vmatprep.subr.mxu0 0.0
    %v5065 = vand.u32 %v1733, 4294901760
    %v5066 = vsub.f32 %v1733, %v5065
    %5067 = vmatpush1.msra.mxu0 %v5066
    %5068 = vmatprep.subr.mxu0 0.0
    %v5069 = vand.u32 %v1730, 4294901760
    %v5070 = vsub.f32 %v1730, %v5069
    %5071 = vmatpush1.msra.mxu0 %v5070
    %5072 = vmatprep.subr.mxu0 0.0
    %v5073 = vand.u32 %v1727, 4294901760
    %v5074 = vsub.f32 %v1727, %v5073
    %5075 = vmatpush1.msra.mxu0 %v5074
    %5076 = vmatprep.subr.mxu0 0.0
    %v5077 = vand.u32 %v1724, 4294901760
    %v5078 = vsub.f32 %v1724, %v5077
    %5079 = vmatpush1.msra.mxu0 %v5078
    %5080 = vmatprep.subr.mxu0 0.0
    %v5081 = vand.u32 %v1721, 4294901760
    %v5082 = vsub.f32 %v1721, %v5081
    %5083 = vmatpush1.msra.mxu0 %v5082
    %5084 = vmatprep.subr.mxu0 0.0
    %v5085 = vand.u32 %v1718, 4294901760
    %v5086 = vsub.f32 %v1718, %v5085
    %5087 = vmatpush1.msra.mxu0 %v5086
    %5088 = vmatprep.subr.mxu0 0.0
    %5089 = vmatpush2.msra.mxu0 0.0
    %5090 = vmatprep.subr.mxu0 0.0
    %5091 = vmatpush2.msra.mxu0 0.0
    %5092 = vmatprep.subr.mxu0 0.0
    %5093 = vmatpush2.msra.mxu0 0.0
    %5094 = vmatprep.subr.mxu0 0.0
    %5095 = vmatpush2.msra.mxu0 0.0
    %5096 = vmatprep.subr.mxu0 0.0
    %5097 = vmatpush2.msra.mxu0 0.0
    %5098 = vmatprep.subr.mxu0 0.0
    %5099 = vmatpush2.msra.mxu0 0.0
    %5100 = vmatprep.subr.mxu0 0.0
    %5101 = vmatpush2.msra.mxu0 0.0
    %5102 = vmatprep.subr.mxu0 0.0
    %5103 = vmatpush2.msra.mxu0 0.0
    %5104 = vmatprep.subr.mxu0 0.0
    %5105 = vmatpush2.msra.mxu0 0.0
    %5106 = vmatprep.subr.mxu0 0.0
    %5107 = vmatpush2.msra.mxu0 0.0
    %5108 = vmatprep.subr.mxu0 0.0
    %5109 = vmatpush2.msra.mxu0 0.0
    %5110 = vmatprep.subr.mxu0 0.0
    %5111 = vmatpush2.msra.mxu0 0.0
    %5112 = vmatprep.subr.mxu0 0.0
    %5113 = vmatpush2.msra.mxu0 0.0
    %5114 = vmatprep.subr.mxu0 0.0
    %5115 = vmatpush2.msra.mxu0 0.0
    %5116 = vmatprep.subr.mxu0 0.0
    %5117 = vmatpush2.msra.mxu0 0.0
    %5118 = vmatprep.subr.mxu0 0.0
    %5119 = vmatpush2.msra.mxu0 0.0
    %5120 = vmatprep.mubr.f32.mxu0 0.0
    %v5121 = vand.u32 %v112, 4294901760
    %v5122 = vsub.f32 %v112, %v5121
    %5123 = vmatmul.mubr.f32.gmra.mxu0 %v5122
    %v5124 = vpop.f32.mrf.mxu0
    %v5125 = vadd.f32 %v5021, %v5124
    %v5126 = vpop.f32.mrf.mxu0
    %5127 = vdwg.mxu0
    %5128 = vmatprep.subr.mxu0 0.0
    %v5129 = vand.u32 %v1763, 4294901760
    %5130 = vmatpush1.msra.mxu0 %v5129
    %5131 = vmatprep.subr.mxu0 0.0
    %v5132 = vand.u32 %v1760, 4294901760
    %5133 = vmatpush1.msra.mxu0 %v5132
    %5134 = vmatprep.subr.mxu0 0.0
    %v5135 = vand.u32 %v1757, 4294901760
    %5136 = vmatpush1.msra.mxu0 %v5135
    %5137 = vmatprep.subr.mxu0 0.0
    %v5138 = vand.u32 %v1754, 4294901760
    %5139 = vmatpush1.msra.mxu0 %v5138
    %5140 = vmatprep.subr.mxu0 0.0
    %v5141 = vand.u32 %v1751, 4294901760
    %5142 = vmatpush1.msra.mxu0 %v5141
    %5143 = vmatprep.subr.mxu0 0.0
    %v5144 = vand.u32 %v1748, 4294901760
    %5145 = vmatpush1.msra.mxu0 %v5144
    %5146 = vmatprep.subr.mxu0 0.0
    %v5147 = vand.u32 %v1745, 4294901760
    %5148 = vmatpush1.msra.mxu0 %v5147
    %5149 = vmatprep.subr.mxu0 0.0
    %v5150 = vand.u32 %v1742, 4294901760
    %5151 = vmatpush1.msra.mxu0 %v5150
    %5152 = vmatprep.subr.mxu0 0.0
    %v5153 = vand.u32 %v1739, 4294901760
    %5154 = vmatpush1.msra.mxu0 %v5153
    %5155 = vmatprep.subr.mxu0 0.0
    %v5156 = vand.u32 %v1736, 4294901760
    %5157 = vmatpush1.msra.mxu0 %v5156
    %5158 = vmatprep.subr.mxu0 0.0
    %v5159 = vand.u32 %v1733, 4294901760
    %5160 = vmatpush1.msra.mxu0 %v5159
    %5161 = vmatprep.subr.mxu0 0.0
    %v5162 = vand.u32 %v1730, 4294901760
    %5163 = vmatpush1.msra.mxu0 %v5162
    %5164 = vmatprep.subr.mxu0 0.0
    %v5165 = vand.u32 %v1727, 4294901760
    %5166 = vmatpush1.msra.mxu0 %v5165
    %5167 = vmatprep.subr.mxu0 0.0
    %v5168 = vand.u32 %v1724, 4294901760
    %5169 = vmatpush1.msra.mxu0 %v5168
    %5170 = vmatprep.subr.mxu0 0.0
    %v5171 = vand.u32 %v1721, 4294901760
    %5172 = vmatpush1.msra.mxu0 %v5171
    %5173 = vmatprep.subr.mxu0 0.0
    %v5174 = vand.u32 %v1718, 4294901760
    %5175 = vmatpush1.msra.mxu0 %v5174
    %5176 = vmatprep.subr.mxu0 0.0
    %5177 = vmatpush2.msra.mxu0 0.0
    %5178 = vmatprep.subr.mxu0 0.0
    %5179 = vmatpush2.msra.mxu0 0.0
    %5180 = vmatprep.subr.mxu0 0.0
    %5181 = vmatpush2.msra.mxu0 0.0
    %5182 = vmatprep.subr.mxu0 0.0
    %5183 = vmatpush2.msra.mxu0 0.0
    %5184 = vmatprep.subr.mxu0 0.0
    %5185 = vmatpush2.msra.mxu0 0.0
    %5186 = vmatprep.subr.mxu0 0.0
    %5187 = vmatpush2.msra.mxu0 0.0
    %5188 = vmatprep.subr.mxu0 0.0
    %5189 = vmatpush2.msra.mxu0 0.0
    %5190 = vmatprep.subr.mxu0 0.0
    %5191 = vmatpush2.msra.mxu0 0.0
    %5192 = vmatprep.subr.mxu0 0.0
    %5193 = vmatpush2.msra.mxu0 0.0
    %5194 = vmatprep.subr.mxu0 0.0
    %5195 = vmatpush2.msra.mxu0 0.0
    %5196 = vmatprep.subr.mxu0 0.0
    %5197 = vmatpush2.msra.mxu0 0.0
    %5198 = vmatprep.subr.mxu0 0.0
    %5199 = vmatpush2.msra.mxu0 0.0
    %5200 = vmatprep.subr.mxu0 0.0
    %5201 = vmatpush2.msra.mxu0 0.0
    %5202 = vmatprep.subr.mxu0 0.0
    %5203 = vmatpush2.msra.mxu0 0.0
    %5204 = vmatprep.subr.mxu0 0.0
    %5205 = vmatpush2.msra.mxu0 0.0
    %5206 = vmatprep.subr.mxu0 0.0
    %5207 = vmatpush2.msra.mxu0 0.0
    %5208 = vmatprep.mubr.f32.mxu0 0.0
    %v5209 = vand.u32 %v112, 4294901760
    %v5210 = vsub.f32 %v112, %v5209
    %v5211 = vand.u32 %v5210, 4294901760
    %5212 = vmatmul.mubr.f32.gmra.mxu0 %v5211
    %v5213 = vpop.f32.mrf.mxu0
    %v5214 = vadd.f32 %v5125, %v5213
    %v5215 = vpop.f32.mrf.mxu0
    %5216 = vdwg.mxu0
    %5217 = vmatprep.subr.mxu0 0.0
    %v5218 = vand.u32 %v1763, 4294901760
    %v5219 = vsub.f32 %v1763, %v5218
    %v5220 = vand.u32 %v5219, 4294901760
    %5221 = vmatpush1.msra.mxu0 %v5220
    %5222 = vmatprep.subr.mxu0 0.0
    %v5223 = vand.u32 %v1760, 4294901760
    %v5224 = vsub.f32 %v1760, %v5223
    %v5225 = vand.u32 %v5224, 4294901760
    %5226 = vmatpush1.msra.mxu0 %v5225
    %5227 = vmatprep.subr.mxu0 0.0
    %v5228 = vand.u32 %v1757, 4294901760
    %v5229 = vsub.f32 %v1757, %v5228
    %v5230 = vand.u32 %v5229, 4294901760
    %5231 = vmatpush1.msra.mxu0 %v5230
    %5232 = vmatprep.subr.mxu0 0.0
    %v5233 = vand.u32 %v1754, 4294901760
    %v5234 = vsub.f32 %v1754, %v5233
    %v5235 = vand.u32 %v5234, 4294901760
    %5236 = vmatpush1.msra.mxu0 %v5235
    %5237 = vmatprep.subr.mxu0 0.0
    %v5238 = vand.u32 %v1751, 4294901760
    %v5239 = vsub.f32 %v1751, %v5238
    %v5240 = vand.u32 %v5239, 4294901760
    %5241 = vmatpush1.msra.mxu0 %v5240
    %5242 = vmatprep.subr.mxu0 0.0
    %v5243 = vand.u32 %v1748, 4294901760
    %v5244 = vsub.f32 %v1748, %v5243
    %v5245 = vand.u32 %v5244, 4294901760
    %5246 = vmatpush1.msra.mxu0 %v5245
    %5247 = vmatprep.subr.mxu0 0.0
    %v5248 = vand.u32 %v1745, 4294901760
    %v5249 = vsub.f32 %v1745, %v5248
    %v5250 = vand.u32 %v5249, 4294901760
    %5251 = vmatpush1.msra.mxu0 %v5250
    %5252 = vmatprep.subr.mxu0 0.0
    %v5253 = vand.u32 %v1742, 4294901760
    %v5254 = vsub.f32 %v1742, %v5253
    %v5255 = vand.u32 %v5254, 4294901760
    %5256 = vmatpush1.msra.mxu0 %v5255
    %5257 = vmatprep.subr.mxu0 0.0
    %v5258 = vand.u32 %v1739, 4294901760
    %v5259 = vsub.f32 %v1739, %v5258
    %v5260 = vand.u32 %v5259, 4294901760
    %5261 = vmatpush1.msra.mxu0 %v5260
    %5262 = vmatprep.subr.mxu0 0.0
    %v5263 = vand.u32 %v1736, 4294901760
    %v5264 = vsub.f32 %v1736, %v5263
    %v5265 = vand.u32 %v5264, 4294901760
    %5266 = vmatpush1.msra.mxu0 %v5265
    %5267 = vmatprep.subr.mxu0 0.0
    %v5268 = vand.u32 %v1733, 4294901760
    %v5269 = vsub.f32 %v1733, %v5268
    %v5270 = vand.u32 %v5269, 4294901760
    %5271 = vmatpush1.msra.mxu0 %v5270
    %5272 = vmatprep.subr.mxu0 0.0
    %v5273 = vand.u32 %v1730, 4294901760
    %v5274 = vsub.f32 %v1730, %v5273
    %v5275 = vand.u32 %v5274, 4294901760
    %5276 = vmatpush1.msra.mxu0 %v5275
    %5277 = vmatprep.subr.mxu0 0.0
    %v5278 = vand.u32 %v1727, 4294901760
    %v5279 = vsub.f32 %v1727, %v5278
    %v5280 = vand.u32 %v5279, 4294901760
    %5281 = vmatpush1.msra.mxu0 %v5280
    %5282 = vmatprep.subr.mxu0 0.0
    %v5283 = vand.u32 %v1724, 4294901760
    %v5284 = vsub.f32 %v1724, %v5283
    %v5285 = vand.u32 %v5284, 4294901760
    %5286 = vmatpush1.msra.mxu0 %v5285
    %5287 = vmatprep.subr.mxu0 0.0
    %v5288 = vand.u32 %v1721, 4294901760
    %v5289 = vsub.f32 %v1721, %v5288
    %v5290 = vand.u32 %v5289, 4294901760
    %5291 = vmatpush1.msra.mxu0 %v5290
    %5292 = vmatprep.subr.mxu0 0.0
    %v5293 = vand.u32 %v1718, 4294901760
    %v5294 = vsub.f32 %v1718, %v5293
    %v5295 = vand.u32 %v5294, 4294901760
    %5296 = vmatpush1.msra.mxu0 %v5295
    %5297 = vmatprep.subr.mxu0 0.0
    %5298 = vmatpush2.msra.mxu0 0.0
    %5299 = vmatprep.subr.mxu0 0.0
    %5300 = vmatpush2.msra.mxu0 0.0
    %5301 = vmatprep.subr.mxu0 0.0
    %5302 = vmatpush2.msra.mxu0 0.0
    %5303 = vmatprep.subr.mxu0 0.0
    %5304 = vmatpush2.msra.mxu0 0.0
    %5305 = vmatprep.subr.mxu0 0.0
    %5306 = vmatpush2.msra.mxu0 0.0
    %5307 = vmatprep.subr.mxu0 0.0
    %5308 = vmatpush2.msra.mxu0 0.0
    %5309 = vmatprep.subr.mxu0 0.0
    %5310 = vmatpush2.msra.mxu0 0.0
    %5311 = vmatprep.subr.mxu0 0.0
    %5312 = vmatpush2.msra.mxu0 0.0
    %5313 = vmatprep.subr.mxu0 0.0
    %5314 = vmatpush2.msra.mxu0 0.0
    %5315 = vmatprep.subr.mxu0 0.0
    %5316 = vmatpush2.msra.mxu0 0.0
    %5317 = vmatprep.subr.mxu0 0.0
    %5318 = vmatpush2.msra.mxu0 0.0
    %5319 = vmatprep.subr.mxu0 0.0
    %5320 = vmatpush2.msra.mxu0 0.0
    %5321 = vmatprep.subr.mxu0 0.0
    %5322 = vmatpush2.msra.mxu0 0.0
    %5323 = vmatprep.subr.mxu0 0.0
    %5324 = vmatpush2.msra.mxu0 0.0
    %5325 = vmatprep.subr.mxu0 0.0
    %5326 = vmatpush2.msra.mxu0 0.0
    %5327 = vmatprep.subr.mxu0 0.0
    %5328 = vmatpush2.msra.mxu0 0.0
    %5329 = vmatprep.mubr.f32.mxu0 0.0
    %v5330 = vand.u32 %v112, 4294901760
    %5331 = vmatmul.mubr.f32.gmra.mxu0 %v5330
    %v5332 = vpop.f32.mrf.mxu0
    %v5333 = vadd.f32 %v5214, %v5332
    %v5334 = vpop.f32.mrf.mxu0
    %5335 = vdwg.mxu0
    %5336 = vmatprep.subr.mxu0 0.0
    %v5337 = vand.u32 %v1763, 4294901760
    %5338 = vmatpush1.msra.mxu0 %v5337
    %5339 = vmatprep.subr.mxu0 0.0
    %v5340 = vand.u32 %v1760, 4294901760
    %5341 = vmatpush1.msra.mxu0 %v5340
    %5342 = vmatprep.subr.mxu0 0.0
    %v5343 = vand.u32 %v1757, 4294901760
    %5344 = vmatpush1.msra.mxu0 %v5343
    %5345 = vmatprep.subr.mxu0 0.0
    %v5346 = vand.u32 %v1754, 4294901760
    %5347 = vmatpush1.msra.mxu0 %v5346
    %5348 = vmatprep.subr.mxu0 0.0
    %v5349 = vand.u32 %v1751, 4294901760
    %5350 = vmatpush1.msra.mxu0 %v5349
    %5351 = vmatprep.subr.mxu0 0.0
    %v5352 = vand.u32 %v1748, 4294901760
    %5353 = vmatpush1.msra.mxu0 %v5352
    %5354 = vmatprep.subr.mxu0 0.0
    %v5355 = vand.u32 %v1745, 4294901760
    %5356 = vmatpush1.msra.mxu0 %v5355
    %5357 = vmatprep.subr.mxu0 0.0
    %v5358 = vand.u32 %v1742, 4294901760
    %5359 = vmatpush1.msra.mxu0 %v5358
    %5360 = vmatprep.subr.mxu0 0.0
    %v5361 = vand.u32 %v1739, 4294901760
    %5362 = vmatpush1.msra.mxu0 %v5361
    %5363 = vmatprep.subr.mxu0 0.0
    %v5364 = vand.u32 %v1736, 4294901760
    %5365 = vmatpush1.msra.mxu0 %v5364
    %5366 = vmatprep.subr.mxu0 0.0
    %v5367 = vand.u32 %v1733, 4294901760
    %5368 = vmatpush1.msra.mxu0 %v5367
    %5369 = vmatprep.subr.mxu0 0.0
    %v5370 = vand.u32 %v1730, 4294901760
    %5371 = vmatpush1.msra.mxu0 %v5370
    %5372 = vmatprep.subr.mxu0 0.0
    %v5373 = vand.u32 %v1727, 4294901760
    %5374 = vmatpush1.msra.mxu0 %v5373
    %5375 = vmatprep.subr.mxu0 0.0
    %v5376 = vand.u32 %v1724, 4294901760
    %5377 = vmatpush1.msra.mxu0 %v5376
    %5378 = vmatprep.subr.mxu0 0.0
    %v5379 = vand.u32 %v1721, 4294901760
    %5380 = vmatpush1.msra.mxu0 %v5379
    %5381 = vmatprep.subr.mxu0 0.0
    %v5382 = vand.u32 %v1718, 4294901760
    %5383 = vmatpush1.msra.mxu0 %v5382
    %5384 = vmatprep.subr.mxu0 0.0
    %5385 = vmatpush2.msra.mxu0 0.0
    %5386 = vmatprep.subr.mxu0 0.0
    %5387 = vmatpush2.msra.mxu0 0.0
    %5388 = vmatprep.subr.mxu0 0.0
    %5389 = vmatpush2.msra.mxu0 0.0
    %5390 = vmatprep.subr.mxu0 0.0
    %5391 = vmatpush2.msra.mxu0 0.0
    %5392 = vmatprep.subr.mxu0 0.0
    %5393 = vmatpush2.msra.mxu0 0.0
    %5394 = vmatprep.subr.mxu0 0.0
    %5395 = vmatpush2.msra.mxu0 0.0
    %5396 = vmatprep.subr.mxu0 0.0
    %5397 = vmatpush2.msra.mxu0 0.0
    %5398 = vmatprep.subr.mxu0 0.0
    %5399 = vmatpush2.msra.mxu0 0.0
    %5400 = vmatprep.subr.mxu0 0.0
    %5401 = vmatpush2.msra.mxu0 0.0
    %5402 = vmatprep.subr.mxu0 0.0
    %5403 = vmatpush2.msra.mxu0 0.0
    %5404 = vmatprep.subr.mxu0 0.0
    %5405 = vmatpush2.msra.mxu0 0.0
    %5406 = vmatprep.subr.mxu0 0.0
    %5407 = vmatpush2.msra.mxu0 0.0
    %5408 = vmatprep.subr.mxu0 0.0
    %5409 = vmatpush2.msra.mxu0 0.0
    %5410 = vmatprep.subr.mxu0 0.0
    %5411 = vmatpush2.msra.mxu0 0.0
    %5412 = vmatprep.subr.mxu0 0.0
    %5413 = vmatpush2.msra.mxu0 0.0
    %5414 = vmatprep.subr.mxu0 0.0
    %5415 = vmatpush2.msra.mxu0 0.0
    %5416 = vmatprep.mubr.f32.mxu0 0.0
    %v5417 = vand.u32 %v112, 4294901760
    %5418 = vmatmul.mubr.f32.gmra.mxu0 %v5417
    %v5419 = vpop.f32.mrf.mxu0
    %v5420 = vadd.f32 %v5333, %v5419
    %v5421 = vpop.f32.mrf.mxu0
    %5422 = vdwg.mxu0
    %v5426 = vcombine.low %v3916, %v3918
    %v5428 = vunpack.c.l.s4 1966171168
    %v5429 = vunpack.c.0.s8 %v5428
    %v5430 = vlaneseq
    %v5431 = vshrl.u32 %v5430, 7
    %v5432 = vsub.s32 %v5429, %v5431
    %v5433 = vrot.slane %v5426, %v5432
    %v5435 = vunpack.c.l.s4 1966171168
    %v5436 = vunpack.c.0.s8 %v5435
    %v5437 = vlaneseq
    %v5438 = vshrl.u32 %v5437, 7
    %v5439 = vsub.s32 %v5436, %v5438
    %v5440 = vrot.slane %v5420, %v5439
    %v5441 = vcombine.low %v5433, %v5440
    %v5443 = vunpack.c.l.s4 1966171168
    %v5444 = vunpack.c.0.s8 %v5443
    %v5445 = vlaneseq
    %v5446 = vshrl.u32 %v5445, 7
    %v5447 = vsub.s32 %v5444, %v5446
    %v5448 = vrot.slane %v5441, %v5447
    %v5450 = vlaneseq
    %vm5451 = vcmp.ge.s32.totalorder %v5450, 0
    %vm5452 = vcmp.lt.s32.totalorder %v5450, 384
    %vm5453 = vmand %vm5451, %vm5452
    %5454 = vst.msk [vmem:[%s6] sm:$0x7] %vm5453, %v5448
    // Predicated region
    $region30: #{dummynet_forward.1} parent=1 // pred_check
      _
    $region31: #{dummynet_forward.1} parent=1 // pred_check_branch
      %5456 = sbr.rel (0) target = $region33
    $region32: #{dummynet_forward.1} parent=1 // pred_region
      _
    $region33: #{dummynet_forward.1} parent=1 // pred_fallthru
      _
    // Predicated region
    $region34: #{dummynet_forward.1} parent=1 // pred_check
      _
    $region35: #{dummynet_forward.1} parent=1 // pred_check_branch
      %5458 = sbr.rel (0) target = $region37
    $region36: #{dummynet_forward.1} parent=1 // pred_region
      _
    $region37: #{dummynet_forward.1} parent=1 // pred_fallthru
      _
    // Predicated region
    $region38: #{dummynet_forward.1} parent=1 // pred_check
      _
    $region39: #{dummynet_forward.1} parent=1 // pred_check_branch
      %5460 = sbr.rel (0) target = $region41
    $region40: #{dummynet_forward.1} parent=1 // pred_region
      _
    $region41: #{dummynet_forward.1} parent=1 // pred_fallthru
      _
    // Predicated region
    $region42: #{dummynet_forward.1} parent=1 // pred_check
      _
    $region43: #{dummynet_forward.1} parent=1 // pred_check_branch
      %5462 = sbr.rel (0) target = $region45
    $region44: #{dummynet_forward.1} parent=1 // pred_region
      _
    $region45: #{dummynet_forward.1} parent=1 // pred_fallthru
      _
    %5463 = vsyncpa [#allocation3], 1
    %5464 = vsyncpa [#allocation5], 1

</llo_original>
